<compile_context>
chip_gen: v5e
topology: v5e:2x2
jax: 0.10.0
libtpu: 0.0.40
codegen_flags: <defaults>
</compile_context>

<pallas_src>
import functools

import jax
import jax.numpy as jnp
from jax.experimental import pallas as pl
from jax.experimental.pallas import tpu as pltpu


def _round_up(a, b):
    return -(-a // b) * b


def _shifted_conv_kernel(taps, W, row_chunks, f_ref, x_ref, o_ref):
    # f_ref: SMEM (S*kh*kw,) float32 flattened filter weights
    # x_ref: VMEM (H_pad, W_pad, TN)  zero-padded image block, N on the lane dim
    # o_ref: VMEM (S, H, W, TN)
    #
    # All loops are static Python (S * ceil(H/row_chunk) * kh*kw is small), so
    # the body is fully unrolled and every tap is a static slice of the ref:
    # leading-dim offset (rows) + sublane offset (cols); the lane dim (TN
    # images) is always dense and untouched.
    for s, s_taps in enumerate(taps):
        for i0, rh in row_chunks:
            acc = None
            for r0, c0, widx in s_taps:
                w = f_ref[widx]                                   # scalar from SMEM
                tap = x_ref[r0 + i0:r0 + i0 + rh,
                            c0:c0 + W, :].astype(jnp.float32) * w
                acc = tap if acc is None else acc + tap
            o_ref[s, i0:i0 + rh, :, :] = acc


def shifted_conv2d(x, shifts, filters, *, tn_cap=512, row_chunk=4,
                   vmem_budget_bytes=24 * 1024 * 1024):
    """Pallas equivalent of ShiftedConv2d.forward (stride=1, padding=0).

    x:       (B, C, H, W)
    shifts:  tuple of S python (dy, dx) int pairs (module config, baked at trace time)
    filters: (S, kh, kw) float parameters (one filter per shift, as in the module)
    returns: (B, C*S, H, W) float32
    """
    # TODO(synk): stride > 1 and nonzero `padding` constructor args are not implemented
    B, C, H, W = x.shape
    S, kh, kw = filters.shape
    assert len(shifts) == S

    dys = [int(s[0]) for s in shifts]
    dxs = [int(s[1]) for s in shifts]
    pad_top = max(0, max(dys))
    pad_bot = (kh - 1) + max(0, -min(dys))
    pad_left = max(0, max(dxs))
    pad_right = (kw - 1) + max(0, -min(dxs))
    H_pad = H + pad_top + pad_bot
    W_pad = _round_up(W + pad_left + pad_right, 8)   # sublane-align; extra zero cols never read

    N = B * C
    # Lane-dense image block: largest multiple of 128 whose double-buffered
    # in+out blocks fit the VMEM budget, capped and clamped to the problem size.
    bytes_per_image = H_pad * W_pad * x.dtype.itemsize + S * H * W * 4
    tn_fit = max(128, (vmem_budget_bytes // (2 * bytes_per_image)) // 128 * 128)
    tn = min(tn_cap, tn_fit, _round_up(max(N, 1), 128))
    N_pad = _round_up(N, tn)
    vmem_limit = int(min(128 * 1024 * 1024,
                         max(32 * 1024 * 1024,
                             2 * tn * bytes_per_image + (2 << 20))))

    # N-last, zero-padded layout.  Transpose+pad is a single small XLA pass over
    # the input (1/S of the output size).  The f32 cast happens inside the kernel.
    x_t = jnp.transpose(x.reshape(N, H, W), (1, 2, 0))           # (H, W, N)
    x_t = jnp.pad(x_t, ((pad_top, H_pad - H - pad_top),
                        (pad_left, W_pad - W - pad_left),
                        (0, N_pad - N)))
    f_flat = filters.reshape(-1).astype(jnp.float32)

    # Static tap table: (row offset, col offset, flat weight index) per shift.
    taps = tuple(
        tuple((pad_top + a - dys[s], pad_left + b - dxs[s], (s * kh + a) * kw + b)
              for a in range(kh) for b in range(kw))
        for s in range(S))

    # Row chunking keeps each live accumulator around (row_chunk, W, tn) f32,
    # i.e. ~8-16 vregs at the default sizes -> no register spilling.
    row_chunks = []
    i0 = 0
    while i0 < H:
        rh = min(row_chunk, H - i0)
        row_chunks.append((i0, rh))
        i0 += rh
    row_chunks = tuple(row_chunks)

    kernel = functools.partial(_shifted_conv_kernel, taps, W, row_chunks)

    out = pl.pallas_call(
        kernel,
        out_shape=jax.ShapeDtypeStruct((S, H, W, N_pad), jnp.float32),
        grid=(N_pad // tn,),
        in_specs=[
            pl.BlockSpec(memory_space=pltpu.MemorySpace.SMEM),         # filters (whole array)
            pl.BlockSpec((H_pad, W_pad, tn), lambda n: (0, 0, n)),     # TN images, N on lanes
        ],
        out_specs=pl.BlockSpec((S, H, W, tn), lambda n: (0, 0, 0, n)),
        compiler_params=pltpu.CompilerParams(
            dimension_semantics=("parallel",),
            vmem_limit_bytes=vmem_limit),
    )(f_flat, x_t)

    # (S, H, W, N_pad) -> (N, S, H, W) -> (B, C*S, H, W); channel order c*S + s
    out = jnp.transpose(out[..., :N], (3, 0, 1, 2)).reshape(B, C * S, H, W)
    return out


def shifted_conv2d_reference(x, shifts, filters):
    """Faithful JAX port of the PyTorch forward path:
    pad (0, kw-1, 0, kh-1) -> per-shift non-cyclic roll -> valid conv -> concat."""
    B, C, H, W = x.shape
    S, kh, kw = filters.shape
    xf = x.reshape(B * C, 1, H, W).astype(jnp.float32)
    xp = jnp.pad(xf, ((0, 0), (0, 0), (0, kh - 1), (0, kw - 1)))
    Hp, Wp = H + kh - 1, W + kw - 1
    outs = []
    for s, (dy, dx) in enumerate(shifts):
        y = jnp.roll(xp, (dy, dx), axis=(2, 3))
        hidx = jnp.arange(Hp) - dy
        widx = jnp.arange(Wp) - dx
        hmask = ((hidx >= 0) & (hidx < Hp)).astype(jnp.float32)
        wmask = ((widx >= 0) & (widx < Wp)).astype(jnp.float32)
        y = y * hmask[None, None, :, None] * wmask[None, None, None, :]
        o = jax.lax.conv_general_dilated(
            y, filters[s][None, None].astype(jnp.float32),
            window_strides=(1, 1), padding="VALID",
            dimension_numbers=("NCHW", "OIHW", "NCHW"))
        outs.append(o)
    out = jnp.concatenate(outs, axis=1)  # (B*C, S, H, W)
    return out.reshape(B, C * S, H, W)


if __name__ == "__main__":
    key = jax.random.PRNGKey(0)
    kx, kf = jax.random.split(key)

    B, C, H, W = 2, 4, 16, 16
    shifts = ((0, 0), (1, 2), (-1, 1), (2, -2))   # (dy, dx) per shift
    S, kh, kw = len(shifts), 2, 3

    x = jax.random.normal(kx, (B, C, H, W), dtype=jnp.float32)
    filters = jax.random.normal(kf, (S, kh, kw), dtype=jnp.float32)

    # jit the whole wrapper: pad/transpose layout plumbing fuses into XLA
    # around the single pallas_call (shifts are static Python config).
    run = jax.jit(lambda xx, ff: shifted_conv2d(xx, shifts, ff))

    out = run(x, filters)
    out = jax.block_until_ready(out)

    ref = shifted_conv2d_reference(x, shifts, filters)
    assert out.shape == (B, C * S, H, W), out.shape
    max_err = float(jnp.max(jnp.abs(out - ref)))
    assert jnp.allclose(out, ref, rtol=1e-5, atol=1e-5), max_err

    print("KERNEL_OK")
</pallas_src>

<mosaic_0001>
module attributes {stable_mosaic.version = 11 : i64} {
  func.func @_shifted_conv_kernel(%arg0: i32, %arg1: memref<24xf32, #tpu.memory_space<smem>>, %arg2: memref<20x24x128xf32, #tpu.memory_space<vmem>>, %arg3: memref<4x16x16x128xf32, #tpu.memory_space<vmem>>) attributes {dimension_semantics = [#tpu.dimension_semantics<parallel>], iteration_bounds = array<i64: 1>, scalar_prefetch = 0 : i64, scratch_operands = 0 : i64, tpu.core_type = #tpu.core_type<tc>, window_params = [{transform_indices = @transform_0, window_bounds = array<i64: 24>}, {transform_indices = @transform_1, window_bounds = array<i64: 20, 24, 128>}, {transform_indices = @transform_2, window_bounds = array<i64: 4, 16, 16, 128>}]} {
    %c0 = arith.constant 0 : index
    %0 = memref.load %arg1[%c0] : memref<24xf32, #tpu.memory_space<smem>>
    %c2 = arith.constant 2 : index
    %c2_0 = arith.constant 2 : index
    %c0_1 = arith.constant 0 : index
    %1 = vector.load %arg2[%c2, %c2_0, %c0_1] : memref<20x24x128xf32, #tpu.memory_space<vmem>>, vector<4x16x128xf32>
    %2 = vector.broadcast %0 : f32 to vector<4x16x128xf32>
    %3 = arith.mulf %1, %2 : vector<4x16x128xf32>
    %c1 = arith.constant 1 : index
    %4 = memref.load %arg1[%c1] : memref<24xf32, #tpu.memory_space<smem>>
    %c2_2 = arith.constant 2 : index
    %c3 = arith.constant 3 : index
    %c0_3 = arith.constant 0 : index
    %5 = vector.load %arg2[%c2_2, %c3, %c0_3] : memref<20x24x128xf32, #tpu.memory_space<vmem>>, vector<4x16x128xf32>
    %6 = vector.broadcast %4 : f32 to vector<4x16x128xf32>
    %7 = arith.mulf %5, %6 : vector<4x16x128xf32>
    %8 = arith.addf %3, %7 : vector<4x16x128xf32>
    %c2_4 = arith.constant 2 : index
    %9 = memref.load %arg1[%c2_4] : memref<24xf32, #tpu.memory_space<smem>>
    %c2_5 = arith.constant 2 : index
    %c4 = arith.constant 4 : index
    %c0_6 = arith.constant 0 : index
    %10 = vector.load %arg2[%c2_5, %c4, %c0_6] : memref<20x24x128xf32, #tpu.memory_space<vmem>>, vector<4x16x128xf32>
    %11 = vector.broadcast %9 : f32 to vector<4x16x128xf32>
    %12 = arith.mulf %10, %11 : vector<4x16x128xf32>
    %13 = arith.addf %8, %12 : vector<4x16x128xf32>
    %c3_7 = arith.constant 3 : index
    %14 = memref.load %arg1[%c3_7] : memref<24xf32, #tpu.memory_space<smem>>
    %c3_8 = arith.constant 3 : index
    %c2_9 = arith.constant 2 : index
    %c0_10 = arith.constant 0 : index
    %15 = vector.load %arg2[%c3_8, %c2_9, %c0_10] : memref<20x24x128xf32, #tpu.memory_space<vmem>>, vector<4x16x128xf32>
    %16 = vector.broadcast %14 : f32 to vector<4x16x128xf32>
    %17 = arith.mulf %15, %16 : vector<4x16x128xf32>
    %18 = arith.addf %13, %17 : vector<4x16x128xf32>
    %c4_11 = arith.constant 4 : index
    %19 = memref.load %arg1[%c4_11] : memref<24xf32, #tpu.memory_space<smem>>
    %c3_12 = arith.constant 3 : index
    %c3_13 = arith.constant 3 : index
    %c0_14 = arith.constant 0 : index
    %20 = vector.load %arg2[%c3_12, %c3_13, %c0_14] : memref<20x24x128xf32, #tpu.memory_space<vmem>>, vector<4x16x128xf32>
    %21 = vector.broadcast %19 : f32 to vector<4x16x128xf32>
    %22 = arith.mulf %20, %21 : vector<4x16x128xf32>
    %23 = arith.addf %18, %22 : vector<4x16x128xf32>
    %c5 = arith.constant 5 : index
    %24 = memref.load %arg1[%c5] : memref<24xf32, #tpu.memory_space<smem>>
    %c3_15 = arith.constant 3 : index
    %c4_16 = arith.constant 4 : index
    %c0_17 = arith.constant 0 : index
    %25 = vector.load %arg2[%c3_15, %c4_16, %c0_17] : memref<20x24x128xf32, #tpu.memory_space<vmem>>, vector<4x16x128xf32>
    %26 = vector.broadcast %24 : f32 to vector<4x16x128xf32>
    %27 = arith.mulf %25, %26 : vector<4x16x128xf32>
    %28 = arith.addf %23, %27 : vector<4x16x128xf32>
    %c0_18 = arith.constant 0 : index
    %c0_19 = arith.constant 0 : index
    %c0_20 = arith.constant 0 : index
    %c0_21 = arith.constant 0 : index
    %29 = vector.load %arg3[%c0_18, %c0_19, %c0_20, %c0_21] : memref<4x16x16x128xf32, #tpu.memory_space<vmem>>, vector<1x4x16x128xf32>
    %30 = vector.shape_cast %29 : vector<1x4x16x128xf32> to vector<4x16x128xf32>
    %31 = vector.shape_cast %28 : vector<4x16x128xf32> to vector<1x4x16x128xf32>
    tpu.vector_store %arg3[%c0_18, %c0_19, %c0_20, %c0_21], %31 {strides = array<i32>} : memref<4x16x16x128xf32, #tpu.memory_space<vmem>>, vector<1x4x16x128xf32>,
    %c0_22 = arith.constant 0 : index
    %32 = memref.load %arg1[%c0_22] : memref<24xf32, #tpu.memory_space<smem>>
    %c6 = arith.constant 6 : index
    %c2_23 = arith.constant 2 : index
    %c0_24 = arith.constant 0 : index
    %33 = vector.load %arg2[%c6, %c2_23, %c0_24] : memref<20x24x128xf32, #tpu.memory_space<vmem>>, vector<4x16x128xf32>
    %34 = vector.broadcast %32 : f32 to vector<4x16x128xf32>
    %35 = arith.mulf %33, %34 : vector<4x16x128xf32>
    %c1_25 = arith.constant 1 : index
    %36 = memref.load %arg1[%c1_25] : memref<24xf32, #tpu.memory_space<smem>>
    %c6_26 = arith.constant 6 : index
    %c3_27 = arith.constant 3 : index
    %c0_28 = arith.constant 0 : index
    %37 = vector.load %arg2[%c6_26, %c3_27, %c0_28] : memref<20x24x128xf32, #tpu.memory_space<vmem>>, vector<4x16x128xf32>
    %38 = vector.broadcast %36 : f32 to vector<4x16x128xf32>
    %39 = arith.mulf %37, %38 : vector<4x16x128xf32>
    %40 = arith.addf %35, %39 : vector<4x16x128xf32>
    %c2_29 = arith.constant 2 : index
    %41 = memref.load %arg1[%c2_29] : memref<24xf32, #tpu.memory_space<smem>>
    %c6_30 = arith.constant 6 : index
    %c4_31 = arith.constant 4 : index
    %c0_32 = arith.constant 0 : index
    %42 = vector.load %arg2[%c6_30, %c4_31, %c0_32] : memref<20x24x128xf32, #tpu.memory_space<vmem>>, vector<4x16x128xf32>
    %43 = vector.broadcast %41 : f32 to vector<4x16x128xf32>
    %44 = arith.mulf %42, %43 : vector<4x16x128xf32>
    %45 = arith.addf %40, %44 : vector<4x16x128xf32>
    %c3_33 = arith.constant 3 : index
    %46 = memref.load %arg1[%c3_33] : memref<24xf32, #tpu.memory_space<smem>>
    %c7 = arith.constant 7 : index
    %c2_34 = arith.constant 2 : index
    %c0_35 = arith.constant 0 : index
    %47 = vector.load %arg2[%c7, %c2_34, %c0_35] : memref<20x24x128xf32, #tpu.memory_space<vmem>>, vector<4x16x128xf32>
    %48 = vector.broadcast %46 : f32 to vector<4x16x128xf32>
    %49 = arith.mulf %47, %48 : vector<4x16x128xf32>
    %50 = arith.addf %45, %49 : vector<4x16x128xf32>
    %c4_36 = arith.constant 4 : index
    %51 = memref.load %arg1[%c4_36] : memref<24xf32, #tpu.memory_space<smem>>
    %c7_37 = arith.constant 7 : index
    %c3_38 = arith.constant 3 : index
    %c0_39 = arith.constant 0 : index
    %52 = vector.load %arg2[%c7_37, %c3_38, %c0_39] : memref<20x24x128xf32, #tpu.memory_space<vmem>>, vector<4x16x128xf32>
    %53 = vector.broadcast %51 : f32 to vector<4x16x128xf32>
    %54 = arith.mulf %52, %53 : vector<4x16x128xf32>
    %55 = arith.addf %50, %54 : vector<4x16x128xf32>
    %c5_40 = arith.constant 5 : index
    %56 = memref.load %arg1[%c5_40] : memref<24xf32, #tpu.memory_space<smem>>
    %c7_41 = arith.constant 7 : index
    %c4_42 = arith.constant 4 : index
    %c0_43 = arith.constant 0 : index
    %57 = vector.load %arg2[%c7_41, %c4_42, %c0_43] : memref<20x24x128xf32, #tpu.memory_space<vmem>>, vector<4x16x128xf32>
    %58 = vector.broadcast %56 : f32 to vector<4x16x128xf32>
    %59 = arith.mulf %57, %58 : vector<4x16x128xf32>
    %60 = arith.addf %55, %59 : vector<4x16x128xf32>
    %c0_44 = arith.constant 0 : index
    %c4_45 = arith.constant 4 : index
    %c0_46 = arith.constant 0 : index
    %c0_47 = arith.constant 0 : index
    %61 = vector.load %arg3[%c0_44, %c4_45, %c0_46, %c0_47] : memref<4x16x16x128xf32, #tpu.memory_space<vmem>>, vector<1x4x16x128xf32>
    %62 = vector.shape_cast %61 : vector<1x4x16x128xf32> to vector<4x16x128xf32>
    %63 = vector.shape_cast %60 : vector<4x16x128xf32> to vector<1x4x16x128xf32>
    tpu.vector_store %arg3[%c0_44, %c4_45, %c0_46, %c0_47], %63 {strides = array<i32>} : memref<4x16x16x128xf32, #tpu.memory_space<vmem>>, vector<1x4x16x128xf32>,
    %c0_48 = arith.constant 0 : index
    %64 = memref.load %arg1[%c0_48] : memref<24xf32, #tpu.memory_space<smem>>
    %c10 = arith.constant 10 : index
    %c2_49 = arith.constant 2 : index
    %c0_50 = arith.constant 0 : index
    %65 = vector.load %arg2[%c10, %c2_49, %c0_50] : memref<20x24x128xf32, #tpu.memory_space<vmem>>, vector<4x16x128xf32>
    %66 = vector.broadcast %64 : f32 to vector<4x16x128xf32>
    %67 = arith.mulf %65, %66 : vector<4x16x128xf32>
    %c1_51 = arith.constant 1 : index
    %68 = memref.load %arg1[%c1_51] : memref<24xf32, #tpu.memory_space<smem>>
    %c10_52 = arith.constant 10 : index
    %c3_53 = arith.constant 3 : index
    %c0_54 = arith.constant 0 : index
    %69 = vector.load %arg2[%c10_52, %c3_53, %c0_54] : memref<20x24x128xf32, #tpu.memory_space<vmem>>, vector<4x16x128xf32>
    %70 = vector.broadcast %68 : f32 to vector<4x16x128xf32>
    %71 = arith.mulf %69, %70 : vector<4x16x128xf32>
    %72 = arith.addf %67, %71 : vector<4x16x128xf32>
    %c2_55 = arith.constant 2 : index
    %73 = memref.load %arg1[%c2_55] : memref<24xf32, #tpu.memory_space<smem>>
    %c10_56 = arith.constant 10 : index
    %c4_57 = arith.constant 4 : index
    %c0_58 = arith.constant 0 : index
    %74 = vector.load %arg2[%c10_56, %c4_57, %c0_58] : memref<20x24x128xf32, #tpu.memory_space<vmem>>, vector<4x16x128xf32>
    %75 = vector.broadcast %73 : f32 to vector<4x16x128xf32>
    %76 = arith.mulf %74, %75 : vector<4x16x128xf32>
    %77 = arith.addf %72, %76 : vector<4x16x128xf32>
    %c3_59 = arith.constant 3 : index
    %78 = memref.load %arg1[%c3_59] : memref<24xf32, #tpu.memory_space<smem>>
    %c11 = arith.constant 11 : index
    %c2_60 = arith.constant 2 : index
    %c0_61 = arith.constant 0 : index
    %79 = vector.load %arg2[%c11, %c2_60, %c0_61] : memref<20x24x128xf32, #tpu.memory_space<vmem>>, vector<4x16x128xf32>
    %80 = vector.broadcast %78 : f32 to vector<4x16x128xf32>
    %81 = arith.mulf %79, %80 : vector<4x16x128xf32>
    %82 = arith.addf %77, %81 : vector<4x16x128xf32>
    %c4_62 = arith.constant 4 : index
    %83 = memref.load %arg1[%c4_62] : memref<24xf32, #tpu.memory_space<smem>>
    %c11_63 = arith.constant 11 : index
    %c3_64 = arith.constant 3 : index
    %c0_65 = arith.constant 0 : index
    %84 = vector.load %arg2[%c11_63, %c3_64, %c0_65] : memref<20x24x128xf32, #tpu.memory_space<vmem>>, vector<4x16x128xf32>
    %85 = vector.broadcast %83 : f32 to vector<4x16x128xf32>
    %86 = arith.mulf %84, %85 : vector<4x16x128xf32>
    %87 = arith.addf %82, %86 : vector<4x16x128xf32>
    %c5_66 = arith.constant 5 : index
    %88 = memref.load %arg1[%c5_66] : memref<24xf32, #tpu.memory_space<smem>>
    %c11_67 = arith.constant 11 : index
    %c4_68 = arith.constant 4 : index
    %c0_69 = arith.constant 0 : index
    %89 = vector.load %arg2[%c11_67, %c4_68, %c0_69] : memref<20x24x128xf32, #tpu.memory_space<vmem>>, vector<4x16x128xf32>
    %90 = vector.broadcast %88 : f32 to vector<4x16x128xf32>
    %91 = arith.mulf %89, %90 : vector<4x16x128xf32>
    %92 = arith.addf %87, %91 : vector<4x16x128xf32>
    %c0_70 = arith.constant 0 : index
    %c8 = arith.constant 8 : index
    %c0_71 = arith.constant 0 : index
    %c0_72 = arith.constant 0 : index
    %93 = vector.load %arg3[%c0_70, %c8, %c0_71, %c0_72] : memref<4x16x16x128xf32, #tpu.memory_space<vmem>>, vector<1x4x16x128xf32>
    %94 = vector.shape_cast %93 : vector<1x4x16x128xf32> to vector<4x16x128xf32>
    %95 = vector.shape_cast %92 : vector<4x16x128xf32> to vector<1x4x16x128xf32>
    tpu.vector_store %arg3[%c0_70, %c8, %c0_71, %c0_72], %95 {strides = array<i32>} : memref<4x16x16x128xf32, #tpu.memory_space<vmem>>, vector<1x4x16x128xf32>,
    %c0_73 = arith.constant 0 : index
    %96 = memref.load %arg1[%c0_73] : memref<24xf32, #tpu.memory_space<smem>>
    %c14 = arith.constant 14 : index
    %c2_74 = arith.constant 2 : index
    %c0_75 = arith.constant 0 : index
    %97 = vector.load %arg2[%c14, %c2_74, %c0_75] : memref<20x24x128xf32, #tpu.memory_space<vmem>>, vector<4x16x128xf32>
    %98 = vector.broadcast %96 : f32 to vector<4x16x128xf32>
    %99 = arith.mulf %97, %98 : vector<4x16x128xf32>
    %c1_76 = arith.constant 1 : index
    %100 = memref.load %arg1[%c1_76] : memref<24xf32, #tpu.memory_space<smem>>
    %c14_77 = arith.constant 14 : index
    %c3_78 = arith.constant 3 : index
    %c0_79 = arith.constant 0 : index
    %101 = vector.load %arg2[%c14_77, %c3_78, %c0_79] : memref<20x24x128xf32, #tpu.memory_space<vmem>>, vector<4x16x128xf32>
    %102 = vector.broadcast %100 : f32 to vector<4x16x128xf32>
    %103 = arith.mulf %101, %102 : vector<4x16x128xf32>
    %104 = arith.addf %99, %103 : vector<4x16x128xf32>
    %c2_80 = arith.constant 2 : index
    %105 = memref.load %arg1[%c2_80] : memref<24xf32, #tpu.memory_space<smem>>
    %c14_81 = arith.constant 14 : index
    %c4_82 = arith.constant 4 : index
    %c0_83 = arith.constant 0 : index
    %106 = vector.load %arg2[%c14_81, %c4_82, %c0_83] : memref<20x24x128xf32, #tpu.memory_space<vmem>>, vector<4x16x128xf32>
    %107 = vector.broadcast %105 : f32 to vector<4x16x128xf32>
    %108 = arith.mulf %106, %107 : vector<4x16x128xf32>
    %109 = arith.addf %104, %108 : vector<4x16x128xf32>
    %c3_84 = arith.constant 3 : index
    %110 = memref.load %arg1[%c3_84] : memref<24xf32, #tpu.memory_space<smem>>
    %c15 = arith.constant 15 : index
    %c2_85 = arith.constant 2 : index
    %c0_86 = arith.constant 0 : index
    %111 = vector.load %arg2[%c15, %c2_85, %c0_86] : memref<20x24x128xf32, #tpu.memory_space<vmem>>, vector<4x16x128xf32>
    %112 = vector.broadcast %110 : f32 to vector<4x16x128xf32>
    %113 = arith.mulf %111, %112 : vector<4x16x128xf32>
    %114 = arith.addf %109, %113 : vector<4x16x128xf32>
    %c4_87 = arith.constant 4 : index
    %115 = memref.load %arg1[%c4_87] : memref<24xf32, #tpu.memory_space<smem>>
    %c15_88 = arith.constant 15 : index
    %c3_89 = arith.constant 3 : index
    %c0_90 = arith.constant 0 : index
    %116 = vector.load %arg2[%c15_88, %c3_89, %c0_90] : memref<20x24x128xf32, #tpu.memory_space<vmem>>, vector<4x16x128xf32>
    %117 = vector.broadcast %115 : f32 to vector<4x16x128xf32>
    %118 = arith.mulf %116, %117 : vector<4x16x128xf32>
    %119 = arith.addf %114, %118 : vector<4x16x128xf32>
    %c5_91 = arith.constant 5 : index
    %120 = memref.load %arg1[%c5_91] : memref<24xf32, #tpu.memory_space<smem>>
    %c15_92 = arith.constant 15 : index
    %c4_93 = arith.constant 4 : index
    %c0_94 = arith.constant 0 : index
    %121 = vector.load %arg2[%c15_92, %c4_93, %c0_94] : memref<20x24x128xf32, #tpu.memory_space<vmem>>, vector<4x16x128xf32>
    %122 = vector.broadcast %120 : f32 to vector<4x16x128xf32>
    %123 = arith.mulf %121, %122 : vector<4x16x128xf32>
    %124 = arith.addf %119, %123 : vector<4x16x128xf32>
    %c0_95 = arith.constant 0 : index
    %c12 = arith.constant 12 : index
    %c0_96 = arith.constant 0 : index
    %c0_97 = arith.constant 0 : index
    %125 = vector.load %arg3[%c0_95, %c12, %c0_96, %c0_97] : memref<4x16x16x128xf32, #tpu.memory_space<vmem>>, vector<1x4x16x128xf32>
    %126 = vector.shape_cast %125 : vector<1x4x16x128xf32> to vector<4x16x128xf32>
    %127 = vector.shape_cast %124 : vector<4x16x128xf32> to vector<1x4x16x128xf32>
    tpu.vector_store %arg3[%c0_95, %c12, %c0_96, %c0_97], %127 {strides = array<i32>} : memref<4x16x16x128xf32, #tpu.memory_space<vmem>>, vector<1x4x16x128xf32>,
    %c6_98 = arith.constant 6 : index
    %128 = memref.load %arg1[%c6_98] : memref<24xf32, #tpu.memory_space<smem>>
    %c1_99 = arith.constant 1 : index
    %c0_100 = arith.constant 0 : index
    %c0_101 = arith.constant 0 : index
    %129 = vector.load %arg2[%c1_99, %c0_100, %c0_101] : memref<20x24x128xf32, #tpu.memory_space<vmem>>, vector<4x16x128xf32>
    %130 = vector.broadcast %128 : f32 to vector<4x16x128xf32>
    %131 = arith.mulf %129, %130 : vector<4x16x128xf32>
    %c7_102 = arith.constant 7 : index
    %132 = memref.load %arg1[%c7_102] : memref<24xf32, #tpu.memory_space<smem>>
    %c1_103 = arith.constant 1 : index
    %c1_104 = arith.constant 1 : index
    %c0_105 = arith.constant 0 : index
    %133 = vector.load %arg2[%c1_103, %c1_104, %c0_105] : memref<20x24x128xf32, #tpu.memory_space<vmem>>, vector<4x16x128xf32>
    %134 = vector.broadcast %132 : f32 to vector<4x16x128xf32>
    %135 = arith.mulf %133, %134 : vector<4x16x128xf32>
    %136 = arith.addf %131, %135 : vector<4x16x128xf32>
    %c8_106 = arith.constant 8 : index
    %137 = memref.load %arg1[%c8_106] : memref<24xf32, #tpu.memory_space<smem>>
    %c1_107 = arith.constant 1 : index
    %c2_108 = arith.constant 2 : index
    %c0_109 = arith.constant 0 : index
    %138 = vector.load %arg2[%c1_107, %c2_108, %c0_109] : memref<20x24x128xf32, #tpu.memory_space<vmem>>, vector<4x16x128xf32>
    %139 = vector.broadcast %137 : f32 to vector<4x16x128xf32>
    %140 = arith.mulf %138, %139 : vector<4x16x128xf32>
    %141 = arith.addf %136, %140 : vector<4x16x128xf32>
    %c9 = arith.constant 9 : index
    %142 = memref.load %arg1[%c9] : memref<24xf32, #tpu.memory_space<smem>>
    %c2_110 = arith.constant 2 : index
    %c0_111 = arith.constant 0 : index
    %c0_112 = arith.constant 0 : index
    %143 = vector.load %arg2[%c2_110, %c0_111, %c0_112] : memref<20x24x128xf32, #tpu.memory_space<vmem>>, vector<4x16x128xf32>
    %144 = vector.broadcast %142 : f32 to vector<4x16x128xf32>
    %145 = arith.mulf %143, %144 : vector<4x16x128xf32>
    %146 = arith.addf %141, %145 : vector<4x16x128xf32>
    %c10_113 = arith.constant 10 : index
    %147 = memref.load %arg1[%c10_113] : memref<24xf32, #tpu.memory_space<smem>>
    %c2_114 = arith.constant 2 : index
    %c1_115 = arith.constant 1 : index
    %c0_116 = arith.constant 0 : index
    %148 = vector.load %arg2[%c2_114, %c1_115, %c0_116] : memref<20x24x128xf32, #tpu.memory_space<vmem>>, vector<4x16x128xf32>
    %149 = vector.broadcast %147 : f32 to vector<4x16x128xf32>
    %150 = arith.mulf %148, %149 : vector<4x16x128xf32>
    %151 = arith.addf %146, %150 : vector<4x16x128xf32>
    %c11_117 = arith.constant 11 : index
    %152 = memref.load %arg1[%c11_117] : memref<24xf32, #tpu.memory_space<smem>>
    %c2_118 = arith.constant 2 : index
    %c2_119 = arith.constant 2 : index
    %c0_120 = arith.constant 0 : index
    %153 = vector.load %arg2[%c2_118, %c2_119, %c0_120] : memref<20x24x128xf32, #tpu.memory_space<vmem>>, vector<4x16x128xf32>
    %154 = vector.broadcast %152 : f32 to vector<4x16x128xf32>
    %155 = arith.mulf %153, %154 : vector<4x16x128xf32>
    %156 = arith.addf %151, %155 : vector<4x16x128xf32>
    %c1_121 = arith.constant 1 : index
    %c0_122 = arith.constant 0 : index
    %c0_123 = arith.constant 0 : index
    %c0_124 = arith.constant 0 : index
    %157 = vector.load %arg3[%c1_121, %c0_122, %c0_123, %c0_124] : memref<4x16x16x128xf32, #tpu.memory_space<vmem>>, vector<1x4x16x128xf32>
    %158 = vector.shape_cast %157 : vector<1x4x16x128xf32> to vector<4x16x128xf32>
    %159 = vector.shape_cast %156 : vector<4x16x128xf32> to vector<1x4x16x128xf32>
    tpu.vector_store %arg3[%c1_121, %c0_122, %c0_123, %c0_124], %159 {strides = array<i32>} : memref<4x16x16x128xf32, #tpu.memory_space<vmem>>, vector<1x4x16x128xf32>,
    %c6_125 = arith.constant 6 : index
    %160 = memref.load %arg1[%c6_125] : memref<24xf32, #tpu.memory_space<smem>>
    %c5_126 = arith.constant 5 : index
    %c0_127 = arith.constant 0 : index
    %c0_128 = arith.constant 0 : index
    %161 = vector.load %arg2[%c5_126, %c0_127, %c0_128] : memref<20x24x128xf32, #tpu.memory_space<vmem>>, vector<4x16x128xf32>
    %162 = vector.broadcast %160 : f32 to vector<4x16x128xf32>
    %163 = arith.mulf %161, %162 : vector<4x16x128xf32>
    %c7_129 = arith.constant 7 : index
    %164 = memref.load %arg1[%c7_129] : memref<24xf32, #tpu.memory_space<smem>>
    %c5_130 = arith.constant 5 : index
    %c1_131 = arith.constant 1 : index
    %c0_132 = arith.constant 0 : index
    %165 = vector.load %arg2[%c5_130, %c1_131, %c0_132] : memref<20x24x128xf32, #tpu.memory_space<vmem>>, vector<4x16x128xf32>
    %166 = vector.broadcast %164 : f32 to vector<4x16x128xf32>
    %167 = arith.mulf %165, %166 : vector<4x16x128xf32>
    %168 = arith.addf %163, %167 : vector<4x16x128xf32>
    %c8_133 = arith.constant 8 : index
    %169 = memref.load %arg1[%c8_133] : memref<24xf32, #tpu.memory_space<smem>>
    %c5_134 = arith.constant 5 : index
    %c2_135 = arith.constant 2 : index
    %c0_136 = arith.constant 0 : index
    %170 = vector.load %arg2[%c5_134, %c2_135, %c0_136] : memref<20x24x128xf32, #tpu.memory_space<vmem>>, vector<4x16x128xf32>
    %171 = vector.broadcast %169 : f32 to vector<4x16x128xf32>
    %172 = arith.mulf %170, %171 : vector<4x16x128xf32>
    %173 = arith.addf %168, %172 : vector<4x16x128xf32>
    %c9_137 = arith.constant 9 : index
    %174 = memref.load %arg1[%c9_137] : memref<24xf32, #tpu.memory_space<smem>>
    %c6_138 = arith.constant 6 : index
    %c0_139 = arith.constant 0 : index
    %c0_140 = arith.constant 0 : index
    %175 = vector.load %arg2[%c6_138, %c0_139, %c0_140] : memref<20x24x128xf32, #tpu.memory_space<vmem>>, vector<4x16x128xf32>
    %176 = vector.broadcast %174 : f32 to vector<4x16x128xf32>
    %177 = arith.mulf %175, %176 : vector<4x16x128xf32>
    %178 = arith.addf %173, %177 : vector<4x16x128xf32>
    %c10_141 = arith.constant 10 : index
    %179 = memref.load %arg1[%c10_141] : memref<24xf32, #tpu.memory_space<smem>>
    %c6_142 = arith.constant 6 : index
    %c1_143 = arith.constant 1 : index
    %c0_144 = arith.constant 0 : index
    %180 = vector.load %arg2[%c6_142, %c1_143, %c0_144] : memref<20x24x128xf32, #tpu.memory_space<vmem>>, vector<4x16x128xf32>
    %181 = vector.broadcast %179 : f32 to vector<4x16x128xf32>
    %182 = arith.mulf %180, %181 : vector<4x16x128xf32>
    %183 = arith.addf %178, %182 : vector<4x16x128xf32>
    %c11_145 = arith.constant 11 : index
    %184 = memref.load %arg1[%c11_145] : memref<24xf32, #tpu.memory_space<smem>>
    %c6_146 = arith.constant 6 : index
    %c2_147 = arith.constant 2 : index
    %c0_148 = arith.constant 0 : index
    %185 = vector.load %arg2[%c6_146, %c2_147, %c0_148] : memref<20x24x128xf32, #tpu.memory_space<vmem>>, vector<4x16x128xf32>
    %186 = vector.broadcast %184 : f32 to vector<4x16x128xf32>
    %187 = arith.mulf %185, %186 : vector<4x16x128xf32>
    %188 = arith.addf %183, %187 : vector<4x16x128xf32>
    %c1_149 = arith.constant 1 : index
    %c4_150 = arith.constant 4 : index
    %c0_151 = arith.constant 0 : index
    %c0_152 = arith.constant 0 : index
    %189 = vector.load %arg3[%c1_149, %c4_150, %c0_151, %c0_152] : memref<4x16x16x128xf32, #tpu.memory_space<vmem>>, vector<1x4x16x128xf32>
    %190 = vector.shape_cast %189 : vector<1x4x16x128xf32> to vector<4x16x128xf32>
    %191 = vector.shape_cast %188 : vector<4x16x128xf32> to vector<1x4x16x128xf32>
    tpu.vector_store %arg3[%c1_149, %c4_150, %c0_151, %c0_152], %191 {strides = array<i32>} : memref<4x16x16x128xf32, #tpu.memory_space<vmem>>, vector<1x4x16x128xf32>,
    %c6_153 = arith.constant 6 : index
    %192 = memref.load %arg1[%c6_153] : memref<24xf32, #tpu.memory_space<smem>>
    %c9_154 = arith.constant 9 : index
    %c0_155 = arith.constant 0 : index
    %c0_156 = arith.constant 0 : index
    %193 = vector.load %arg2[%c9_154, %c0_155, %c0_156] : memref<20x24x128xf32, #tpu.memory_space<vmem>>, vector<4x16x128xf32>
    %194 = vector.broadcast %192 : f32 to vector<4x16x128xf32>
    %195 = arith.mulf %193, %194 : vector<4x16x128xf32>
    %c7_157 = arith.constant 7 : index
    %196 = memref.load %arg1[%c7_157] : memref<24xf32, #tpu.memory_space<smem>>
    %c9_158 = arith.constant 9 : index
    %c1_159 = arith.constant 1 : index
    %c0_160 = arith.constant 0 : index
    %197 = vector.load %arg2[%c9_158, %c1_159, %c0_160] : memref<20x24x128xf32, #tpu.memory_space<vmem>>, vector<4x16x128xf32>
    %198 = vector.broadcast %196 : f32 to vector<4x16x128xf32>
    %199 = arith.mulf %197, %198 : vector<4x16x128xf32>
    %200 = arith.addf %195, %199 : vector<4x16x128xf32>
    %c8_161 = arith.constant 8 : index
    %201 = memref.load %arg1[%c8_161] : memref<24xf32, #tpu.memory_space<smem>>
    %c9_162 = arith.constant 9 : index
    %c2_163 = arith.constant 2 : index
    %c0_164 = arith.constant 0 : index
    %202 = vector.load %arg2[%c9_162, %c2_163, %c0_164] : memref<20x24x128xf32, #tpu.memory_space<vmem>>, vector<4x16x128xf32>
    %203 = vector.broadcast %201 : f32 to vector<4x16x128xf32>
    %204 = arith.mulf %202, %203 : vector<4x16x128xf32>
    %205 = arith.addf %200, %204 : vector<4x16x128xf32>
    %c9_165 = arith.constant 9 : index
    %206 = memref.load %arg1[%c9_165] : memref<24xf32, #tpu.memory_space<smem>>
    %c10_166 = arith.constant 10 : index
    %c0_167 = arith.constant 0 : index
    %c0_168 = arith.constant 0 : index
    %207 = vector.load %arg2[%c10_166, %c0_167, %c0_168] : memref<20x24x128xf32, #tpu.memory_space<vmem>>, vector<4x16x128xf32>
    %208 = vector.broadcast %206 : f32 to vector<4x16x128xf32>
    %209 = arith.mulf %207, %208 : vector<4x16x128xf32>
    %210 = arith.addf %205, %209 : vector<4x16x128xf32>
    %c10_169 = arith.constant 10 : index
    %211 = memref.load %arg1[%c10_169] : memref<24xf32, #tpu.memory_space<smem>>
    %c10_170 = arith.constant 10 : index
    %c1_171 = arith.constant 1 : index
    %c0_172 = arith.constant 0 : index
    %212 = vector.load %arg2[%c10_170, %c1_171, %c0_172] : memref<20x24x128xf32, #tpu.memory_space<vmem>>, vector<4x16x128xf32>
    %213 = vector.broadcast %211 : f32 to vector<4x16x128xf32>
    %214 = arith.mulf %212, %213 : vector<4x16x128xf32>
    %215 = arith.addf %210, %214 : vector<4x16x128xf32>
    %c11_173 = arith.constant 11 : index
    %216 = memref.load %arg1[%c11_173] : memref<24xf32, #tpu.memory_space<smem>>
    %c10_174 = arith.constant 10 : index
    %c2_175 = arith.constant 2 : index
    %c0_176 = arith.constant 0 : index
    %217 = vector.load %arg2[%c10_174, %c2_175, %c0_176] : memref<20x24x128xf32, #tpu.memory_space<vmem>>, vector<4x16x128xf32>
    %218 = vector.broadcast %216 : f32 to vector<4x16x128xf32>
    %219 = arith.mulf %217, %218 : vector<4x16x128xf32>
    %220 = arith.addf %215, %219 : vector<4x16x128xf32>
    %c1_177 = arith.constant 1 : index
    %c8_178 = arith.constant 8 : index
    %c0_179 = arith.constant 0 : index
    %c0_180 = arith.constant 0 : index
    %221 = vector.load %arg3[%c1_177, %c8_178, %c0_179, %c0_180] : memref<4x16x16x128xf32, #tpu.memory_space<vmem>>, vector<1x4x16x128xf32>
    %222 = vector.shape_cast %221 : vector<1x4x16x128xf32> to vector<4x16x128xf32>
    %223 = vector.shape_cast %220 : vector<4x16x128xf32> to vector<1x4x16x128xf32>
    tpu.vector_store %arg3[%c1_177, %c8_178, %c0_179, %c0_180], %223 {strides = array<i32>} : memref<4x16x16x128xf32, #tpu.memory_space<vmem>>, vector<1x4x16x128xf32>,
    %c6_181 = arith.constant 6 : index
    %224 = memref.load %arg1[%c6_181] : memref<24xf32, #tpu.memory_space<smem>>
    %c13 = arith.constant 13 : index
    %c0_182 = arith.constant 0 : index
    %c0_183 = arith.constant 0 : index
    %225 = vector.load %arg2[%c13, %c0_182, %c0_183] : memref<20x24x128xf32, #tpu.memory_space<vmem>>, vector<4x16x128xf32>
    %226 = vector.broadcast %224 : f32 to vector<4x16x128xf32>
    %227 = arith.mulf %225, %226 : vector<4x16x128xf32>
    %c7_184 = arith.constant 7 : index
    %228 = memref.load %arg1[%c7_184] : memref<24xf32, #tpu.memory_space<smem>>
    %c13_185 = arith.constant 13 : index
    %c1_186 = arith.constant 1 : index
    %c0_187 = arith.constant 0 : index
    %229 = vector.load %arg2[%c13_185, %c1_186, %c0_187] : memref<20x24x128xf32, #tpu.memory_space<vmem>>, vector<4x16x128xf32>
    %230 = vector.broadcast %228 : f32 to vector<4x16x128xf32>
    %231 = arith.mulf %229, %230 : vector<4x16x128xf32>
    %232 = arith.addf %227, %231 : vector<4x16x128xf32>
    %c8_188 = arith.constant 8 : index
    %233 = memref.load %arg1[%c8_188] : memref<24xf32, #tpu.memory_space<smem>>
    %c13_189 = arith.constant 13 : index
    %c2_190 = arith.constant 2 : index
    %c0_191 = arith.constant 0 : index
    %234 = vector.load %arg2[%c13_189, %c2_190, %c0_191] : memref<20x24x128xf32, #tpu.memory_space<vmem>>, vector<4x16x128xf32>
    %235 = vector.broadcast %233 : f32 to vector<4x16x128xf32>
    %236 = arith.mulf %234, %235 : vector<4x16x128xf32>
    %237 = arith.addf %232, %236 : vector<4x16x128xf32>
    %c9_192 = arith.constant 9 : index
    %238 = memref.load %arg1[%c9_192] : memref<24xf32, #tpu.memory_space<smem>>
    %c14_193 = arith.constant 14 : index
    %c0_194 = arith.constant 0 : index
    %c0_195 = arith.constant 0 : index
    %239 = vector.load %arg2[%c14_193, %c0_194, %c0_195] : memref<20x24x128xf32, #tpu.memory_space<vmem>>, vector<4x16x128xf32>
    %240 = vector.broadcast %238 : f32 to vector<4x16x128xf32>
    %241 = arith.mulf %239, %240 : vector<4x16x128xf32>
    %242 = arith.addf %237, %241 : vector<4x16x128xf32>
    %c10_196 = arith.constant 10 : index
    %243 = memref.load %arg1[%c10_196] : memref<24xf32, #tpu.memory_space<smem>>
    %c14_197 = arith.constant 14 : index
    %c1_198 = arith.constant 1 : index
    %c0_199 = arith.constant 0 : index
    %244 = vector.load %arg2[%c14_197, %c1_198, %c0_199] : memref<20x24x128xf32, #tpu.memory_space<vmem>>, vector<4x16x128xf32>
    %245 = vector.broadcast %243 : f32 to vector<4x16x128xf32>
    %246 = arith.mulf %244, %245 : vector<4x16x128xf32>
    %247 = arith.addf %242, %246 : vector<4x16x128xf32>
    %c11_200 = arith.constant 11 : index
    %248 = memref.load %arg1[%c11_200] : memref<24xf32, #tpu.memory_space<smem>>
    %c14_201 = arith.constant 14 : index
    %c2_202 = arith.constant 2 : index
    %c0_203 = arith.constant 0 : index
    %249 = vector.load %arg2[%c14_201, %c2_202, %c0_203] : memref<20x24x128xf32, #tpu.memory_space<vmem>>, vector<4x16x128xf32>
    %250 = vector.broadcast %248 : f32 to vector<4x16x128xf32>
    %251 = arith.mulf %249, %250 : vector<4x16x128xf32>
    %252 = arith.addf %247, %251 : vector<4x16x128xf32>
    %c1_204 = arith.constant 1 : index
    %c12_205 = arith.constant 12 : index
    %c0_206 = arith.constant 0 : index
    %c0_207 = arith.constant 0 : index
    %253 = vector.load %arg3[%c1_204, %c12_205, %c0_206, %c0_207] : memref<4x16x16x128xf32, #tpu.memory_space<vmem>>, vector<1x4x16x128xf32>
    %254 = vector.shape_cast %253 : vector<1x4x16x128xf32> to vector<4x16x128xf32>
    %255 = vector.shape_cast %252 : vector<4x16x128xf32> to vector<1x4x16x128xf32>
    tpu.vector_store %arg3[%c1_204, %c12_205, %c0_206, %c0_207], %255 {strides = array<i32>} : memref<4x16x16x128xf32, #tpu.memory_space<vmem>>, vector<1x4x16x128xf32>,
    %c12_208 = arith.constant 12 : index
    %256 = memref.load %arg1[%c12_208] : memref<24xf32, #tpu.memory_space<smem>>
    %c3_209 = arith.constant 3 : index
    %c1_210 = arith.constant 1 : index
    %c0_211 = arith.constant 0 : index
    %257 = vector.load %arg2[%c3_209, %c1_210, %c0_211] : memref<20x24x128xf32, #tpu.memory_space<vmem>>, vector<4x16x128xf32>
    %258 = vector.broadcast %256 : f32 to vector<4x16x128xf32>
    %259 = arith.mulf %257, %258 : vector<4x16x128xf32>
    %c13_212 = arith.constant 13 : index
    %260 = memref.load %arg1[%c13_212] : memref<24xf32, #tpu.memory_space<smem>>
    %c3_213 = arith.constant 3 : index
    %c2_214 = arith.constant 2 : index
    %c0_215 = arith.constant 0 : index
    %261 = vector.load %arg2[%c3_213, %c2_214, %c0_215] : memref<20x24x128xf32, #tpu.memory_space<vmem>>, vector<4x16x128xf32>
    %262 = vector.broadcast %260 : f32 to vector<4x16x128xf32>
    %263 = arith.mulf %261, %262 : vector<4x16x128xf32>
    %264 = arith.addf %259, %263 : vector<4x16x128xf32>
    %c14_216 = arith.constant 14 : index
    %265 = memref.load %arg1[%c14_216] : memref<24xf32, #tpu.memory_space<smem>>
    %c3_217 = arith.constant 3 : index
    %c3_218 = arith.constant 3 : index
    %c0_219 = arith.constant 0 : index
    %266 = vector.load %arg2[%c3_217, %c3_218, %c0_219] : memref<20x24x128xf32, #tpu.memory_space<vmem>>, vector<4x16x128xf32>
    %267 = vector.broadcast %265 : f32 to vector<4x16x128xf32>
    %268 = arith.mulf %266, %267 : vector<4x16x128xf32>
    %269 = arith.addf %264, %268 : vector<4x16x128xf32>
    %c15_220 = arith.constant 15 : index
    %270 = memref.load %arg1[%c15_220] : memref<24xf32, #tpu.memory_space<smem>>
    %c4_221 = arith.constant 4 : index
    %c1_222 = arith.constant 1 : index
    %c0_223 = arith.constant 0 : index
    %271 = vector.load %arg2[%c4_221, %c1_222, %c0_223] : memref<20x24x128xf32, #tpu.memory_space<vmem>>, vector<4x16x128xf32>
    %272 = vector.broadcast %270 : f32 to vector<4x16x128xf32>
    %273 = arith.mulf %271, %272 : vector<4x16x128xf32>
    %274 = arith.addf %269, %273 : vector<4x16x128xf32>
    %c16 = arith.constant 16 : index
    %275 = memref.load %arg1[%c16] : memref<24xf32, #tpu.memory_space<smem>>
    %c4_224 = arith.constant 4 : index
    %c2_225 = arith.constant 2 : index
    %c0_226 = arith.constant 0 : index
    %276 = vector.load %arg2[%c4_224, %c2_225, %c0_226] : memref<20x24x128xf32, #tpu.memory_space<vmem>>, vector<4x16x128xf32>
    %277 = vector.broadcast %275 : f32 to vector<4x16x128xf32>
    %278 = arith.mulf %276, %277 : vector<4x16x128xf32>
    %279 = arith.addf %274, %278 : vector<4x16x128xf32>
    %c17 = arith.constant 17 : index
    %280 = memref.load %arg1[%c17] : memref<24xf32, #tpu.memory_space<smem>>
    %c4_227 = arith.constant 4 : index
    %c3_228 = arith.constant 3 : index
    %c0_229 = arith.constant 0 : index
    %281 = vector.load %arg2[%c4_227, %c3_228, %c0_229] : memref<20x24x128xf32, #tpu.memory_space<vmem>>, vector<4x16x128xf32>
    %282 = vector.broadcast %280 : f32 to vector<4x16x128xf32>
    %283 = arith.mulf %281, %282 : vector<4x16x128xf32>
    %284 = arith.addf %279, %283 : vector<4x16x128xf32>
    %c2_230 = arith.constant 2 : index
    %c0_231 = arith.constant 0 : index
    %c0_232 = arith.constant 0 : index
    %c0_233 = arith.constant 0 : index
    %285 = vector.load %arg3[%c2_230, %c0_231, %c0_232, %c0_233] : memref<4x16x16x128xf32, #tpu.memory_space<vmem>>, vector<1x4x16x128xf32>
    %286 = vector.shape_cast %285 : vector<1x4x16x128xf32> to vector<4x16x128xf32>
    %287 = vector.shape_cast %284 : vector<4x16x128xf32> to vector<1x4x16x128xf32>
    tpu.vector_store %arg3[%c2_230, %c0_231, %c0_232, %c0_233], %287 {strides = array<i32>} : memref<4x16x16x128xf32, #tpu.memory_space<vmem>>, vector<1x4x16x128xf32>,
    %c12_234 = arith.constant 12 : index
    %288 = memref.load %arg1[%c12_234] : memref<24xf32, #tpu.memory_space<smem>>
    %c7_235 = arith.constant 7 : index
    %c1_236 = arith.constant 1 : index
    %c0_237 = arith.constant 0 : index
    %289 = vector.load %arg2[%c7_235, %c1_236, %c0_237] : memref<20x24x128xf32, #tpu.memory_space<vmem>>, vector<4x16x128xf32>
    %290 = vector.broadcast %288 : f32 to vector<4x16x128xf32>
    %291 = arith.mulf %289, %290 : vector<4x16x128xf32>
    %c13_238 = arith.constant 13 : index
    %292 = memref.load %arg1[%c13_238] : memref<24xf32, #tpu.memory_space<smem>>
    %c7_239 = arith.constant 7 : index
    %c2_240 = arith.constant 2 : index
    %c0_241 = arith.constant 0 : index
    %293 = vector.load %arg2[%c7_239, %c2_240, %c0_241] : memref<20x24x128xf32, #tpu.memory_space<vmem>>, vector<4x16x128xf32>
    %294 = vector.broadcast %292 : f32 to vector<4x16x128xf32>
    %295 = arith.mulf %293, %294 : vector<4x16x128xf32>
    %296 = arith.addf %291, %295 : vector<4x16x128xf32>
    %c14_242 = arith.constant 14 : index
    %297 = memref.load %arg1[%c14_242] : memref<24xf32, #tpu.memory_space<smem>>
    %c7_243 = arith.constant 7 : index
    %c3_244 = arith.constant 3 : index
    %c0_245 = arith.constant 0 : index
    %298 = vector.load %arg2[%c7_243, %c3_244, %c0_245] : memref<20x24x128xf32, #tpu.memory_space<vmem>>, vector<4x16x128xf32>
    %299 = vector.broadcast %297 : f32 to vector<4x16x128xf32>
    %300 = arith.mulf %298, %299 : vector<4x16x128xf32>
    %301 = arith.addf %296, %300 : vector<4x16x128xf32>
    %c15_246 = arith.constant 15 : index
    %302 = memref.load %arg1[%c15_246] : memref<24xf32, #tpu.memory_space<smem>>
    %c8_247 = arith.constant 8 : index
    %c1_248 = arith.constant 1 : index
    %c0_249 = arith.constant 0 : index
    %303 = vector.load %arg2[%c8_247, %c1_248, %c0_249] : memref<20x24x128xf32, #tpu.memory_space<vmem>>, vector<4x16x128xf32>
    %304 = vector.broadcast %302 : f32 to vector<4x16x128xf32>
    %305 = arith.mulf %303, %304 : vector<4x16x128xf32>
    %306 = arith.addf %301, %305 : vector<4x16x128xf32>
    %c16_250 = arith.constant 16 : index
    %307 = memref.load %arg1[%c16_250] : memref<24xf32, #tpu.memory_space<smem>>
    %c8_251 = arith.constant 8 : index
    %c2_252 = arith.constant 2 : index
    %c0_253 = arith.constant 0 : index
    %308 = vector.load %arg2[%c8_251, %c2_252, %c0_253] : memref<20x24x128xf32, #tpu.memory_space<vmem>>, vector<4x16x128xf32>
    %309 = vector.broadcast %307 : f32 to vector<4x16x128xf32>
    %310 = arith.mulf %308, %309 : vector<4x16x128xf32>
    %311 = arith.addf %306, %310 : vector<4x16x128xf32>
    %c17_254 = arith.constant 17 : index
    %312 = memref.load %arg1[%c17_254] : memref<24xf32, #tpu.memory_space<smem>>
    %c8_255 = arith.constant 8 : index
    %c3_256 = arith.constant 3 : index
    %c0_257 = arith.constant 0 : index
    %313 = vector.load %arg2[%c8_255, %c3_256, %c0_257] : memref<20x24x128xf32, #tpu.memory_space<vmem>>, vector<4x16x128xf32>
    %314 = vector.broadcast %312 : f32 to vector<4x16x128xf32>
    %315 = arith.mulf %313, %314 : vector<4x16x128xf32>
    %316 = arith.addf %311, %315 : vector<4x16x128xf32>
    %c2_258 = arith.constant 2 : index
    %c4_259 = arith.constant 4 : index
    %c0_260 = arith.constant 0 : index
    %c0_261 = arith.constant 0 : index
    %317 = vector.load %arg3[%c2_258, %c4_259, %c0_260, %c0_261] : memref<4x16x16x128xf32, #tpu.memory_space<vmem>>, vector<1x4x16x128xf32>
    %318 = vector.shape_cast %317 : vector<1x4x16x128xf32> to vector<4x16x128xf32>
    %319 = vector.shape_cast %316 : vector<4x16x128xf32> to vector<1x4x16x128xf32>
    tpu.vector_store %arg3[%c2_258, %c4_259, %c0_260, %c0_261], %319 {strides = array<i32>} : memref<4x16x16x128xf32, #tpu.memory_space<vmem>>, vector<1x4x16x128xf32>,
    %c12_262 = arith.constant 12 : index
    %320 = memref.load %arg1[%c12_262] : memref<24xf32, #tpu.memory_space<smem>>
    %c11_263 = arith.constant 11 : index
    %c1_264 = arith.constant 1 : index
    %c0_265 = arith.constant 0 : index
    %321 = vector.load %arg2[%c11_263, %c1_264, %c0_265] : memref<20x24x128xf32, #tpu.memory_space<vmem>>, vector<4x16x128xf32>
    %322 = vector.broadcast %320 : f32 to vector<4x16x128xf32>
    %323 = arith.mulf %321, %322 : vector<4x16x128xf32>
    %c13_266 = arith.constant 13 : index
    %324 = memref.load %arg1[%c13_266] : memref<24xf32, #tpu.memory_space<smem>>
    %c11_267 = arith.constant 11 : index
    %c2_268 = arith.constant 2 : index
    %c0_269 = arith.constant 0 : index
    %325 = vector.load %arg2[%c11_267, %c2_268, %c0_269] : memref<20x24x128xf32, #tpu.memory_space<vmem>>, vector<4x16x128xf32>
    %326 = vector.broadcast %324 : f32 to vector<4x16x128xf32>
    %327 = arith.mulf %325, %326 : vector<4x16x128xf32>
    %328 = arith.addf %323, %327 : vector<4x16x128xf32>
    %c14_270 = arith.constant 14 : index
    %329 = memref.load %arg1[%c14_270] : memref<24xf32, #tpu.memory_space<smem>>
    %c11_271 = arith.constant 11 : index
    %c3_272 = arith.constant 3 : index
    %c0_273 = arith.constant 0 : index
    %330 = vector.load %arg2[%c11_271, %c3_272, %c0_273] : memref<20x24x128xf32, #tpu.memory_space<vmem>>, vector<4x16x128xf32>
    %331 = vector.broadcast %329 : f32 to vector<4x16x128xf32>
    %332 = arith.mulf %330, %331 : vector<4x16x128xf32>
    %333 = arith.addf %328, %332 : vector<4x16x128xf32>
    %c15_274 = arith.constant 15 : index
    %334 = memref.load %arg1[%c15_274] : memref<24xf32, #tpu.memory_space<smem>>
    %c12_275 = arith.constant 12 : index
    %c1_276 = arith.constant 1 : index
    %c0_277 = arith.constant 0 : index
    %335 = vector.load %arg2[%c12_275, %c1_276, %c0_277] : memref<20x24x128xf32, #tpu.memory_space<vmem>>, vector<4x16x128xf32>
    %336 = vector.broadcast %334 : f32 to vector<4x16x128xf32>
    %337 = arith.mulf %335, %336 : vector<4x16x128xf32>
    %338 = arith.addf %333, %337 : vector<4x16x128xf32>
    %c16_278 = arith.constant 16 : index
    %339 = memref.load %arg1[%c16_278] : memref<24xf32, #tpu.memory_space<smem>>
    %c12_279 = arith.constant 12 : index
    %c2_280 = arith.constant 2 : index
    %c0_281 = arith.constant 0 : index
    %340 = vector.load %arg2[%c12_279, %c2_280, %c0_281] : memref<20x24x128xf32, #tpu.memory_space<vmem>>, vector<4x16x128xf32>
    %341 = vector.broadcast %339 : f32 to vector<4x16x128xf32>
    %342 = arith.mulf %340, %341 : vector<4x16x128xf32>
    %343 = arith.addf %338, %342 : vector<4x16x128xf32>
    %c17_282 = arith.constant 17 : index
    %344 = memref.load %arg1[%c17_282] : memref<24xf32, #tpu.memory_space<smem>>
    %c12_283 = arith.constant 12 : index
    %c3_284 = arith.constant 3 : index
    %c0_285 = arith.constant 0 : index
    %345 = vector.load %arg2[%c12_283, %c3_284, %c0_285] : memref<20x24x128xf32, #tpu.memory_space<vmem>>, vector<4x16x128xf32>
    %346 = vector.broadcast %344 : f32 to vector<4x16x128xf32>
    %347 = arith.mulf %345, %346 : vector<4x16x128xf32>
    %348 = arith.addf %343, %347 : vector<4x16x128xf32>
    %c2_286 = arith.constant 2 : index
    %c8_287 = arith.constant 8 : index
    %c0_288 = arith.constant 0 : index
    %c0_289 = arith.constant 0 : index
    %349 = vector.load %arg3[%c2_286, %c8_287, %c0_288, %c0_289] : memref<4x16x16x128xf32, #tpu.memory_space<vmem>>, vector<1x4x16x128xf32>
    %350 = vector.shape_cast %349 : vector<1x4x16x128xf32> to vector<4x16x128xf32>
    %351 = vector.shape_cast %348 : vector<4x16x128xf32> to vector<1x4x16x128xf32>
    tpu.vector_store %arg3[%c2_286, %c8_287, %c0_288, %c0_289], %351 {strides = array<i32>} : memref<4x16x16x128xf32, #tpu.memory_space<vmem>>, vector<1x4x16x128xf32>,
    %c12_290 = arith.constant 12 : index
    %352 = memref.load %arg1[%c12_290] : memref<24xf32, #tpu.memory_space<smem>>
    %c15_291 = arith.constant 15 : index
    %c1_292 = arith.constant 1 : index
    %c0_293 = arith.constant 0 : index
    %353 = vector.load %arg2[%c15_291, %c1_292, %c0_293] : memref<20x24x128xf32, #tpu.memory_space<vmem>>, vector<4x16x128xf32>
    %354 = vector.broadcast %352 : f32 to vector<4x16x128xf32>
    %355 = arith.mulf %353, %354 : vector<4x16x128xf32>
    %c13_294 = arith.constant 13 : index
    %356 = memref.load %arg1[%c13_294] : memref<24xf32, #tpu.memory_space<smem>>
    %c15_295 = arith.constant 15 : index
    %c2_296 = arith.constant 2 : index
    %c0_297 = arith.constant 0 : index
    %357 = vector.load %arg2[%c15_295, %c2_296, %c0_297] : memref<20x24x128xf32, #tpu.memory_space<vmem>>, vector<4x16x128xf32>
    %358 = vector.broadcast %356 : f32 to vector<4x16x128xf32>
    %359 = arith.mulf %357, %358 : vector<4x16x128xf32>
    %360 = arith.addf %355, %359 : vector<4x16x128xf32>
    %c14_298 = arith.constant 14 : index
    %361 = memref.load %arg1[%c14_298] : memref<24xf32, #tpu.memory_space<smem>>
    %c15_299 = arith.constant 15 : index
    %c3_300 = arith.constant 3 : index
    %c0_301 = arith.constant 0 : index
    %362 = vector.load %arg2[%c15_299, %c3_300, %c0_301] : memref<20x24x128xf32, #tpu.memory_space<vmem>>, vector<4x16x128xf32>
    %363 = vector.broadcast %361 : f32 to vector<4x16x128xf32>
    %364 = arith.mulf %362, %363 : vector<4x16x128xf32>
    %365 = arith.addf %360, %364 : vector<4x16x128xf32>
    %c15_302 = arith.constant 15 : index
    %366 = memref.load %arg1[%c15_302] : memref<24xf32, #tpu.memory_space<smem>>
    %c16_303 = arith.constant 16 : index
    %c1_304 = arith.constant 1 : index
    %c0_305 = arith.constant 0 : index
    %367 = vector.load %arg2[%c16_303, %c1_304, %c0_305] : memref<20x24x128xf32, #tpu.memory_space<vmem>>, vector<4x16x128xf32>
    %368 = vector.broadcast %366 : f32 to vector<4x16x128xf32>
    %369 = arith.mulf %367, %368 : vector<4x16x128xf32>
    %370 = arith.addf %365, %369 : vector<4x16x128xf32>
    %c16_306 = arith.constant 16 : index
    %371 = memref.load %arg1[%c16_306] : memref<24xf32, #tpu.memory_space<smem>>
    %c16_307 = arith.constant 16 : index
    %c2_308 = arith.constant 2 : index
    %c0_309 = arith.constant 0 : index
    %372 = vector.load %arg2[%c16_307, %c2_308, %c0_309] : memref<20x24x128xf32, #tpu.memory_space<vmem>>, vector<4x16x128xf32>
    %373 = vector.broadcast %371 : f32 to vector<4x16x128xf32>
    %374 = arith.mulf %372, %373 : vector<4x16x128xf32>
    %375 = arith.addf %370, %374 : vector<4x16x128xf32>
    %c17_310 = arith.constant 17 : index
    %376 = memref.load %arg1[%c17_310] : memref<24xf32, #tpu.memory_space<smem>>
    %c16_311 = arith.constant 16 : index
    %c3_312 = arith.constant 3 : index
    %c0_313 = arith.constant 0 : index
    %377 = vector.load %arg2[%c16_311, %c3_312, %c0_313] : memref<20x24x128xf32, #tpu.memory_space<vmem>>, vector<4x16x128xf32>
    %378 = vector.broadcast %376 : f32 to vector<4x16x128xf32>
    %379 = arith.mulf %377, %378 : vector<4x16x128xf32>
    %380 = arith.addf %375, %379 : vector<4x16x128xf32>
    %c2_314 = arith.constant 2 : index
    %c12_315 = arith.constant 12 : index
    %c0_316 = arith.constant 0 : index
    %c0_317 = arith.constant 0 : index
    %381 = vector.load %arg3[%c2_314, %c12_315, %c0_316, %c0_317] : memref<4x16x16x128xf32, #tpu.memory_space<vmem>>, vector<1x4x16x128xf32>
    %382 = vector.shape_cast %381 : vector<1x4x16x128xf32> to vector<4x16x128xf32>
    %383 = vector.shape_cast %380 : vector<4x16x128xf32> to vector<1x4x16x128xf32>
    tpu.vector_store %arg3[%c2_314, %c12_315, %c0_316, %c0_317], %383 {strides = array<i32>} : memref<4x16x16x128xf32, #tpu.memory_space<vmem>>, vector<1x4x16x128xf32>,
    %c18 = arith.constant 18 : index
    %384 = memref.load %arg1[%c18] : memref<24xf32, #tpu.memory_space<smem>>
    %c0_318 = arith.constant 0 : index
    %c4_319 = arith.constant 4 : index
    %c0_320 = arith.constant 0 : index
    %385 = vector.load %arg2[%c0_318, %c4_319, %c0_320] : memref<20x24x128xf32, #tpu.memory_space<vmem>>, vector<4x16x128xf32>
    %386 = vector.broadcast %384 : f32 to vector<4x16x128xf32>
    %387 = arith.mulf %385, %386 : vector<4x16x128xf32>
    %c19 = arith.constant 19 : index
    %388 = memref.load %arg1[%c19] : memref<24xf32, #tpu.memory_space<smem>>
    %c0_321 = arith.constant 0 : index
    %c5_322 = arith.constant 5 : index
    %c0_323 = arith.constant 0 : index
    %389 = vector.load %arg2[%c0_321, %c5_322, %c0_323] : memref<20x24x128xf32, #tpu.memory_space<vmem>>, vector<4x16x128xf32>
    %390 = vector.broadcast %388 : f32 to vector<4x16x128xf32>
    %391 = arith.mulf %389, %390 : vector<4x16x128xf32>
    %392 = arith.addf %387, %391 : vector<4x16x128xf32>
    %c20 = arith.constant 20 : index
    %393 = memref.load %arg1[%c20] : memref<24xf32, #tpu.memory_space<smem>>
    %c0_324 = arith.constant 0 : index
    %c6_325 = arith.constant 6 : index
    %c0_326 = arith.constant 0 : index
    %394 = vector.load %arg2[%c0_324, %c6_325, %c0_326] : memref<20x24x128xf32, #tpu.memory_space<vmem>>, vector<4x16x128xf32>
    %395 = vector.broadcast %393 : f32 to vector<4x16x128xf32>
    %396 = arith.mulf %394, %395 : vector<4x16x128xf32>
    %397 = arith.addf %392, %396 : vector<4x16x128xf32>
    %c21 = arith.constant 21 : index
    %398 = memref.load %arg1[%c21] : memref<24xf32, #tpu.memory_space<smem>>
    %c1_327 = arith.constant 1 : index
    %c4_328 = arith.constant 4 : index
    %c0_329 = arith.constant 0 : index
    %399 = vector.load %arg2[%c1_327, %c4_328, %c0_329] : memref<20x24x128xf32, #tpu.memory_space<vmem>>, vector<4x16x128xf32>
    %400 = vector.broadcast %398 : f32 to vector<4x16x128xf32>
    %401 = arith.mulf %399, %400 : vector<4x16x128xf32>
    %402 = arith.addf %397, %401 : vector<4x16x128xf32>
    %c22 = arith.constant 22 : index
    %403 = memref.load %arg1[%c22] : memref<24xf32, #tpu.memory_space<smem>>
    %c1_330 = arith.constant 1 : index
    %c5_331 = arith.constant 5 : index
    %c0_332 = arith.constant 0 : index
    %404 = vector.load %arg2[%c1_330, %c5_331, %c0_332] : memref<20x24x128xf32, #tpu.memory_space<vmem>>, vector<4x16x128xf32>
    %405 = vector.broadcast %403 : f32 to vector<4x16x128xf32>
    %406 = arith.mulf %404, %405 : vector<4x16x128xf32>
    %407 = arith.addf %402, %406 : vector<4x16x128xf32>
    %c23 = arith.constant 23 : index
    %408 = memref.load %arg1[%c23] : memref<24xf32, #tpu.memory_space<smem>>
    %c1_333 = arith.constant 1 : index
    %c6_334 = arith.constant 6 : index
    %c0_335 = arith.constant 0 : index
    %409 = vector.load %arg2[%c1_333, %c6_334, %c0_335] : memref<20x24x128xf32, #tpu.memory_space<vmem>>, vector<4x16x128xf32>
    %410 = vector.broadcast %408 : f32 to vector<4x16x128xf32>
    %411 = arith.mulf %409, %410 : vector<4x16x128xf32>
    %412 = arith.addf %407, %411 : vector<4x16x128xf32>
    %c3_336 = arith.constant 3 : index
    %c0_337 = arith.constant 0 : index
    %c0_338 = arith.constant 0 : index
    %c0_339 = arith.constant 0 : index
    %413 = vector.load %arg3[%c3_336, %c0_337, %c0_338, %c0_339] : memref<4x16x16x128xf32, #tpu.memory_space<vmem>>, vector<1x4x16x128xf32>
    %414 = vector.shape_cast %413 : vector<1x4x16x128xf32> to vector<4x16x128xf32>
    %415 = vector.shape_cast %412 : vector<4x16x128xf32> to vector<1x4x16x128xf32>
    tpu.vector_store %arg3[%c3_336, %c0_337, %c0_338, %c0_339], %415 {strides = array<i32>} : memref<4x16x16x128xf32, #tpu.memory_space<vmem>>, vector<1x4x16x128xf32>,
    %c18_340 = arith.constant 18 : index
    %416 = memref.load %arg1[%c18_340] : memref<24xf32, #tpu.memory_space<smem>>
    %c4_341 = arith.constant 4 : index
    %c4_342 = arith.constant 4 : index
    %c0_343 = arith.constant 0 : index
    %417 = vector.load %arg2[%c4_341, %c4_342, %c0_343] : memref<20x24x128xf32, #tpu.memory_space<vmem>>, vector<4x16x128xf32>
    %418 = vector.broadcast %416 : f32 to vector<4x16x128xf32>
    %419 = arith.mulf %417, %418 : vector<4x16x128xf32>
    %c19_344 = arith.constant 19 : index
    %420 = memref.load %arg1[%c19_344] : memref<24xf32, #tpu.memory_space<smem>>
    %c4_345 = arith.constant 4 : index
    %c5_346 = arith.constant 5 : index
    %c0_347 = arith.constant 0 : index
    %421 = vector.load %arg2[%c4_345, %c5_346, %c0_347] : memref<20x24x128xf32, #tpu.memory_space<vmem>>, vector<4x16x128xf32>
    %422 = vector.broadcast %420 : f32 to vector<4x16x128xf32>
    %423 = arith.mulf %421, %422 : vector<4x16x128xf32>
    %424 = arith.addf %419, %423 : vector<4x16x128xf32>
    %c20_348 = arith.constant 20 : index
    %425 = memref.load %arg1[%c20_348] : memref<24xf32, #tpu.memory_space<smem>>
    %c4_349 = arith.constant 4 : index
    %c6_350 = arith.constant 6 : index
    %c0_351 = arith.constant 0 : index
    %426 = vector.load %arg2[%c4_349, %c6_350, %c0_351] : memref<20x24x128xf32, #tpu.memory_space<vmem>>, vector<4x16x128xf32>
    %427 = vector.broadcast %425 : f32 to vector<4x16x128xf32>
    %428 = arith.mulf %426, %427 : vector<4x16x128xf32>
    %429 = arith.addf %424, %428 : vector<4x16x128xf32>
    %c21_352 = arith.constant 21 : index
    %430 = memref.load %arg1[%c21_352] : memref<24xf32, #tpu.memory_space<smem>>
    %c5_353 = arith.constant 5 : index
    %c4_354 = arith.constant 4 : index
    %c0_355 = arith.constant 0 : index
    %431 = vector.load %arg2[%c5_353, %c4_354, %c0_355] : memref<20x24x128xf32, #tpu.memory_space<vmem>>, vector<4x16x128xf32>
    %432 = vector.broadcast %430 : f32 to vector<4x16x128xf32>
    %433 = arith.mulf %431, %432 : vector<4x16x128xf32>
    %434 = arith.addf %429, %433 : vector<4x16x128xf32>
    %c22_356 = arith.constant 22 : index
    %435 = memref.load %arg1[%c22_356] : memref<24xf32, #tpu.memory_space<smem>>
    %c5_357 = arith.constant 5 : index
    %c5_358 = arith.constant 5 : index
    %c0_359 = arith.constant 0 : index
    %436 = vector.load %arg2[%c5_357, %c5_358, %c0_359] : memref<20x24x128xf32, #tpu.memory_space<vmem>>, vector<4x16x128xf32>
    %437 = vector.broadcast %435 : f32 to vector<4x16x128xf32>
    %438 = arith.mulf %436, %437 : vector<4x16x128xf32>
    %439 = arith.addf %434, %438 : vector<4x16x128xf32>
    %c23_360 = arith.constant 23 : index
    %440 = memref.load %arg1[%c23_360] : memref<24xf32, #tpu.memory_space<smem>>
    %c5_361 = arith.constant 5 : index
    %c6_362 = arith.constant 6 : index
    %c0_363 = arith.constant 0 : index
    %441 = vector.load %arg2[%c5_361, %c6_362, %c0_363] : memref<20x24x128xf32, #tpu.memory_space<vmem>>, vector<4x16x128xf32>
    %442 = vector.broadcast %440 : f32 to vector<4x16x128xf32>
    %443 = arith.mulf %441, %442 : vector<4x16x128xf32>
    %444 = arith.addf %439, %443 : vector<4x16x128xf32>
    %c3_364 = arith.constant 3 : index
    %c4_365 = arith.constant 4 : index
    %c0_366 = arith.constant 0 : index
    %c0_367 = arith.constant 0 : index
    %445 = vector.load %arg3[%c3_364, %c4_365, %c0_366, %c0_367] : memref<4x16x16x128xf32, #tpu.memory_space<vmem>>, vector<1x4x16x128xf32>
    %446 = vector.shape_cast %445 : vector<1x4x16x128xf32> to vector<4x16x128xf32>
    %447 = vector.shape_cast %444 : vector<4x16x128xf32> to vector<1x4x16x128xf32>
    tpu.vector_store %arg3[%c3_364, %c4_365, %c0_366, %c0_367], %447 {strides = array<i32>} : memref<4x16x16x128xf32, #tpu.memory_space<vmem>>, vector<1x4x16x128xf32>,
    %c18_368 = arith.constant 18 : index
    %448 = memref.load %arg1[%c18_368] : memref<24xf32, #tpu.memory_space<smem>>
    %c8_369 = arith.constant 8 : index
    %c4_370 = arith.constant 4 : index
    %c0_371 = arith.constant 0 : index
    %449 = vector.load %arg2[%c8_369, %c4_370, %c0_371] : memref<20x24x128xf32, #tpu.memory_space<vmem>>, vector<4x16x128xf32>
    %450 = vector.broadcast %448 : f32 to vector<4x16x128xf32>
    %451 = arith.mulf %449, %450 : vector<4x16x128xf32>
    %c19_372 = arith.constant 19 : index
    %452 = memref.load %arg1[%c19_372] : memref<24xf32, #tpu.memory_space<smem>>
    %c8_373 = arith.constant 8 : index
    %c5_374 = arith.constant 5 : index
    %c0_375 = arith.constant 0 : index
    %453 = vector.load %arg2[%c8_373, %c5_374, %c0_375] : memref<20x24x128xf32, #tpu.memory_space<vmem>>, vector<4x16x128xf32>
    %454 = vector.broadcast %452 : f32 to vector<4x16x128xf32>
    %455 = arith.mulf %453, %454 : vector<4x16x128xf32>
    %456 = arith.addf %451, %455 : vector<4x16x128xf32>
    %c20_376 = arith.constant 20 : index
    %457 = memref.load %arg1[%c20_376] : memref<24xf32, #tpu.memory_space<smem>>
    %c8_377 = arith.constant 8 : index
    %c6_378 = arith.constant 6 : index
    %c0_379 = arith.constant 0 : index
    %458 = vector.load %arg2[%c8_377, %c6_378, %c0_379] : memref<20x24x128xf32, #tpu.memory_space<vmem>>, vector<4x16x128xf32>
    %459 = vector.broadcast %457 : f32 to vector<4x16x128xf32>
    %460 = arith.mulf %458, %459 : vector<4x16x128xf32>
    %461 = arith.addf %456, %460 : vector<4x16x128xf32>
    %c21_380 = arith.constant 21 : index
    %462 = memref.load %arg1[%c21_380] : memref<24xf32, #tpu.memory_space<smem>>
    %c9_381 = arith.constant 9 : index
    %c4_382 = arith.constant 4 : index
    %c0_383 = arith.constant 0 : index
    %463 = vector.load %arg2[%c9_381, %c4_382, %c0_383] : memref<20x24x128xf32, #tpu.memory_space<vmem>>, vector<4x16x128xf32>
    %464 = vector.broadcast %462 : f32 to vector<4x16x128xf32>
    %465 = arith.mulf %463, %464 : vector<4x16x128xf32>
    %466 = arith.addf %461, %465 : vector<4x16x128xf32>
    %c22_384 = arith.constant 22 : index
    %467 = memref.load %arg1[%c22_384] : memref<24xf32, #tpu.memory_space<smem>>
    %c9_385 = arith.constant 9 : index
    %c5_386 = arith.constant 5 : index
    %c0_387 = arith.constant 0 : index
    %468 = vector.load %arg2[%c9_385, %c5_386, %c0_387] : memref<20x24x128xf32, #tpu.memory_space<vmem>>, vector<4x16x128xf32>
    %469 = vector.broadcast %467 : f32 to vector<4x16x128xf32>
    %470 = arith.mulf %468, %469 : vector<4x16x128xf32>
    %471 = arith.addf %466, %470 : vector<4x16x128xf32>
    %c23_388 = arith.constant 23 : index
    %472 = memref.load %arg1[%c23_388] : memref<24xf32, #tpu.memory_space<smem>>
    %c9_389 = arith.constant 9 : index
    %c6_390 = arith.constant 6 : index
    %c0_391 = arith.constant 0 : index
    %473 = vector.load %arg2[%c9_389, %c6_390, %c0_391] : memref<20x24x128xf32, #tpu.memory_space<vmem>>, vector<4x16x128xf32>
    %474 = vector.broadcast %472 : f32 to vector<4x16x128xf32>
    %475 = arith.mulf %473, %474 : vector<4x16x128xf32>
    %476 = arith.addf %471, %475 : vector<4x16x128xf32>
    %c3_392 = arith.constant 3 : index
    %c8_393 = arith.constant 8 : index
    %c0_394 = arith.constant 0 : index
    %c0_395 = arith.constant 0 : index
    %477 = vector.load %arg3[%c3_392, %c8_393, %c0_394, %c0_395] : memref<4x16x16x128xf32, #tpu.memory_space<vmem>>, vector<1x4x16x128xf32>
    %478 = vector.shape_cast %477 : vector<1x4x16x128xf32> to vector<4x16x128xf32>
    %479 = vector.shape_cast %476 : vector<4x16x128xf32> to vector<1x4x16x128xf32>
    tpu.vector_store %arg3[%c3_392, %c8_393, %c0_394, %c0_395], %479 {strides = array<i32>} : memref<4x16x16x128xf32, #tpu.memory_space<vmem>>, vector<1x4x16x128xf32>,
    %c18_396 = arith.constant 18 : index
    %480 = memref.load %arg1[%c18_396] : memref<24xf32, #tpu.memory_space<smem>>
    %c12_397 = arith.constant 12 : index
    %c4_398 = arith.constant 4 : index
    %c0_399 = arith.constant 0 : index
    %481 = vector.load %arg2[%c12_397, %c4_398, %c0_399] : memref<20x24x128xf32, #tpu.memory_space<vmem>>, vector<4x16x128xf32>
    %482 = vector.broadcast %480 : f32 to vector<4x16x128xf32>
    %483 = arith.mulf %481, %482 : vector<4x16x128xf32>
    %c19_400 = arith.constant 19 : index
    %484 = memref.load %arg1[%c19_400] : memref<24xf32, #tpu.memory_space<smem>>
    %c12_401 = arith.constant 12 : index
    %c5_402 = arith.constant 5 : index
    %c0_403 = arith.constant 0 : index
    %485 = vector.load %arg2[%c12_401, %c5_402, %c0_403] : memref<20x24x128xf32, #tpu.memory_space<vmem>>, vector<4x16x128xf32>
    %486 = vector.broadcast %484 : f32 to vector<4x16x128xf32>
    %487 = arith.mulf %485, %486 : vector<4x16x128xf32>
    %488 = arith.addf %483, %487 : vector<4x16x128xf32>
    %c20_404 = arith.constant 20 : index
    %489 = memref.load %arg1[%c20_404] : memref<24xf32, #tpu.memory_space<smem>>
    %c12_405 = arith.constant 12 : index
    %c6_406 = arith.constant 6 : index
    %c0_407 = arith.constant 0 : index
    %490 = vector.load %arg2[%c12_405, %c6_406, %c0_407] : memref<20x24x128xf32, #tpu.memory_space<vmem>>, vector<4x16x128xf32>
    %491 = vector.broadcast %489 : f32 to vector<4x16x128xf32>
    %492 = arith.mulf %490, %491 : vector<4x16x128xf32>
    %493 = arith.addf %488, %492 : vector<4x16x128xf32>
    %c21_408 = arith.constant 21 : index
    %494 = memref.load %arg1[%c21_408] : memref<24xf32, #tpu.memory_space<smem>>
    %c13_409 = arith.constant 13 : index
    %c4_410 = arith.constant 4 : index
    %c0_411 = arith.constant 0 : index
    %495 = vector.load %arg2[%c13_409, %c4_410, %c0_411] : memref<20x24x128xf32, #tpu.memory_space<vmem>>, vector<4x16x128xf32>
    %496 = vector.broadcast %494 : f32 to vector<4x16x128xf32>
    %497 = arith.mulf %495, %496 : vector<4x16x128xf32>
    %498 = arith.addf %493, %497 : vector<4x16x128xf32>
    %c22_412 = arith.constant 22 : index
    %499 = memref.load %arg1[%c22_412] : memref<24xf32, #tpu.memory_space<smem>>
    %c13_413 = arith.constant 13 : index
    %c5_414 = arith.constant 5 : index
    %c0_415 = arith.constant 0 : index
    %500 = vector.load %arg2[%c13_413, %c5_414, %c0_415] : memref<20x24x128xf32, #tpu.memory_space<vmem>>, vector<4x16x128xf32>
    %501 = vector.broadcast %499 : f32 to vector<4x16x128xf32>
    %502 = arith.mulf %500, %501 : vector<4x16x128xf32>
    %503 = arith.addf %498, %502 : vector<4x16x128xf32>
    %c23_416 = arith.constant 23 : index
    %504 = memref.load %arg1[%c23_416] : memref<24xf32, #tpu.memory_space<smem>>
    %c13_417 = arith.constant 13 : index
    %c6_418 = arith.constant 6 : index
    %c0_419 = arith.constant 0 : index
    %505 = vector.load %arg2[%c13_417, %c6_418, %c0_419] : memref<20x24x128xf32, #tpu.memory_space<vmem>>, vector<4x16x128xf32>
    %506 = vector.broadcast %504 : f32 to vector<4x16x128xf32>
    %507 = arith.mulf %505, %506 : vector<4x16x128xf32>
    %508 = arith.addf %503, %507 : vector<4x16x128xf32>
    %c3_420 = arith.constant 3 : index
    %c12_421 = arith.constant 12 : index
    %c0_422 = arith.constant 0 : index
    %c0_423 = arith.constant 0 : index
    %509 = vector.load %arg3[%c3_420, %c12_421, %c0_422, %c0_423] : memref<4x16x16x128xf32, #tpu.memory_space<vmem>>, vector<1x4x16x128xf32>
    %510 = vector.shape_cast %509 : vector<1x4x16x128xf32> to vector<4x16x128xf32>
    %511 = vector.shape_cast %508 : vector<4x16x128xf32> to vector<1x4x16x128xf32>
    tpu.vector_store %arg3[%c3_420, %c12_421, %c0_422, %c0_423], %511 {strides = array<i32>} : memref<4x16x16x128xf32, #tpu.memory_space<vmem>>, vector<1x4x16x128xf32>,
    return
  }
  func.func @transform_0(%arg0: i32) -> i32 {
    %c0_i32 = arith.constant 0 : i32
    %c0_i32_0 = arith.constant 0 : i32
    return %c0_i32 : i32
  }
  func.func @transform_1(%arg0: i32) -> (i32, i32, i32) {
    %c0_i32 = arith.constant 0 : i32
    %c0_i32_0 = arith.constant 0 : i32
    %c0_i32_1 = arith.constant 0 : i32
    return %c0_i32, %c0_i32_0, %arg0 : i32, i32, i32
  }
  func.func @transform_2(%arg0: i32) -> (i32, i32, i32, i32) {
    %c0_i32 = arith.constant 0 : i32
    %c0_i32_0 = arith.constant 0 : i32
    %c0_i32_1 = arith.constant 0 : i32
    %c0_i32_2 = arith.constant 0 : i32
    return %c0_i32, %c0_i32_0, %c0_i32_1, %arg0 : i32, i32, i32, i32
  }
}

</mosaic_0001>

<llo_original>
// kernel: _lambda_.1
$region0: #{_lambda_.1}
  #allocation0 [shape = 'u32[]', space=smem, size = 0x4, offset = 0x4, fixed_abs, tag = 'smem constant byte address 0x4 - core index']
  #allocation1 [shape = 'u32[72,128]{1,0:T(1,128)}', space=vmem, size = 0x9000, scoped, tag = 'internal scratch']
  %s0 = inlined_call_operand.vmem [shape: f32[24], index: 0, kind: input, shape index: {}]
  %s1 = inlined_call_operand.vmem [shape: f32[20,24,128], index: 1, kind: input, shape index: {}]
  %s2 = inlined_call_operand.vmem [shape: f32[4,16,16,128], index: 2, kind: output, shape index: {}]
  %s3 = sld [smem:[#allocation0]]
  $region22: #{_lambda_.1} parent=0
    _
  %s5 = ssub.s32 1, %s3
  %s6 = scalar_select 0, %s5, %s3
  $region1: #{_lambda_.1} parent=0
    #allocation2 [shape = 'u8[512]{0}', space=smem, size = 0x200, scoped, tag = 'input window, operand 0, single buffered']
    #allocation3 [shape = 's32[1]{0}', space=sflag, size = 0x4, scoped, tag = 'scoped memory for _lambda_.1']
    %7 = vsyncpa [#allocation3], 0
    // Predicated region
    $region2: #{_lambda_.1} parent=1 // pred_check
      _
    $region3: #{_lambda_.1} parent=1 // pred_check_branch
      %9 = sbr.rel (0) target = $region5
    $region4: #{_lambda_.1} parent=1 // pred_region
      %11 = vsyncadd [#allocation3], 0
      %s13 = sshll.u32 %s0, 4
      %s14 = int_to_ptr.vmem [resolvable:$true] %s13
      %16 = dma.vmem_to_smem %s14, 16, [#allocation2], [#allocation3]
    $region5: #{_lambda_.1} parent=1 // pred_fallthru
      _
    // Predicated region
    $region6: #{_lambda_.1} parent=1 // pred_check
      _
    $region7: #{_lambda_.1} parent=1 // pred_check_branch
      %18 = sbr.rel (0) target = $region9
    $region8: #{_lambda_.1} parent=1 // pred_region
      _
    $region9: #{_lambda_.1} parent=1 // pred_fallthru
      _
    // Predicated region
    $region10: #{_lambda_.1} parent=1 // pred_check
      _
    $region11: #{_lambda_.1} parent=1 // pred_check_branch
      %20 = sbr.rel (0) target = $region13
    $region12: #{_lambda_.1} parent=1 // pred_region
      %22 = dma.done [#allocation3], 16
    $region13: #{_lambda_.1} parent=1 // pred_fallthru
      _
    %23 = sfence
    %s24 = sld [smem:[#allocation2]]
    %s25 = scalar_lea.vmem %s1, 48
    %v26 = vld [vmem:[%s25 + $0x2] sm:$0xff]
    %v27 = vld [vmem:[%s25 + $0xa] sm:$0xff]
    %v28 = vld [vmem:[%s25 + $0x1a] sm:$0xff]
    %v29 = vld [vmem:[%s25 + $0x22] sm:$0xff]
    %v30 = vld [vmem:[%s25 + $0x32] sm:$0xff]
    %v31 = vld [vmem:[%s25 + $0x3a] sm:$0xff]
    %v32 = vld [vmem:[%s25 + $0x4a] sm:$0xff]
    %v33 = vld [vmem:[%s25 + $0x52] sm:$0xff]
    %v34 = vstv %s24
    %v35 = vmul.f32 %v26, %v34
    %v36 = vmul.f32 %v27, %v34
    %v37 = vmul.f32 %v28, %v34
    %v38 = vmul.f32 %v29, %v34
    %v39 = vmul.f32 %v30, %v34
    %v40 = vmul.f32 %v31, %v34
    %v41 = vmul.f32 %v32, %v34
    %v42 = vmul.f32 %v33, %v34
    %s43 = sld [smem:[#allocation2 + $0x1]]
    %v44 = vld [vmem:[%s25 + $0x3] sm:$0xff]
    %v45 = vld [vmem:[%s25 + $0xb] sm:$0xff]
    %v46 = vld [vmem:[%s25 + $0x1b] sm:$0xff]
    %v47 = vld [vmem:[%s25 + $0x23] sm:$0xff]
    %v48 = vld [vmem:[%s25 + $0x33] sm:$0xff]
    %v49 = vld [vmem:[%s25 + $0x3b] sm:$0xff]
    %v50 = vld [vmem:[%s25 + $0x4b] sm:$0xff]
    %v51 = vld [vmem:[%s25 + $0x53] sm:$0xff]
    %v52 = vstv %s43
    %v53 = vmul.f32 %v44, %v52
    %v54 = vmul.f32 %v45, %v52
    %v55 = vmul.f32 %v46, %v52
    %v56 = vmul.f32 %v47, %v52
    %v57 = vmul.f32 %v48, %v52
    %v58 = vmul.f32 %v49, %v52
    %v59 = vmul.f32 %v50, %v52
    %v60 = vmul.f32 %v51, %v52
    %v61 = vadd.f32 %v35, %v53
    %v62 = vadd.f32 %v36, %v54
    %v63 = vadd.f32 %v37, %v55
    %v64 = vadd.f32 %v38, %v56
    %v65 = vadd.f32 %v39, %v57
    %v66 = vadd.f32 %v40, %v58
    %v67 = vadd.f32 %v41, %v59
    %v68 = vadd.f32 %v42, %v60
    %s69 = sld [smem:[#allocation2 + $0x2]]
    %v70 = vld [vmem:[%s25 + $0x4] sm:$0xff]
    %v71 = vld [vmem:[%s25 + $0xc] sm:$0xff]
    %v72 = vld [vmem:[%s25 + $0x1c] sm:$0xff]
    %v73 = vld [vmem:[%s25 + $0x24] sm:$0xff]
    %v74 = vld [vmem:[%s25 + $0x34] sm:$0xff]
    %v75 = vld [vmem:[%s25 + $0x3c] sm:$0xff]
    %v76 = vld [vmem:[%s25 + $0x4c] sm:$0xff]
    %v77 = vld [vmem:[%s25 + $0x54] sm:$0xff]
    %v78 = vstv %s69
    %v79 = vmul.f32 %v70, %v78
    %v80 = vmul.f32 %v71, %v78
    %v81 = vmul.f32 %v72, %v78
    %v82 = vmul.f32 %v73, %v78
    %v83 = vmul.f32 %v74, %v78
    %v84 = vmul.f32 %v75, %v78
    %v85 = vmul.f32 %v76, %v78
    %v86 = vmul.f32 %v77, %v78
    %v87 = vadd.f32 %v61, %v79
    %v88 = vadd.f32 %v62, %v80
    %v89 = vadd.f32 %v63, %v81
    %v90 = vadd.f32 %v64, %v82
    %v91 = vadd.f32 %v65, %v83
    %v92 = vadd.f32 %v66, %v84
    %v93 = vadd.f32 %v67, %v85
    %v94 = vadd.f32 %v68, %v86
    %s95 = sld [smem:[#allocation2 + $0x3]]
    %s96 = scalar_lea.vmem %s1, 72
    %v97 = vld [vmem:[%s96 + $0x2] sm:$0xff]
    %v98 = vld [vmem:[%s96 + $0xa] sm:$0xff]
    %v99 = vld [vmem:[%s96 + $0x1a] sm:$0xff]
    %v100 = vld [vmem:[%s96 + $0x22] sm:$0xff]
    %v101 = vld [vmem:[%s96 + $0x32] sm:$0xff]
    %v102 = vld [vmem:[%s96 + $0x3a] sm:$0xff]
    %v103 = vld [vmem:[%s96 + $0x4a] sm:$0xff]
    %v104 = vld [vmem:[%s96 + $0x52] sm:$0xff]
    %v105 = vstv %s95
    %v106 = vmul.f32 %v97, %v105
    %v107 = vmul.f32 %v98, %v105
    %v108 = vmul.f32 %v99, %v105
    %v109 = vmul.f32 %v100, %v105
    %v110 = vmul.f32 %v101, %v105
    %v111 = vmul.f32 %v102, %v105
    %v112 = vmul.f32 %v103, %v105
    %v113 = vmul.f32 %v104, %v105
    %v114 = vadd.f32 %v87, %v106
    %v115 = vadd.f32 %v88, %v107
    %v116 = vadd.f32 %v89, %v108
    %v117 = vadd.f32 %v90, %v109
    %v118 = vadd.f32 %v91, %v110
    %v119 = vadd.f32 %v92, %v111
    %v120 = vadd.f32 %v93, %v112
    %v121 = vadd.f32 %v94, %v113
    %s122 = sld [smem:[#allocation2 + $0x4]]
    %v123 = vld [vmem:[%s96 + $0x3] sm:$0xff]
    %v124 = vld [vmem:[%s96 + $0xb] sm:$0xff]
    %v125 = vld [vmem:[%s96 + $0x1b] sm:$0xff]
    %v126 = vld [vmem:[%s96 + $0x23] sm:$0xff]
    %v127 = vld [vmem:[%s96 + $0x33] sm:$0xff]
    %v128 = vld [vmem:[%s96 + $0x3b] sm:$0xff]
    %v129 = vld [vmem:[%s96 + $0x4b] sm:$0xff]
    %v130 = vld [vmem:[%s96 + $0x53] sm:$0xff]
    %v131 = vstv %s122
    %v132 = vmul.f32 %v123, %v131
    %v133 = vmul.f32 %v124, %v131
    %v134 = vmul.f32 %v125, %v131
    %v135 = vmul.f32 %v126, %v131
    %v136 = vmul.f32 %v127, %v131
    %v137 = vmul.f32 %v128, %v131
    %v138 = vmul.f32 %v129, %v131
    %v139 = vmul.f32 %v130, %v131
    %v140 = vadd.f32 %v114, %v132
    %v141 = vadd.f32 %v115, %v133
    %v142 = vadd.f32 %v116, %v134
    %v143 = vadd.f32 %v117, %v135
    %v144 = vadd.f32 %v118, %v136
    %v145 = vadd.f32 %v119, %v137
    %v146 = vadd.f32 %v120, %v138
    %v147 = vadd.f32 %v121, %v139
    %s148 = sld [smem:[#allocation2 + $0x5]]
    %v149 = vld [vmem:[%s96 + $0x4] sm:$0xff]
    %v150 = vld [vmem:[%s96 + $0xc] sm:$0xff]
    %v151 = vld [vmem:[%s96 + $0x1c] sm:$0xff]
    %v152 = vld [vmem:[%s96 + $0x24] sm:$0xff]
    %v153 = vld [vmem:[%s96 + $0x34] sm:$0xff]
    %v154 = vld [vmem:[%s96 + $0x3c] sm:$0xff]
    %v155 = vld [vmem:[%s96 + $0x4c] sm:$0xff]
    %v156 = vld [vmem:[%s96 + $0x54] sm:$0xff]
    %v157 = vstv %s148
    %v158 = vmul.f32 %v149, %v157
    %v159 = vmul.f32 %v150, %v157
    %v160 = vmul.f32 %v151, %v157
    %v161 = vmul.f32 %v152, %v157
    %v162 = vmul.f32 %v153, %v157
    %v163 = vmul.f32 %v154, %v157
    %v164 = vmul.f32 %v155, %v157
    %v165 = vmul.f32 %v156, %v157
    %v166 = vadd.f32 %v140, %v158
    %v167 = vadd.f32 %v141, %v159
    %v168 = vadd.f32 %v142, %v160
    %v169 = vadd.f32 %v143, %v161
    %v170 = vadd.f32 %v144, %v162
    %v171 = vadd.f32 %v145, %v163
    %v172 = vadd.f32 %v146, %v164
    %v173 = vadd.f32 %v147, %v165
    %174 = vst [vmem:[%s2] sm:$0xff] %v166
    %175 = vst [vmem:[%s2 + $0x8] sm:$0xff] %v167
    %176 = vst [vmem:[%s2 + $0x10] sm:$0xff] %v168
    %177 = vst [vmem:[%s2 + $0x18] sm:$0xff] %v169
    %178 = vst [vmem:[%s2 + $0x20] sm:$0xff] %v170
    %179 = vst [vmem:[%s2 + $0x28] sm:$0xff] %v171
    %180 = vst [vmem:[%s2 + $0x30] sm:$0xff] %v172
    %181 = vst [vmem:[%s2 + $0x38] sm:$0xff] %v173
    %s182 = sld [smem:[#allocation2]]
    %s183 = scalar_lea.vmem %s1, 144
    %v184 = vld [vmem:[%s183 + $0x2] sm:$0xff]
    %v185 = vld [vmem:[%s183 + $0xa] sm:$0xff]
    %v186 = vld [vmem:[%s183 + $0x1a] sm:$0xff]
    %v187 = vld [vmem:[%s183 + $0x22] sm:$0xff]
    %v188 = vld [vmem:[%s183 + $0x32] sm:$0xff]
    %v189 = vld [vmem:[%s183 + $0x3a] sm:$0xff]
    %v190 = vld [vmem:[%s183 + $0x4a] sm:$0xff]
    %v191 = vld [vmem:[%s183 + $0x52] sm:$0xff]
    %v192 = vstv %s182
    %v193 = vmul.f32 %v184, %v192
    %v194 = vmul.f32 %v185, %v192
    %v195 = vmul.f32 %v186, %v192
    %v196 = vmul.f32 %v187, %v192
    %v197 = vmul.f32 %v188, %v192
    %v198 = vmul.f32 %v189, %v192
    %v199 = vmul.f32 %v190, %v192
    %v200 = vmul.f32 %v191, %v192
    %s201 = sld [smem:[#allocation2 + $0x1]]
    %v202 = vld [vmem:[%s183 + $0x3] sm:$0xff]
    %v203 = vld [vmem:[%s183 + $0xb] sm:$0xff]
    %v204 = vld [vmem:[%s183 + $0x1b] sm:$0xff]
    %v205 = vld [vmem:[%s183 + $0x23] sm:$0xff]
    %v206 = vld [vmem:[%s183 + $0x33] sm:$0xff]
    %v207 = vld [vmem:[%s183 + $0x3b] sm:$0xff]
    %v208 = vld [vmem:[%s183 + $0x4b] sm:$0xff]
    %v209 = vld [vmem:[%s183 + $0x53] sm:$0xff]
    %v210 = vstv %s201
    %v211 = vmul.f32 %v202, %v210
    %v212 = vmul.f32 %v203, %v210
    %v213 = vmul.f32 %v204, %v210
    %v214 = vmul.f32 %v205, %v210
    %v215 = vmul.f32 %v206, %v210
    %v216 = vmul.f32 %v207, %v210
    %v217 = vmul.f32 %v208, %v210
    %v218 = vmul.f32 %v209, %v210
    %v219 = vadd.f32 %v193, %v211
    %v220 = vadd.f32 %v194, %v212
    %v221 = vadd.f32 %v195, %v213
    %v222 = vadd.f32 %v196, %v214
    %v223 = vadd.f32 %v197, %v215
    %v224 = vadd.f32 %v198, %v216
    %v225 = vadd.f32 %v199, %v217
    %v226 = vadd.f32 %v200, %v218
    %s227 = sld [smem:[#allocation2 + $0x2]]
    %v228 = vld [vmem:[%s183 + $0x4] sm:$0xff]
    %v229 = vld [vmem:[%s183 + $0xc] sm:$0xff]
    %v230 = vld [vmem:[%s183 + $0x1c] sm:$0xff]
    %v231 = vld [vmem:[%s183 + $0x24] sm:$0xff]
    %v232 = vld [vmem:[%s183 + $0x34] sm:$0xff]
    %v233 = vld [vmem:[%s183 + $0x3c] sm:$0xff]
    %v234 = vld [vmem:[%s183 + $0x4c] sm:$0xff]
    %v235 = vld [vmem:[%s183 + $0x54] sm:$0xff]
    %v236 = vstv %s227
    %v237 = vmul.f32 %v228, %v236
    %v238 = vmul.f32 %v229, %v236
    %v239 = vmul.f32 %v230, %v236
    %v240 = vmul.f32 %v231, %v236
    %v241 = vmul.f32 %v232, %v236
    %v242 = vmul.f32 %v233, %v236
    %v243 = vmul.f32 %v234, %v236
    %v244 = vmul.f32 %v235, %v236
    %v245 = vadd.f32 %v219, %v237
    %v246 = vadd.f32 %v220, %v238
    %v247 = vadd.f32 %v221, %v239
    %v248 = vadd.f32 %v222, %v240
    %v249 = vadd.f32 %v223, %v241
    %v250 = vadd.f32 %v224, %v242
    %v251 = vadd.f32 %v225, %v243
    %v252 = vadd.f32 %v226, %v244
    %s253 = sld [smem:[#allocation2 + $0x3]]
    %s254 = scalar_lea.vmem %s1, 168
    %v255 = vld [vmem:[%s254 + $0x2] sm:$0xff]
    %v256 = vld [vmem:[%s254 + $0xa] sm:$0xff]
    %v257 = vld [vmem:[%s254 + $0x1a] sm:$0xff]
    %v258 = vld [vmem:[%s254 + $0x22] sm:$0xff]
    %v259 = vld [vmem:[%s254 + $0x32] sm:$0xff]
    %v260 = vld [vmem:[%s254 + $0x3a] sm:$0xff]
    %v261 = vld [vmem:[%s254 + $0x4a] sm:$0xff]
    %v262 = vld [vmem:[%s254 + $0x52] sm:$0xff]
    %v263 = vstv %s253
    %v264 = vmul.f32 %v255, %v263
    %v265 = vmul.f32 %v256, %v263
    %v266 = vmul.f32 %v257, %v263
    %v267 = vmul.f32 %v258, %v263
    %v268 = vmul.f32 %v259, %v263
    %v269 = vmul.f32 %v260, %v263
    %v270 = vmul.f32 %v261, %v263
    %v271 = vmul.f32 %v262, %v263
    %v272 = vadd.f32 %v245, %v264
    %v273 = vadd.f32 %v246, %v265
    %v274 = vadd.f32 %v247, %v266
    %v275 = vadd.f32 %v248, %v267
    %v276 = vadd.f32 %v249, %v268
    %v277 = vadd.f32 %v250, %v269
    %v278 = vadd.f32 %v251, %v270
    %v279 = vadd.f32 %v252, %v271
    %s280 = sld [smem:[#allocation2 + $0x4]]
    %v281 = vld [vmem:[%s254 + $0x3] sm:$0xff]
    %v282 = vld [vmem:[%s254 + $0xb] sm:$0xff]
    %v283 = vld [vmem:[%s254 + $0x1b] sm:$0xff]
    %v284 = vld [vmem:[%s254 + $0x23] sm:$0xff]
    %v285 = vld [vmem:[%s254 + $0x33] sm:$0xff]
    %v286 = vld [vmem:[%s254 + $0x3b] sm:$0xff]
    %v287 = vld [vmem:[%s254 + $0x4b] sm:$0xff]
    %v288 = vld [vmem:[%s254 + $0x53] sm:$0xff]
    %v289 = vstv %s280
    %v290 = vmul.f32 %v281, %v289
    %v291 = vmul.f32 %v282, %v289
    %v292 = vmul.f32 %v283, %v289
    %v293 = vmul.f32 %v284, %v289
    %v294 = vmul.f32 %v285, %v289
    %v295 = vmul.f32 %v286, %v289
    %v296 = vmul.f32 %v287, %v289
    %v297 = vmul.f32 %v288, %v289
    %v298 = vadd.f32 %v272, %v290
    %v299 = vadd.f32 %v273, %v291
    %v300 = vadd.f32 %v274, %v292
    %v301 = vadd.f32 %v275, %v293
    %v302 = vadd.f32 %v276, %v294
    %v303 = vadd.f32 %v277, %v295
    %v304 = vadd.f32 %v278, %v296
    %v305 = vadd.f32 %v279, %v297
    %s306 = sld [smem:[#allocation2 + $0x5]]
    %v307 = vld [vmem:[%s254 + $0x4] sm:$0xff]
    %v308 = vld [vmem:[%s254 + $0xc] sm:$0xff]
    %v309 = vld [vmem:[%s254 + $0x1c] sm:$0xff]
    %v310 = vld [vmem:[%s254 + $0x24] sm:$0xff]
    %v311 = vld [vmem:[%s254 + $0x34] sm:$0xff]
    %v312 = vld [vmem:[%s254 + $0x3c] sm:$0xff]
    %v313 = vld [vmem:[%s254 + $0x4c] sm:$0xff]
    %v314 = vld [vmem:[%s254 + $0x54] sm:$0xff]
    %v315 = vstv %s306
    %v316 = vmul.f32 %v307, %v315
    %v317 = vmul.f32 %v308, %v315
    %v318 = vmul.f32 %v309, %v315
    %v319 = vmul.f32 %v310, %v315
    %v320 = vmul.f32 %v311, %v315
    %v321 = vmul.f32 %v312, %v315
    %v322 = vmul.f32 %v313, %v315
    %v323 = vmul.f32 %v314, %v315
    %v324 = vadd.f32 %v298, %v316
    %v325 = vadd.f32 %v299, %v317
    %v326 = vadd.f32 %v300, %v318
    %v327 = vadd.f32 %v301, %v319
    %v328 = vadd.f32 %v302, %v320
    %v329 = vadd.f32 %v303, %v321
    %v330 = vadd.f32 %v304, %v322
    %v331 = vadd.f32 %v305, %v323
    %s332 = scalar_lea.vmem %s2, 64
    %333 = vst [vmem:[%s332] sm:$0xff] %v324
    %334 = vst [vmem:[%s332 + $0x8] sm:$0xff] %v325
    %335 = vst [vmem:[%s332 + $0x10] sm:$0xff] %v326
    %336 = vst [vmem:[%s332 + $0x18] sm:$0xff] %v327
    %337 = vst [vmem:[%s332 + $0x20] sm:$0xff] %v328
    %338 = vst [vmem:[%s332 + $0x28] sm:$0xff] %v329
    %339 = vst [vmem:[%s332 + $0x30] sm:$0xff] %v330
    %340 = vst [vmem:[%s332 + $0x38] sm:$0xff] %v331
    %s341 = sld [smem:[#allocation2]]
    %s342 = scalar_lea.vmem %s1, 240
    %v343 = vld [vmem:[%s342 + $0x2] sm:$0xff]
    %v344 = vld [vmem:[%s342 + $0xa] sm:$0xff]
    %v345 = vld [vmem:[%s342 + $0x1a] sm:$0xff]
    %v346 = vld [vmem:[%s342 + $0x22] sm:$0xff]
    %v347 = vld [vmem:[%s342 + $0x32] sm:$0xff]
    %v348 = vld [vmem:[%s342 + $0x3a] sm:$0xff]
    %v349 = vld [vmem:[%s342 + $0x4a] sm:$0xff]
    %v350 = vld [vmem:[%s342 + $0x52] sm:$0xff]
    %v351 = vstv %s341
    %v352 = vmul.f32 %v343, %v351
    %v353 = vmul.f32 %v344, %v351
    %v354 = vmul.f32 %v345, %v351
    %v355 = vmul.f32 %v346, %v351
    %v356 = vmul.f32 %v347, %v351
    %v357 = vmul.f32 %v348, %v351
    %v358 = vmul.f32 %v349, %v351
    %v359 = vmul.f32 %v350, %v351
    %s360 = sld [smem:[#allocation2 + $0x1]]
    %v361 = vld [vmem:[%s342 + $0x3] sm:$0xff]
    %v362 = vld [vmem:[%s342 + $0xb] sm:$0xff]
    %v363 = vld [vmem:[%s342 + $0x1b] sm:$0xff]
    %v364 = vld [vmem:[%s342 + $0x23] sm:$0xff]
    %v365 = vld [vmem:[%s342 + $0x33] sm:$0xff]
    %v366 = vld [vmem:[%s342 + $0x3b] sm:$0xff]
    %v367 = vld [vmem:[%s342 + $0x4b] sm:$0xff]
    %v368 = vld [vmem:[%s342 + $0x53] sm:$0xff]
    %v369 = vstv %s360
    %v370 = vmul.f32 %v361, %v369
    %v371 = vmul.f32 %v362, %v369
    %v372 = vmul.f32 %v363, %v369
    %v373 = vmul.f32 %v364, %v369
    %v374 = vmul.f32 %v365, %v369
    %v375 = vmul.f32 %v366, %v369
    %v376 = vmul.f32 %v367, %v369
    %v377 = vmul.f32 %v368, %v369
    %v378 = vadd.f32 %v352, %v370
    %v379 = vadd.f32 %v353, %v371
    %v380 = vadd.f32 %v354, %v372
    %v381 = vadd.f32 %v355, %v373
    %v382 = vadd.f32 %v356, %v374
    %v383 = vadd.f32 %v357, %v375
    %v384 = vadd.f32 %v358, %v376
    %v385 = vadd.f32 %v359, %v377
    %s386 = sld [smem:[#allocation2 + $0x2]]
    %v387 = vld [vmem:[%s342 + $0x4] sm:$0xff]
    %v388 = vld [vmem:[%s342 + $0xc] sm:$0xff]
    %v389 = vld [vmem:[%s342 + $0x1c] sm:$0xff]
    %v390 = vld [vmem:[%s342 + $0x24] sm:$0xff]
    %v391 = vld [vmem:[%s342 + $0x34] sm:$0xff]
    %v392 = vld [vmem:[%s342 + $0x3c] sm:$0xff]
    %v393 = vld [vmem:[%s342 + $0x4c] sm:$0xff]
    %v394 = vld [vmem:[%s342 + $0x54] sm:$0xff]
    %v395 = vstv %s386
    %v396 = vmul.f32 %v387, %v395
    %v397 = vmul.f32 %v388, %v395
    %v398 = vmul.f32 %v389, %v395
    %v399 = vmul.f32 %v390, %v395
    %v400 = vmul.f32 %v391, %v395
    %v401 = vmul.f32 %v392, %v395
    %v402 = vmul.f32 %v393, %v395
    %v403 = vmul.f32 %v394, %v395
    %v404 = vadd.f32 %v378, %v396
    %v405 = vadd.f32 %v379, %v397
    %v406 = vadd.f32 %v380, %v398
    %v407 = vadd.f32 %v381, %v399
    %v408 = vadd.f32 %v382, %v400
    %v409 = vadd.f32 %v383, %v401
    %v410 = vadd.f32 %v384, %v402
    %v411 = vadd.f32 %v385, %v403
    %s412 = sld [smem:[#allocation2 + $0x3]]
    %s413 = scalar_lea.vmem %s1, 264
    %v414 = vld [vmem:[%s413 + $0x2] sm:$0xff]
    %v415 = vld [vmem:[%s413 + $0xa] sm:$0xff]
    %v416 = vld [vmem:[%s413 + $0x1a] sm:$0xff]
    %v417 = vld [vmem:[%s413 + $0x22] sm:$0xff]
    %v418 = vld [vmem:[%s413 + $0x32] sm:$0xff]
    %v419 = vld [vmem:[%s413 + $0x3a] sm:$0xff]
    %v420 = vld [vmem:[%s413 + $0x4a] sm:$0xff]
    %v421 = vld [vmem:[%s413 + $0x52] sm:$0xff]
    %v422 = vstv %s412
    %v423 = vmul.f32 %v414, %v422
    %v424 = vmul.f32 %v415, %v422
    %v425 = vmul.f32 %v416, %v422
    %v426 = vmul.f32 %v417, %v422
    %v427 = vmul.f32 %v418, %v422
    %v428 = vmul.f32 %v419, %v422
    %v429 = vmul.f32 %v420, %v422
    %v430 = vmul.f32 %v421, %v422
    %v431 = vadd.f32 %v404, %v423
    %v432 = vadd.f32 %v405, %v424
    %v433 = vadd.f32 %v406, %v425
    %v434 = vadd.f32 %v407, %v426
    %v435 = vadd.f32 %v408, %v427
    %v436 = vadd.f32 %v409, %v428
    %v437 = vadd.f32 %v410, %v429
    %v438 = vadd.f32 %v411, %v430
    %s439 = sld [smem:[#allocation2 + $0x4]]
    %v440 = vld [vmem:[%s413 + $0x3] sm:$0xff]
    %v441 = vld [vmem:[%s413 + $0xb] sm:$0xff]
    %v442 = vld [vmem:[%s413 + $0x1b] sm:$0xff]
    %v443 = vld [vmem:[%s413 + $0x23] sm:$0xff]
    %v444 = vld [vmem:[%s413 + $0x33] sm:$0xff]
    %v445 = vld [vmem:[%s413 + $0x3b] sm:$0xff]
    %v446 = vld [vmem:[%s413 + $0x4b] sm:$0xff]
    %v447 = vld [vmem:[%s413 + $0x53] sm:$0xff]
    %v448 = vstv %s439
    %v449 = vmul.f32 %v440, %v448
    %v450 = vmul.f32 %v441, %v448
    %v451 = vmul.f32 %v442, %v448
    %v452 = vmul.f32 %v443, %v448
    %v453 = vmul.f32 %v444, %v448
    %v454 = vmul.f32 %v445, %v448
    %v455 = vmul.f32 %v446, %v448
    %v456 = vmul.f32 %v447, %v448
    %v457 = vadd.f32 %v431, %v449
    %v458 = vadd.f32 %v432, %v450
    %v459 = vadd.f32 %v433, %v451
    %v460 = vadd.f32 %v434, %v452
    %v461 = vadd.f32 %v435, %v453
    %v462 = vadd.f32 %v436, %v454
    %v463 = vadd.f32 %v437, %v455
    %v464 = vadd.f32 %v438, %v456
    %s465 = sld [smem:[#allocation2 + $0x5]]
    %v466 = vld [vmem:[%s413 + $0x4] sm:$0xff]
    %v467 = vld [vmem:[%s413 + $0xc] sm:$0xff]
    %v468 = vld [vmem:[%s413 + $0x1c] sm:$0xff]
    %v469 = vld [vmem:[%s413 + $0x24] sm:$0xff]
    %v470 = vld [vmem:[%s413 + $0x34] sm:$0xff]
    %v471 = vld [vmem:[%s413 + $0x3c] sm:$0xff]
    %v472 = vld [vmem:[%s413 + $0x4c] sm:$0xff]
    %v473 = vld [vmem:[%s413 + $0x54] sm:$0xff]
    %v474 = vstv %s465
    %v475 = vmul.f32 %v466, %v474
    %v476 = vmul.f32 %v467, %v474
    %v477 = vmul.f32 %v468, %v474
    %v478 = vmul.f32 %v469, %v474
    %v479 = vmul.f32 %v470, %v474
    %v480 = vmul.f32 %v471, %v474
    %v481 = vmul.f32 %v472, %v474
    %v482 = vmul.f32 %v473, %v474
    %v483 = vadd.f32 %v457, %v475
    %v484 = vadd.f32 %v458, %v476
    %v485 = vadd.f32 %v459, %v477
    %v486 = vadd.f32 %v460, %v478
    %v487 = vadd.f32 %v461, %v479
    %v488 = vadd.f32 %v462, %v480
    %v489 = vadd.f32 %v463, %v481
    %v490 = vadd.f32 %v464, %v482
    %s491 = scalar_lea.vmem %s2, 128
    %492 = vst [vmem:[%s491] sm:$0xff] %v483
    %493 = vst [vmem:[%s491 + $0x8] sm:$0xff] %v484
    %494 = vst [vmem:[%s491 + $0x10] sm:$0xff] %v485
    %495 = vst [vmem:[%s491 + $0x18] sm:$0xff] %v486
    %496 = vst [vmem:[%s491 + $0x20] sm:$0xff] %v487
    %497 = vst [vmem:[%s491 + $0x28] sm:$0xff] %v488
    %498 = vst [vmem:[%s491 + $0x30] sm:$0xff] %v489
    %499 = vst [vmem:[%s491 + $0x38] sm:$0xff] %v490
    %s500 = sld [smem:[#allocation2]]
    %s501 = scalar_lea.vmem %s1, 336
    %v502 = vld [vmem:[%s501 + $0x2] sm:$0xff]
    %v503 = vld [vmem:[%s501 + $0xa] sm:$0xff]
    %v504 = vld [vmem:[%s501 + $0x1a] sm:$0xff]
    %v505 = vld [vmem:[%s501 + $0x22] sm:$0xff]
    %v506 = vld [vmem:[%s501 + $0x32] sm:$0xff]
    %v507 = vld [vmem:[%s501 + $0x3a] sm:$0xff]
    %v508 = vld [vmem:[%s501 + $0x4a] sm:$0xff]
    %v509 = vld [vmem:[%s501 + $0x52] sm:$0xff]
    %v510 = vstv %s500
    %v511 = vmul.f32 %v502, %v510
    %v512 = vmul.f32 %v503, %v510
    %v513 = vmul.f32 %v504, %v510
    %v514 = vmul.f32 %v505, %v510
    %v515 = vmul.f32 %v506, %v510
    %v516 = vmul.f32 %v507, %v510
    %v517 = vmul.f32 %v508, %v510
    %v518 = vmul.f32 %v509, %v510
    %s519 = sld [smem:[#allocation2 + $0x1]]
    %v520 = vld [vmem:[%s501 + $0x3] sm:$0xff]
    %v521 = vld [vmem:[%s501 + $0xb] sm:$0xff]
    %v522 = vld [vmem:[%s501 + $0x1b] sm:$0xff]
    %v523 = vld [vmem:[%s501 + $0x23] sm:$0xff]
    %v524 = vld [vmem:[%s501 + $0x33] sm:$0xff]
    %v525 = vld [vmem:[%s501 + $0x3b] sm:$0xff]
    %v526 = vld [vmem:[%s501 + $0x4b] sm:$0xff]
    %v527 = vld [vmem:[%s501 + $0x53] sm:$0xff]
    %v528 = vstv %s519
    %v529 = vmul.f32 %v520, %v528
    %v530 = vmul.f32 %v521, %v528
    %v531 = vmul.f32 %v522, %v528
    %v532 = vmul.f32 %v523, %v528
    %v533 = vmul.f32 %v524, %v528
    %v534 = vmul.f32 %v525, %v528
    %v535 = vmul.f32 %v526, %v528
    %v536 = vmul.f32 %v527, %v528
    %v537 = vadd.f32 %v511, %v529
    %v538 = vadd.f32 %v512, %v530
    %v539 = vadd.f32 %v513, %v531
    %v540 = vadd.f32 %v514, %v532
    %v541 = vadd.f32 %v515, %v533
    %v542 = vadd.f32 %v516, %v534
    %v543 = vadd.f32 %v517, %v535
    %v544 = vadd.f32 %v518, %v536
    %s545 = sld [smem:[#allocation2 + $0x2]]
    %v546 = vld [vmem:[%s501 + $0x4] sm:$0xff]
    %v547 = vld [vmem:[%s501 + $0xc] sm:$0xff]
    %v548 = vld [vmem:[%s501 + $0x1c] sm:$0xff]
    %v549 = vld [vmem:[%s501 + $0x24] sm:$0xff]
    %v550 = vld [vmem:[%s501 + $0x34] sm:$0xff]
    %v551 = vld [vmem:[%s501 + $0x3c] sm:$0xff]
    %v552 = vld [vmem:[%s501 + $0x4c] sm:$0xff]
    %v553 = vld [vmem:[%s501 + $0x54] sm:$0xff]
    %v554 = vstv %s545
    %v555 = vmul.f32 %v546, %v554
    %v556 = vmul.f32 %v547, %v554
    %v557 = vmul.f32 %v548, %v554
    %v558 = vmul.f32 %v549, %v554
    %v559 = vmul.f32 %v550, %v554
    %v560 = vmul.f32 %v551, %v554
    %v561 = vmul.f32 %v552, %v554
    %v562 = vmul.f32 %v553, %v554
    %v563 = vadd.f32 %v537, %v555
    %v564 = vadd.f32 %v538, %v556
    %v565 = vadd.f32 %v539, %v557
    %v566 = vadd.f32 %v540, %v558
    %v567 = vadd.f32 %v541, %v559
    %v568 = vadd.f32 %v542, %v560
    %v569 = vadd.f32 %v543, %v561
    %v570 = vadd.f32 %v544, %v562
    %s571 = sld [smem:[#allocation2 + $0x3]]
    %s572 = scalar_lea.vmem %s1, 360
    %v573 = vld [vmem:[%s572 + $0x2] sm:$0xff]
    %v574 = vld [vmem:[%s572 + $0xa] sm:$0xff]
    %v575 = vld [vmem:[%s572 + $0x1a] sm:$0xff]
    %v576 = vld [vmem:[%s572 + $0x22] sm:$0xff]
    %v577 = vld [vmem:[%s572 + $0x32] sm:$0xff]
    %v578 = vld [vmem:[%s572 + $0x3a] sm:$0xff]
    %v579 = vld [vmem:[%s572 + $0x4a] sm:$0xff]
    %v580 = vld [vmem:[%s572 + $0x52] sm:$0xff]
    %v581 = vstv %s571
    %v582 = vmul.f32 %v573, %v581
    %v583 = vmul.f32 %v574, %v581
    %v584 = vmul.f32 %v575, %v581
    %v585 = vmul.f32 %v576, %v581
    %v586 = vmul.f32 %v577, %v581
    %v587 = vmul.f32 %v578, %v581
    %v588 = vmul.f32 %v579, %v581
    %v589 = vmul.f32 %v580, %v581
    %v590 = vadd.f32 %v563, %v582
    %v591 = vadd.f32 %v564, %v583
    %v592 = vadd.f32 %v565, %v584
    %v593 = vadd.f32 %v566, %v585
    %v594 = vadd.f32 %v567, %v586
    %v595 = vadd.f32 %v568, %v587
    %v596 = vadd.f32 %v569, %v588
    %v597 = vadd.f32 %v570, %v589
    %s598 = sld [smem:[#allocation2 + $0x4]]
    %v599 = vld [vmem:[%s572 + $0x3] sm:$0xff]
    %v600 = vld [vmem:[%s572 + $0xb] sm:$0xff]
    %v601 = vld [vmem:[%s572 + $0x1b] sm:$0xff]
    %v602 = vld [vmem:[%s572 + $0x23] sm:$0xff]
    %v603 = vld [vmem:[%s572 + $0x33] sm:$0xff]
    %v604 = vld [vmem:[%s572 + $0x3b] sm:$0xff]
    %v605 = vld [vmem:[%s572 + $0x4b] sm:$0xff]
    %v606 = vld [vmem:[%s572 + $0x53] sm:$0xff]
    %v607 = vstv %s598
    %v608 = vmul.f32 %v599, %v607
    %v609 = vmul.f32 %v600, %v607
    %v610 = vmul.f32 %v601, %v607
    %v611 = vmul.f32 %v602, %v607
    %v612 = vmul.f32 %v603, %v607
    %v613 = vmul.f32 %v604, %v607
    %v614 = vmul.f32 %v605, %v607
    %v615 = vmul.f32 %v606, %v607
    %v616 = vadd.f32 %v590, %v608
    %v617 = vadd.f32 %v591, %v609
    %v618 = vadd.f32 %v592, %v610
    %v619 = vadd.f32 %v593, %v611
    %v620 = vadd.f32 %v594, %v612
    %v621 = vadd.f32 %v595, %v613
    %v622 = vadd.f32 %v596, %v614
    %v623 = vadd.f32 %v597, %v615
    %s624 = sld [smem:[#allocation2 + $0x5]]
    %v625 = vld [vmem:[%s572 + $0x4] sm:$0xff]
    %v626 = vld [vmem:[%s572 + $0xc] sm:$0xff]
    %v627 = vld [vmem:[%s572 + $0x1c] sm:$0xff]
    %v628 = vld [vmem:[%s572 + $0x24] sm:$0xff]
    %v629 = vld [vmem:[%s572 + $0x34] sm:$0xff]
    %v630 = vld [vmem:[%s572 + $0x3c] sm:$0xff]
    %v631 = vld [vmem:[%s572 + $0x4c] sm:$0xff]
    %v632 = vld [vmem:[%s572 + $0x54] sm:$0xff]
    %v633 = vstv %s624
    %v634 = vmul.f32 %v625, %v633
    %v635 = vmul.f32 %v626, %v633
    %v636 = vmul.f32 %v627, %v633
    %v637 = vmul.f32 %v628, %v633
    %v638 = vmul.f32 %v629, %v633
    %v639 = vmul.f32 %v630, %v633
    %v640 = vmul.f32 %v631, %v633
    %v641 = vmul.f32 %v632, %v633
    %v642 = vadd.f32 %v616, %v634
    %v643 = vadd.f32 %v617, %v635
    %v644 = vadd.f32 %v618, %v636
    %v645 = vadd.f32 %v619, %v637
    %v646 = vadd.f32 %v620, %v638
    %v647 = vadd.f32 %v621, %v639
    %v648 = vadd.f32 %v622, %v640
    %v649 = vadd.f32 %v623, %v641
    %s650 = scalar_lea.vmem %s2, 192
    %651 = vst [vmem:[%s650] sm:$0xff] %v642
    %652 = vst [vmem:[%s650 + $0x8] sm:$0xff] %v643
    %653 = vst [vmem:[%s650 + $0x10] sm:$0xff] %v644
    %654 = vst [vmem:[%s650 + $0x18] sm:$0xff] %v645
    %655 = vst [vmem:[%s650 + $0x20] sm:$0xff] %v646
    %656 = vst [vmem:[%s650 + $0x28] sm:$0xff] %v647
    %657 = vst [vmem:[%s650 + $0x30] sm:$0xff] %v648
    %658 = vst [vmem:[%s650 + $0x38] sm:$0xff] %v649
    %s659 = sld [smem:[#allocation2 + $0x6]]
    %s660 = scalar_lea.vmem %s1, 24
    %v661 = vld [vmem:[%s660] sm:$0xff]
    %v662 = vld [vmem:[%s660 + $0x8] sm:$0xff]
    %v663 = vld [vmem:[%s660 + $0x18] sm:$0xff]
    %v664 = vld [vmem:[%s660 + $0x20] sm:$0xff]
    %v665 = vld [vmem:[%s660 + $0x30] sm:$0xff]
    %v666 = vld [vmem:[%s660 + $0x38] sm:$0xff]
    %v667 = vld [vmem:[%s660 + $0x48] sm:$0xff]
    %v668 = vld [vmem:[%s660 + $0x50] sm:$0xff]
    %v669 = vstv %s659
    %v670 = vmul.f32 %v661, %v669
    %v671 = vmul.f32 %v662, %v669
    %v672 = vmul.f32 %v663, %v669
    %v673 = vmul.f32 %v664, %v669
    %v674 = vmul.f32 %v665, %v669
    %v675 = vmul.f32 %v666, %v669
    %v676 = vmul.f32 %v667, %v669
    %v677 = vmul.f32 %v668, %v669
    %s678 = sld [smem:[#allocation2 + $0x7]]
    %v679 = vld [vmem:[%s660 + $0x1] sm:$0xff]
    %v680 = vld [vmem:[%s660 + $0x9] sm:$0xff]
    %v681 = vld [vmem:[%s660 + $0x19] sm:$0xff]
    %v682 = vld [vmem:[%s660 + $0x21] sm:$0xff]
    %v683 = vld [vmem:[%s660 + $0x31] sm:$0xff]
    %v684 = vld [vmem:[%s660 + $0x39] sm:$0xff]
    %v685 = vld [vmem:[%s660 + $0x49] sm:$0xff]
    %v686 = vld [vmem:[%s660 + $0x51] sm:$0xff]
    %v687 = vstv %s678
    %v688 = vmul.f32 %v679, %v687
    %v689 = vmul.f32 %v680, %v687
    %v690 = vmul.f32 %v681, %v687
    %v691 = vmul.f32 %v682, %v687
    %v692 = vmul.f32 %v683, %v687
    %v693 = vmul.f32 %v684, %v687
    %v694 = vmul.f32 %v685, %v687
    %v695 = vmul.f32 %v686, %v687
    %v696 = vadd.f32 %v670, %v688
    %v697 = vadd.f32 %v671, %v689
    %v698 = vadd.f32 %v672, %v690
    %v699 = vadd.f32 %v673, %v691
    %v700 = vadd.f32 %v674, %v692
    %v701 = vadd.f32 %v675, %v693
    %v702 = vadd.f32 %v676, %v694
    %v703 = vadd.f32 %v677, %v695
    %s704 = sld [smem:[#allocation2 + $0x8]]
    %v705 = vld [vmem:[%s660 + $0x2] sm:$0xff]
    %v706 = vld [vmem:[%s660 + $0xa] sm:$0xff]
    %v707 = vld [vmem:[%s660 + $0x1a] sm:$0xff]
    %v708 = vld [vmem:[%s660 + $0x22] sm:$0xff]
    %v709 = vld [vmem:[%s660 + $0x32] sm:$0xff]
    %v710 = vld [vmem:[%s660 + $0x3a] sm:$0xff]
    %v711 = vld [vmem:[%s660 + $0x4a] sm:$0xff]
    %v712 = vld [vmem:[%s660 + $0x52] sm:$0xff]
    %v713 = vstv %s704
    %v714 = vmul.f32 %v705, %v713
    %v715 = vmul.f32 %v706, %v713
    %v716 = vmul.f32 %v707, %v713
    %v717 = vmul.f32 %v708, %v713
    %v718 = vmul.f32 %v709, %v713
    %v719 = vmul.f32 %v710, %v713
    %v720 = vmul.f32 %v711, %v713
    %v721 = vmul.f32 %v712, %v713
    %v722 = vadd.f32 %v696, %v714
    %v723 = vadd.f32 %v697, %v715
    %v724 = vadd.f32 %v698, %v716
    %v725 = vadd.f32 %v699, %v717
    %v726 = vadd.f32 %v700, %v718
    %v727 = vadd.f32 %v701, %v719
    %v728 = vadd.f32 %v702, %v720
    %v729 = vadd.f32 %v703, %v721
    %s730 = sld [smem:[#allocation2 + $0x9]]
    %v731 = vld [vmem:[%s25] sm:$0xff]
    %v732 = vld [vmem:[%s25 + $0x8] sm:$0xff]
    %v733 = vld [vmem:[%s25 + $0x18] sm:$0xff]
    %v734 = vld [vmem:[%s25 + $0x20] sm:$0xff]
    %v735 = vld [vmem:[%s25 + $0x30] sm:$0xff]
    %v736 = vld [vmem:[%s25 + $0x38] sm:$0xff]
    %v737 = vld [vmem:[%s25 + $0x48] sm:$0xff]
    %v738 = vld [vmem:[%s25 + $0x50] sm:$0xff]
    %v739 = vstv %s730
    %v740 = vmul.f32 %v731, %v739
    %v741 = vmul.f32 %v732, %v739
    %v742 = vmul.f32 %v733, %v739
    %v743 = vmul.f32 %v734, %v739
    %v744 = vmul.f32 %v735, %v739
    %v745 = vmul.f32 %v736, %v739
    %v746 = vmul.f32 %v737, %v739
    %v747 = vmul.f32 %v738, %v739
    %v748 = vadd.f32 %v722, %v740
    %v749 = vadd.f32 %v723, %v741
    %v750 = vadd.f32 %v724, %v742
    %v751 = vadd.f32 %v725, %v743
    %v752 = vadd.f32 %v726, %v744
    %v753 = vadd.f32 %v727, %v745
    %v754 = vadd.f32 %v728, %v746
    %v755 = vadd.f32 %v729, %v747
    %s756 = sld [smem:[#allocation2 + $0xa]]
    %v757 = vld [vmem:[%s25 + $0x1] sm:$0xff]
    %v758 = vld [vmem:[%s25 + $0x9] sm:$0xff]
    %v759 = vld [vmem:[%s25 + $0x19] sm:$0xff]
    %v760 = vld [vmem:[%s25 + $0x21] sm:$0xff]
    %v761 = vld [vmem:[%s25 + $0x31] sm:$0xff]
    %v762 = vld [vmem:[%s25 + $0x39] sm:$0xff]
    %v763 = vld [vmem:[%s25 + $0x49] sm:$0xff]
    %v764 = vld [vmem:[%s25 + $0x51] sm:$0xff]
    %v765 = vstv %s756
    %v766 = vmul.f32 %v757, %v765
    %v767 = vmul.f32 %v758, %v765
    %v768 = vmul.f32 %v759, %v765
    %v769 = vmul.f32 %v760, %v765
    %v770 = vmul.f32 %v761, %v765
    %v771 = vmul.f32 %v762, %v765
    %v772 = vmul.f32 %v763, %v765
    %v773 = vmul.f32 %v764, %v765
    %v774 = vadd.f32 %v748, %v766
    %v775 = vadd.f32 %v749, %v767
    %v776 = vadd.f32 %v750, %v768
    %v777 = vadd.f32 %v751, %v769
    %v778 = vadd.f32 %v752, %v770
    %v779 = vadd.f32 %v753, %v771
    %v780 = vadd.f32 %v754, %v772
    %v781 = vadd.f32 %v755, %v773
    %s782 = sld [smem:[#allocation2 + $0xb]]
    %v783 = vld [vmem:[%s25 + $0x2] sm:$0xff]
    %v784 = vld [vmem:[%s25 + $0xa] sm:$0xff]
    %v785 = vld [vmem:[%s25 + $0x1a] sm:$0xff]
    %v786 = vld [vmem:[%s25 + $0x22] sm:$0xff]
    %v787 = vld [vmem:[%s25 + $0x32] sm:$0xff]
    %v788 = vld [vmem:[%s25 + $0x3a] sm:$0xff]
    %v789 = vld [vmem:[%s25 + $0x4a] sm:$0xff]
    %v790 = vld [vmem:[%s25 + $0x52] sm:$0xff]
    %v791 = vstv %s782
    %v792 = vmul.f32 %v783, %v791
    %v793 = vmul.f32 %v784, %v791
    %v794 = vmul.f32 %v785, %v791
    %v795 = vmul.f32 %v786, %v791
    %v796 = vmul.f32 %v787, %v791
    %v797 = vmul.f32 %v788, %v791
    %v798 = vmul.f32 %v789, %v791
    %v799 = vmul.f32 %v790, %v791
    %v800 = vadd.f32 %v774, %v792
    %v801 = vadd.f32 %v775, %v793
    %v802 = vadd.f32 %v776, %v794
    %v803 = vadd.f32 %v777, %v795
    %v804 = vadd.f32 %v778, %v796
    %v805 = vadd.f32 %v779, %v797
    %v806 = vadd.f32 %v780, %v798
    %v807 = vadd.f32 %v781, %v799
    %s808 = scalar_lea.vmem %s2, 256
    %809 = vst [vmem:[%s808] sm:$0xff] %v800
    %810 = vst [vmem:[%s808 + $0x8] sm:$0xff] %v801
    %811 = vst [vmem:[%s808 + $0x10] sm:$0xff] %v802
    %812 = vst [vmem:[%s808 + $0x18] sm:$0xff] %v803
    %813 = vst [vmem:[%s808 + $0x20] sm:$0xff] %v804
    %814 = vst [vmem:[%s808 + $0x28] sm:$0xff] %v805
    %815 = vst [vmem:[%s808 + $0x30] sm:$0xff] %v806
    %816 = vst [vmem:[%s808 + $0x38] sm:$0xff] %v807
    %s817 = sld [smem:[#allocation2 + $0x6]]
    %s818 = scalar_lea.vmem %s1, 120
    %v819 = vld [vmem:[%s818] sm:$0xff]
    %v820 = vld [vmem:[%s818 + $0x8] sm:$0xff]
    %v821 = vld [vmem:[%s818 + $0x18] sm:$0xff]
    %v822 = vld [vmem:[%s818 + $0x20] sm:$0xff]
    %v823 = vld [vmem:[%s818 + $0x30] sm:$0xff]
    %v824 = vld [vmem:[%s818 + $0x38] sm:$0xff]
    %v825 = vld [vmem:[%s818 + $0x48] sm:$0xff]
    %v826 = vld [vmem:[%s818 + $0x50] sm:$0xff]
    %v827 = vstv %s817
    %v828 = vmul.f32 %v819, %v827
    %v829 = vmul.f32 %v820, %v827
    %v830 = vmul.f32 %v821, %v827
    %v831 = vmul.f32 %v822, %v827
    %v832 = vmul.f32 %v823, %v827
    %v833 = vmul.f32 %v824, %v827
    %v834 = vmul.f32 %v825, %v827
    %v835 = vmul.f32 %v826, %v827
    %s836 = sld [smem:[#allocation2 + $0x7]]
    %v837 = vld [vmem:[%s818 + $0x1] sm:$0xff]
    %v838 = vld [vmem:[%s818 + $0x9] sm:$0xff]
    %v839 = vld [vmem:[%s818 + $0x19] sm:$0xff]
    %v840 = vld [vmem:[%s818 + $0x21] sm:$0xff]
    %v841 = vld [vmem:[%s818 + $0x31] sm:$0xff]
    %v842 = vld [vmem:[%s818 + $0x39] sm:$0xff]
    %v843 = vld [vmem:[%s818 + $0x49] sm:$0xff]
    %v844 = vld [vmem:[%s818 + $0x51] sm:$0xff]
    %v845 = vstv %s836
    %v846 = vmul.f32 %v837, %v845
    %v847 = vmul.f32 %v838, %v845
    %v848 = vmul.f32 %v839, %v845
    %v849 = vmul.f32 %v840, %v845
    %v850 = vmul.f32 %v841, %v845
    %v851 = vmul.f32 %v842, %v845
    %v852 = vmul.f32 %v843, %v845
    %v853 = vmul.f32 %v844, %v845
    %v854 = vadd.f32 %v828, %v846
    %v855 = vadd.f32 %v829, %v847
    %v856 = vadd.f32 %v830, %v848
    %v857 = vadd.f32 %v831, %v849
    %v858 = vadd.f32 %v832, %v850
    %v859 = vadd.f32 %v833, %v851
    %v860 = vadd.f32 %v834, %v852
    %v861 = vadd.f32 %v835, %v853
    %s862 = sld [smem:[#allocation2 + $0x8]]
    %v863 = vld [vmem:[%s818 + $0x2] sm:$0xff]
    %v864 = vld [vmem:[%s818 + $0xa] sm:$0xff]
    %v865 = vld [vmem:[%s818 + $0x1a] sm:$0xff]
    %v866 = vld [vmem:[%s818 + $0x22] sm:$0xff]
    %v867 = vld [vmem:[%s818 + $0x32] sm:$0xff]
    %v868 = vld [vmem:[%s818 + $0x3a] sm:$0xff]
    %v869 = vld [vmem:[%s818 + $0x4a] sm:$0xff]
    %v870 = vld [vmem:[%s818 + $0x52] sm:$0xff]
    %v871 = vstv %s862
    %v872 = vmul.f32 %v863, %v871
    %v873 = vmul.f32 %v864, %v871
    %v874 = vmul.f32 %v865, %v871
    %v875 = vmul.f32 %v866, %v871
    %v876 = vmul.f32 %v867, %v871
    %v877 = vmul.f32 %v868, %v871
    %v878 = vmul.f32 %v869, %v871
    %v879 = vmul.f32 %v870, %v871
    %v880 = vadd.f32 %v854, %v872
    %v881 = vadd.f32 %v855, %v873
    %v882 = vadd.f32 %v856, %v874
    %v883 = vadd.f32 %v857, %v875
    %v884 = vadd.f32 %v858, %v876
    %v885 = vadd.f32 %v859, %v877
    %v886 = vadd.f32 %v860, %v878
    %v887 = vadd.f32 %v861, %v879
    %s888 = sld [smem:[#allocation2 + $0x9]]
    %v889 = vld [vmem:[%s183] sm:$0xff]
    %v890 = vld [vmem:[%s183 + $0x8] sm:$0xff]
    %v891 = vld [vmem:[%s183 + $0x18] sm:$0xff]
    %v892 = vld [vmem:[%s183 + $0x20] sm:$0xff]
    %v893 = vld [vmem:[%s183 + $0x30] sm:$0xff]
    %v894 = vld [vmem:[%s183 + $0x38] sm:$0xff]
    %v895 = vld [vmem:[%s183 + $0x48] sm:$0xff]
    %v896 = vld [vmem:[%s183 + $0x50] sm:$0xff]
    %v897 = vstv %s888
    %v898 = vmul.f32 %v889, %v897
    %v899 = vmul.f32 %v890, %v897
    %v900 = vmul.f32 %v891, %v897
    %v901 = vmul.f32 %v892, %v897
    %v902 = vmul.f32 %v893, %v897
    %v903 = vmul.f32 %v894, %v897
    %v904 = vmul.f32 %v895, %v897
    %v905 = vmul.f32 %v896, %v897
    %v906 = vadd.f32 %v880, %v898
    %v907 = vadd.f32 %v881, %v899
    %v908 = vadd.f32 %v882, %v900
    %v909 = vadd.f32 %v883, %v901
    %v910 = vadd.f32 %v884, %v902
    %v911 = vadd.f32 %v885, %v903
    %v912 = vadd.f32 %v886, %v904
    %v913 = vadd.f32 %v887, %v905
    %s914 = sld [smem:[#allocation2 + $0xa]]
    %v915 = vld [vmem:[%s183 + $0x1] sm:$0xff]
    %v916 = vld [vmem:[%s183 + $0x9] sm:$0xff]
    %v917 = vld [vmem:[%s183 + $0x19] sm:$0xff]
    %v918 = vld [vmem:[%s183 + $0x21] sm:$0xff]
    %v919 = vld [vmem:[%s183 + $0x31] sm:$0xff]
    %v920 = vld [vmem:[%s183 + $0x39] sm:$0xff]
    %v921 = vld [vmem:[%s183 + $0x49] sm:$0xff]
    %v922 = vld [vmem:[%s183 + $0x51] sm:$0xff]
    %v923 = vstv %s914
    %v924 = vmul.f32 %v915, %v923
    %v925 = vmul.f32 %v916, %v923
    %v926 = vmul.f32 %v917, %v923
    %v927 = vmul.f32 %v918, %v923
    %v928 = vmul.f32 %v919, %v923
    %v929 = vmul.f32 %v920, %v923
    %v930 = vmul.f32 %v921, %v923
    %v931 = vmul.f32 %v922, %v923
    %v932 = vadd.f32 %v906, %v924
    %v933 = vadd.f32 %v907, %v925
    %v934 = vadd.f32 %v908, %v926
    %v935 = vadd.f32 %v909, %v927
    %v936 = vadd.f32 %v910, %v928
    %v937 = vadd.f32 %v911, %v929
    %v938 = vadd.f32 %v912, %v930
    %v939 = vadd.f32 %v913, %v931
    %s940 = sld [smem:[#allocation2 + $0xb]]
    %v941 = vld [vmem:[%s183 + $0x2] sm:$0xff]
    %v942 = vld [vmem:[%s183 + $0xa] sm:$0xff]
    %v943 = vld [vmem:[%s183 + $0x1a] sm:$0xff]
    %v944 = vld [vmem:[%s183 + $0x22] sm:$0xff]
    %v945 = vld [vmem:[%s183 + $0x32] sm:$0xff]
    %v946 = vld [vmem:[%s183 + $0x3a] sm:$0xff]
    %v947 = vld [vmem:[%s183 + $0x4a] sm:$0xff]
    %v948 = vld [vmem:[%s183 + $0x52] sm:$0xff]
    %v949 = vstv %s940
    %v950 = vmul.f32 %v941, %v949
    %v951 = vmul.f32 %v942, %v949
    %v952 = vmul.f32 %v943, %v949
    %v953 = vmul.f32 %v944, %v949
    %v954 = vmul.f32 %v945, %v949
    %v955 = vmul.f32 %v946, %v949
    %v956 = vmul.f32 %v947, %v949
    %v957 = vmul.f32 %v948, %v949
    %v958 = vadd.f32 %v932, %v950
    %v959 = vadd.f32 %v933, %v951
    %v960 = vadd.f32 %v934, %v952
    %v961 = vadd.f32 %v935, %v953
    %v962 = vadd.f32 %v936, %v954
    %v963 = vadd.f32 %v937, %v955
    %v964 = vadd.f32 %v938, %v956
    %v965 = vadd.f32 %v939, %v957
    %s966 = scalar_lea.vmem %s2, 320
    %967 = vst [vmem:[%s966] sm:$0xff] %v958
    %968 = vst [vmem:[%s966 + $0x8] sm:$0xff] %v959
    %969 = vst [vmem:[%s966 + $0x10] sm:$0xff] %v960
    %970 = vst [vmem:[%s966 + $0x18] sm:$0xff] %v961
    %971 = vst [vmem:[%s966 + $0x20] sm:$0xff] %v962
    %972 = vst [vmem:[%s966 + $0x28] sm:$0xff] %v963
    %973 = vst [vmem:[%s966 + $0x30] sm:$0xff] %v964
    %974 = vst [vmem:[%s966 + $0x38] sm:$0xff] %v965
    %s975 = sld [smem:[#allocation2 + $0x6]]
    %s976 = scalar_lea.vmem %s1, 216
    %v977 = vld [vmem:[%s976] sm:$0xff]
    %v978 = vld [vmem:[%s976 + $0x8] sm:$0xff]
    %v979 = vld [vmem:[%s976 + $0x18] sm:$0xff]
    %v980 = vld [vmem:[%s976 + $0x20] sm:$0xff]
    %v981 = vld [vmem:[%s976 + $0x30] sm:$0xff]
    %v982 = vld [vmem:[%s976 + $0x38] sm:$0xff]
    %v983 = vld [vmem:[%s976 + $0x48] sm:$0xff]
    %v984 = vld [vmem:[%s976 + $0x50] sm:$0xff]
    %v985 = vstv %s975
    %v986 = vmul.f32 %v977, %v985
    %v987 = vmul.f32 %v978, %v985
    %v988 = vmul.f32 %v979, %v985
    %v989 = vmul.f32 %v980, %v985
    %v990 = vmul.f32 %v981, %v985
    %v991 = vmul.f32 %v982, %v985
    %v992 = vmul.f32 %v983, %v985
    %v993 = vmul.f32 %v984, %v985
    %s994 = sld [smem:[#allocation2 + $0x7]]
    %v995 = vld [vmem:[%s976 + $0x1] sm:$0xff]
    %v996 = vld [vmem:[%s976 + $0x9] sm:$0xff]
    %v997 = vld [vmem:[%s976 + $0x19] sm:$0xff]
    %v998 = vld [vmem:[%s976 + $0x21] sm:$0xff]
    %v999 = vld [vmem:[%s976 + $0x31] sm:$0xff]
    %v1000 = vld [vmem:[%s976 + $0x39] sm:$0xff]
    %v1001 = vld [vmem:[%s976 + $0x49] sm:$0xff]
    %v1002 = vld [vmem:[%s976 + $0x51] sm:$0xff]
    %v1003 = vstv %s994
    %v1004 = vmul.f32 %v995, %v1003
    %v1005 = vmul.f32 %v996, %v1003
    %v1006 = vmul.f32 %v997, %v1003
    %v1007 = vmul.f32 %v998, %v1003
    %v1008 = vmul.f32 %v999, %v1003
    %v1009 = vmul.f32 %v1000, %v1003
    %v1010 = vmul.f32 %v1001, %v1003
    %v1011 = vmul.f32 %v1002, %v1003
    %v1012 = vadd.f32 %v986, %v1004
    %v1013 = vadd.f32 %v987, %v1005
    %v1014 = vadd.f32 %v988, %v1006
    %v1015 = vadd.f32 %v989, %v1007
    %v1016 = vadd.f32 %v990, %v1008
    %v1017 = vadd.f32 %v991, %v1009
    %v1018 = vadd.f32 %v992, %v1010
    %v1019 = vadd.f32 %v993, %v1011
    %s1020 = sld [smem:[#allocation2 + $0x8]]
    %v1021 = vld [vmem:[%s976 + $0x2] sm:$0xff]
    %v1022 = vld [vmem:[%s976 + $0xa] sm:$0xff]
    %v1023 = vld [vmem:[%s976 + $0x1a] sm:$0xff]
    %v1024 = vld [vmem:[%s976 + $0x22] sm:$0xff]
    %v1025 = vld [vmem:[%s976 + $0x32] sm:$0xff]
    %v1026 = vld [vmem:[%s976 + $0x3a] sm:$0xff]
    %v1027 = vld [vmem:[%s976 + $0x4a] sm:$0xff]
    %v1028 = vld [vmem:[%s976 + $0x52] sm:$0xff]
    %v1029 = vstv %s1020
    %v1030 = vmul.f32 %v1021, %v1029
    %v1031 = vmul.f32 %v1022, %v1029
    %v1032 = vmul.f32 %v1023, %v1029
    %v1033 = vmul.f32 %v1024, %v1029
    %v1034 = vmul.f32 %v1025, %v1029
    %v1035 = vmul.f32 %v1026, %v1029
    %v1036 = vmul.f32 %v1027, %v1029
    %v1037 = vmul.f32 %v1028, %v1029
    %v1038 = vadd.f32 %v1012, %v1030
    %v1039 = vadd.f32 %v1013, %v1031
    %v1040 = vadd.f32 %v1014, %v1032
    %v1041 = vadd.f32 %v1015, %v1033
    %v1042 = vadd.f32 %v1016, %v1034
    %v1043 = vadd.f32 %v1017, %v1035
    %v1044 = vadd.f32 %v1018, %v1036
    %v1045 = vadd.f32 %v1019, %v1037
    %s1046 = sld [smem:[#allocation2 + $0x9]]
    %v1047 = vld [vmem:[%s342] sm:$0xff]
    %v1048 = vld [vmem:[%s342 + $0x8] sm:$0xff]
    %v1049 = vld [vmem:[%s342 + $0x18] sm:$0xff]
    %v1050 = vld [vmem:[%s342 + $0x20] sm:$0xff]
    %v1051 = vld [vmem:[%s342 + $0x30] sm:$0xff]
    %v1052 = vld [vmem:[%s342 + $0x38] sm:$0xff]
    %v1053 = vld [vmem:[%s342 + $0x48] sm:$0xff]
    %v1054 = vld [vmem:[%s342 + $0x50] sm:$0xff]
    %v1055 = vstv %s1046
    %v1056 = vmul.f32 %v1047, %v1055
    %v1057 = vmul.f32 %v1048, %v1055
    %v1058 = vmul.f32 %v1049, %v1055
    %v1059 = vmul.f32 %v1050, %v1055
    %v1060 = vmul.f32 %v1051, %v1055
    %v1061 = vmul.f32 %v1052, %v1055
    %v1062 = vmul.f32 %v1053, %v1055
    %v1063 = vmul.f32 %v1054, %v1055
    %v1064 = vadd.f32 %v1038, %v1056
    %v1065 = vadd.f32 %v1039, %v1057
    %v1066 = vadd.f32 %v1040, %v1058
    %v1067 = vadd.f32 %v1041, %v1059
    %v1068 = vadd.f32 %v1042, %v1060
    %v1069 = vadd.f32 %v1043, %v1061
    %v1070 = vadd.f32 %v1044, %v1062
    %v1071 = vadd.f32 %v1045, %v1063
    %s1072 = sld [smem:[#allocation2 + $0xa]]
    %v1073 = vld [vmem:[%s342 + $0x1] sm:$0xff]
    %v1074 = vld [vmem:[%s342 + $0x9] sm:$0xff]
    %v1075 = vld [vmem:[%s342 + $0x19] sm:$0xff]
    %v1076 = vld [vmem:[%s342 + $0x21] sm:$0xff]
    %v1077 = vld [vmem:[%s342 + $0x31] sm:$0xff]
    %v1078 = vld [vmem:[%s342 + $0x39] sm:$0xff]
    %v1079 = vld [vmem:[%s342 + $0x49] sm:$0xff]
    %v1080 = vld [vmem:[%s342 + $0x51] sm:$0xff]
    %v1081 = vstv %s1072
    %v1082 = vmul.f32 %v1073, %v1081
    %v1083 = vmul.f32 %v1074, %v1081
    %v1084 = vmul.f32 %v1075, %v1081
    %v1085 = vmul.f32 %v1076, %v1081
    %v1086 = vmul.f32 %v1077, %v1081
    %v1087 = vmul.f32 %v1078, %v1081
    %v1088 = vmul.f32 %v1079, %v1081
    %v1089 = vmul.f32 %v1080, %v1081
    %v1090 = vadd.f32 %v1064, %v1082
    %v1091 = vadd.f32 %v1065, %v1083
    %v1092 = vadd.f32 %v1066, %v1084
    %v1093 = vadd.f32 %v1067, %v1085
    %v1094 = vadd.f32 %v1068, %v1086
    %v1095 = vadd.f32 %v1069, %v1087
    %v1096 = vadd.f32 %v1070, %v1088
    %v1097 = vadd.f32 %v1071, %v1089
    %s1098 = sld [smem:[#allocation2 + $0xb]]
    %v1099 = vld [vmem:[%s342 + $0x2] sm:$0xff]
    %v1100 = vld [vmem:[%s342 + $0xa] sm:$0xff]
    %v1101 = vld [vmem:[%s342 + $0x1a] sm:$0xff]
    %v1102 = vld [vmem:[%s342 + $0x22] sm:$0xff]
    %v1103 = vld [vmem:[%s342 + $0x32] sm:$0xff]
    %v1104 = vld [vmem:[%s342 + $0x3a] sm:$0xff]
    %v1105 = vld [vmem:[%s342 + $0x4a] sm:$0xff]
    %v1106 = vld [vmem:[%s342 + $0x52] sm:$0xff]
    %v1107 = vstv %s1098
    %v1108 = vmul.f32 %v1099, %v1107
    %v1109 = vmul.f32 %v1100, %v1107
    %v1110 = vmul.f32 %v1101, %v1107
    %v1111 = vmul.f32 %v1102, %v1107
    %v1112 = vmul.f32 %v1103, %v1107
    %v1113 = vmul.f32 %v1104, %v1107
    %v1114 = vmul.f32 %v1105, %v1107
    %v1115 = vmul.f32 %v1106, %v1107
    %v1116 = vadd.f32 %v1090, %v1108
    %v1117 = vadd.f32 %v1091, %v1109
    %v1118 = vadd.f32 %v1092, %v1110
    %v1119 = vadd.f32 %v1093, %v1111
    %v1120 = vadd.f32 %v1094, %v1112
    %v1121 = vadd.f32 %v1095, %v1113
    %v1122 = vadd.f32 %v1096, %v1114
    %v1123 = vadd.f32 %v1097, %v1115
    %s1124 = scalar_lea.vmem %s2, 384
    %1125 = vst [vmem:[%s1124] sm:$0xff] %v1116
    %1126 = vst [vmem:[%s1124 + $0x8] sm:$0xff] %v1117
    %1127 = vst [vmem:[%s1124 + $0x10] sm:$0xff] %v1118
    %1128 = vst [vmem:[%s1124 + $0x18] sm:$0xff] %v1119
    %1129 = vst [vmem:[%s1124 + $0x20] sm:$0xff] %v1120
    %1130 = vst [vmem:[%s1124 + $0x28] sm:$0xff] %v1121
    %1131 = vst [vmem:[%s1124 + $0x30] sm:$0xff] %v1122
    %1132 = vst [vmem:[%s1124 + $0x38] sm:$0xff] %v1123
    %s1133 = sld [smem:[#allocation2 + $0x6]]
    %s1134 = scalar_lea.vmem %s1, 312
    %v1135 = vld [vmem:[%s1134] sm:$0xff]
    %v1136 = vld [vmem:[%s1134 + $0x8] sm:$0xff]
    %v1137 = vld [vmem:[%s1134 + $0x18] sm:$0xff]
    %v1138 = vld [vmem:[%s1134 + $0x20] sm:$0xff]
    %v1139 = vld [vmem:[%s1134 + $0x30] sm:$0xff]
    %v1140 = vld [vmem:[%s1134 + $0x38] sm:$0xff]
    %v1141 = vld [vmem:[%s1134 + $0x48] sm:$0xff]
    %v1142 = vld [vmem:[%s1134 + $0x50] sm:$0xff]
    %v1143 = vstv %s1133
    %v1144 = vmul.f32 %v1135, %v1143
    %v1145 = vmul.f32 %v1136, %v1143
    %v1146 = vmul.f32 %v1137, %v1143
    %v1147 = vmul.f32 %v1138, %v1143
    %v1148 = vmul.f32 %v1139, %v1143
    %v1149 = vmul.f32 %v1140, %v1143
    %v1150 = vmul.f32 %v1141, %v1143
    %v1151 = vmul.f32 %v1142, %v1143
    %s1152 = sld [smem:[#allocation2 + $0x7]]
    %v1153 = vld [vmem:[%s1134 + $0x1] sm:$0xff]
    %v1154 = vld [vmem:[%s1134 + $0x9] sm:$0xff]
    %v1155 = vld [vmem:[%s1134 + $0x19] sm:$0xff]
    %v1156 = vld [vmem:[%s1134 + $0x21] sm:$0xff]
    %v1157 = vld [vmem:[%s1134 + $0x31] sm:$0xff]
    %v1158 = vld [vmem:[%s1134 + $0x39] sm:$0xff]
    %v1159 = vld [vmem:[%s1134 + $0x49] sm:$0xff]
    %v1160 = vld [vmem:[%s1134 + $0x51] sm:$0xff]
    %v1161 = vstv %s1152
    %v1162 = vmul.f32 %v1153, %v1161
    %v1163 = vmul.f32 %v1154, %v1161
    %v1164 = vmul.f32 %v1155, %v1161
    %v1165 = vmul.f32 %v1156, %v1161
    %v1166 = vmul.f32 %v1157, %v1161
    %v1167 = vmul.f32 %v1158, %v1161
    %v1168 = vmul.f32 %v1159, %v1161
    %v1169 = vmul.f32 %v1160, %v1161
    %v1170 = vadd.f32 %v1144, %v1162
    %v1171 = vadd.f32 %v1145, %v1163
    %v1172 = vadd.f32 %v1146, %v1164
    %v1173 = vadd.f32 %v1147, %v1165
    %v1174 = vadd.f32 %v1148, %v1166
    %v1175 = vadd.f32 %v1149, %v1167
    %v1176 = vadd.f32 %v1150, %v1168
    %v1177 = vadd.f32 %v1151, %v1169
    %s1178 = sld [smem:[#allocation2 + $0x8]]
    %v1179 = vld [vmem:[%s1134 + $0x2] sm:$0xff]
    %v1180 = vld [vmem:[%s1134 + $0xa] sm:$0xff]
    %v1181 = vld [vmem:[%s1134 + $0x1a] sm:$0xff]
    %v1182 = vld [vmem:[%s1134 + $0x22] sm:$0xff]
    %v1183 = vld [vmem:[%s1134 + $0x32] sm:$0xff]
    %v1184 = vld [vmem:[%s1134 + $0x3a] sm:$0xff]
    %v1185 = vld [vmem:[%s1134 + $0x4a] sm:$0xff]
    %v1186 = vld [vmem:[%s1134 + $0x52] sm:$0xff]
    %v1187 = vstv %s1178
    %v1188 = vmul.f32 %v1179, %v1187
    %v1189 = vmul.f32 %v1180, %v1187
    %v1190 = vmul.f32 %v1181, %v1187
    %v1191 = vmul.f32 %v1182, %v1187
    %v1192 = vmul.f32 %v1183, %v1187
    %v1193 = vmul.f32 %v1184, %v1187
    %v1194 = vmul.f32 %v1185, %v1187
    %v1195 = vmul.f32 %v1186, %v1187
    %v1196 = vadd.f32 %v1170, %v1188
    %v1197 = vadd.f32 %v1171, %v1189
    %v1198 = vadd.f32 %v1172, %v1190
    %v1199 = vadd.f32 %v1173, %v1191
    %v1200 = vadd.f32 %v1174, %v1192
    %v1201 = vadd.f32 %v1175, %v1193
    %v1202 = vadd.f32 %v1176, %v1194
    %v1203 = vadd.f32 %v1177, %v1195
    %s1204 = sld [smem:[#allocation2 + $0x9]]
    %v1205 = vld [vmem:[%s501] sm:$0xff]
    %v1206 = vld [vmem:[%s501 + $0x8] sm:$0xff]
    %v1207 = vld [vmem:[%s501 + $0x18] sm:$0xff]
    %v1208 = vld [vmem:[%s501 + $0x20] sm:$0xff]
    %v1209 = vld [vmem:[%s501 + $0x30] sm:$0xff]
    %v1210 = vld [vmem:[%s501 + $0x38] sm:$0xff]
    %v1211 = vld [vmem:[%s501 + $0x48] sm:$0xff]
    %v1212 = vld [vmem:[%s501 + $0x50] sm:$0xff]
    %v1213 = vstv %s1204
    %v1214 = vmul.f32 %v1205, %v1213
    %v1215 = vmul.f32 %v1206, %v1213
    %v1216 = vmul.f32 %v1207, %v1213
    %v1217 = vmul.f32 %v1208, %v1213
    %v1218 = vmul.f32 %v1209, %v1213
    %v1219 = vmul.f32 %v1210, %v1213
    %v1220 = vmul.f32 %v1211, %v1213
    %v1221 = vmul.f32 %v1212, %v1213
    %v1222 = vadd.f32 %v1196, %v1214
    %v1223 = vadd.f32 %v1197, %v1215
    %v1224 = vadd.f32 %v1198, %v1216
    %v1225 = vadd.f32 %v1199, %v1217
    %v1226 = vadd.f32 %v1200, %v1218
    %v1227 = vadd.f32 %v1201, %v1219
    %v1228 = vadd.f32 %v1202, %v1220
    %v1229 = vadd.f32 %v1203, %v1221
    %s1230 = sld [smem:[#allocation2 + $0xa]]
    %v1231 = vld [vmem:[%s501 + $0x1] sm:$0xff]
    %v1232 = vld [vmem:[%s501 + $0x9] sm:$0xff]
    %v1233 = vld [vmem:[%s501 + $0x19] sm:$0xff]
    %v1234 = vld [vmem:[%s501 + $0x21] sm:$0xff]
    %v1235 = vld [vmem:[%s501 + $0x31] sm:$0xff]
    %v1236 = vld [vmem:[%s501 + $0x39] sm:$0xff]
    %v1237 = vld [vmem:[%s501 + $0x49] sm:$0xff]
    %v1238 = vld [vmem:[%s501 + $0x51] sm:$0xff]
    %v1239 = vstv %s1230
    %v1240 = vmul.f32 %v1231, %v1239
    %v1241 = vmul.f32 %v1232, %v1239
    %v1242 = vmul.f32 %v1233, %v1239
    %v1243 = vmul.f32 %v1234, %v1239
    %v1244 = vmul.f32 %v1235, %v1239
    %v1245 = vmul.f32 %v1236, %v1239
    %v1246 = vmul.f32 %v1237, %v1239
    %v1247 = vmul.f32 %v1238, %v1239
    %v1248 = vadd.f32 %v1222, %v1240
    %v1249 = vadd.f32 %v1223, %v1241
    %v1250 = vadd.f32 %v1224, %v1242
    %v1251 = vadd.f32 %v1225, %v1243
    %v1252 = vadd.f32 %v1226, %v1244
    %v1253 = vadd.f32 %v1227, %v1245
    %v1254 = vadd.f32 %v1228, %v1246
    %v1255 = vadd.f32 %v1229, %v1247
    %s1256 = sld [smem:[#allocation2 + $0xb]]
    %v1257 = vld [vmem:[%s501 + $0x2] sm:$0xff]
    %v1258 = vld [vmem:[%s501 + $0xa] sm:$0xff]
    %v1259 = vld [vmem:[%s501 + $0x1a] sm:$0xff]
    %v1260 = vld [vmem:[%s501 + $0x22] sm:$0xff]
    %v1261 = vld [vmem:[%s501 + $0x32] sm:$0xff]
    %v1262 = vld [vmem:[%s501 + $0x3a] sm:$0xff]
    %v1263 = vld [vmem:[%s501 + $0x4a] sm:$0xff]
    %v1264 = vld [vmem:[%s501 + $0x52] sm:$0xff]
    %v1265 = vstv %s1256
    %v1266 = vmul.f32 %v1257, %v1265
    %v1267 = vmul.f32 %v1258, %v1265
    %v1268 = vmul.f32 %v1259, %v1265
    %v1269 = vmul.f32 %v1260, %v1265
    %v1270 = vmul.f32 %v1261, %v1265
    %v1271 = vmul.f32 %v1262, %v1265
    %v1272 = vmul.f32 %v1263, %v1265
    %v1273 = vmul.f32 %v1264, %v1265
    %v1274 = vadd.f32 %v1248, %v1266
    %v1275 = vadd.f32 %v1249, %v1267
    %v1276 = vadd.f32 %v1250, %v1268
    %v1277 = vadd.f32 %v1251, %v1269
    %v1278 = vadd.f32 %v1252, %v1270
    %v1279 = vadd.f32 %v1253, %v1271
    %v1280 = vadd.f32 %v1254, %v1272
    %v1281 = vadd.f32 %v1255, %v1273
    %s1282 = scalar_lea.vmem %s2, 448
    %1283 = vst [vmem:[%s1282] sm:$0xff] %v1274
    %1284 = vst [vmem:[%s1282 + $0x8] sm:$0xff] %v1275
    %1285 = vst [vmem:[%s1282 + $0x10] sm:$0xff] %v1276
    %1286 = vst [vmem:[%s1282 + $0x18] sm:$0xff] %v1277
    %1287 = vst [vmem:[%s1282 + $0x20] sm:$0xff] %v1278
    %1288 = vst [vmem:[%s1282 + $0x28] sm:$0xff] %v1279
    %1289 = vst [vmem:[%s1282 + $0x30] sm:$0xff] %v1280
    %1290 = vst [vmem:[%s1282 + $0x38] sm:$0xff] %v1281
    %s1291 = sld [smem:[#allocation2 + $0xc]]
    %v1292 = vld [vmem:[%s96 + $0x1] sm:$0xff]
    %v1293 = vld [vmem:[%s96 + $0x9] sm:$0xff]
    %v1294 = vld [vmem:[%s96 + $0x19] sm:$0xff]
    %v1295 = vld [vmem:[%s96 + $0x21] sm:$0xff]
    %v1296 = vld [vmem:[%s96 + $0x31] sm:$0xff]
    %v1297 = vld [vmem:[%s96 + $0x39] sm:$0xff]
    %v1298 = vld [vmem:[%s96 + $0x49] sm:$0xff]
    %v1299 = vld [vmem:[%s96 + $0x51] sm:$0xff]
    %v1300 = vstv %s1291
    %v1301 = vmul.f32 %v1292, %v1300
    %v1302 = vmul.f32 %v1293, %v1300
    %v1303 = vmul.f32 %v1294, %v1300
    %v1304 = vmul.f32 %v1295, %v1300
    %v1305 = vmul.f32 %v1296, %v1300
    %v1306 = vmul.f32 %v1297, %v1300
    %v1307 = vmul.f32 %v1298, %v1300
    %v1308 = vmul.f32 %v1299, %v1300
    %s1309 = sld [smem:[#allocation2 + $0xd]]
    %v1310 = vld [vmem:[%s96 + $0x2] sm:$0xff]
    %v1311 = vld [vmem:[%s96 + $0xa] sm:$0xff]
    %v1312 = vld [vmem:[%s96 + $0x1a] sm:$0xff]
    %v1313 = vld [vmem:[%s96 + $0x22] sm:$0xff]
    %v1314 = vld [vmem:[%s96 + $0x32] sm:$0xff]
    %v1315 = vld [vmem:[%s96 + $0x3a] sm:$0xff]
    %v1316 = vld [vmem:[%s96 + $0x4a] sm:$0xff]
    %v1317 = vld [vmem:[%s96 + $0x52] sm:$0xff]
    %v1318 = vstv %s1309
    %v1319 = vmul.f32 %v1310, %v1318
    %v1320 = vmul.f32 %v1311, %v1318
    %v1321 = vmul.f32 %v1312, %v1318
    %v1322 = vmul.f32 %v1313, %v1318
    %v1323 = vmul.f32 %v1314, %v1318
    %v1324 = vmul.f32 %v1315, %v1318
    %v1325 = vmul.f32 %v1316, %v1318
    %v1326 = vmul.f32 %v1317, %v1318
    %v1327 = vadd.f32 %v1301, %v1319
    %v1328 = vadd.f32 %v1302, %v1320
    %v1329 = vadd.f32 %v1303, %v1321
    %v1330 = vadd.f32 %v1304, %v1322
    %v1331 = vadd.f32 %v1305, %v1323
    %v1332 = vadd.f32 %v1306, %v1324
    %v1333 = vadd.f32 %v1307, %v1325
    %v1334 = vadd.f32 %v1308, %v1326
    %s1335 = sld [smem:[#allocation2 + $0xe]]
    %v1336 = vld [vmem:[%s96 + $0x3] sm:$0xff]
    %v1337 = vld [vmem:[%s96 + $0xb] sm:$0xff]
    %v1338 = vld [vmem:[%s96 + $0x1b] sm:$0xff]
    %v1339 = vld [vmem:[%s96 + $0x23] sm:$0xff]
    %v1340 = vld [vmem:[%s96 + $0x33] sm:$0xff]
    %v1341 = vld [vmem:[%s96 + $0x3b] sm:$0xff]
    %v1342 = vld [vmem:[%s96 + $0x4b] sm:$0xff]
    %v1343 = vld [vmem:[%s96 + $0x53] sm:$0xff]
    %v1344 = vstv %s1335
    %v1345 = vmul.f32 %v1336, %v1344
    %v1346 = vmul.f32 %v1337, %v1344
    %v1347 = vmul.f32 %v1338, %v1344
    %v1348 = vmul.f32 %v1339, %v1344
    %v1349 = vmul.f32 %v1340, %v1344
    %v1350 = vmul.f32 %v1341, %v1344
    %v1351 = vmul.f32 %v1342, %v1344
    %v1352 = vmul.f32 %v1343, %v1344
    %v1353 = vadd.f32 %v1327, %v1345
    %v1354 = vadd.f32 %v1328, %v1346
    %v1355 = vadd.f32 %v1329, %v1347
    %v1356 = vadd.f32 %v1330, %v1348
    %v1357 = vadd.f32 %v1331, %v1349
    %v1358 = vadd.f32 %v1332, %v1350
    %v1359 = vadd.f32 %v1333, %v1351
    %v1360 = vadd.f32 %v1334, %v1352
    %s1361 = sld [smem:[#allocation2 + $0xf]]
    %s1362 = scalar_lea.vmem %s1, 96
    %v1363 = vld [vmem:[%s1362 + $0x1] sm:$0xff]
    %v1364 = vld [vmem:[%s1362 + $0x9] sm:$0xff]
    %v1365 = vld [vmem:[%s1362 + $0x19] sm:$0xff]
    %v1366 = vld [vmem:[%s1362 + $0x21] sm:$0xff]
    %v1367 = vld [vmem:[%s1362 + $0x31] sm:$0xff]
    %v1368 = vld [vmem:[%s1362 + $0x39] sm:$0xff]
    %v1369 = vld [vmem:[%s1362 + $0x49] sm:$0xff]
    %v1370 = vld [vmem:[%s1362 + $0x51] sm:$0xff]
    %v1371 = vstv %s1361
    %v1372 = vmul.f32 %v1363, %v1371
    %v1373 = vmul.f32 %v1364, %v1371
    %v1374 = vmul.f32 %v1365, %v1371
    %v1375 = vmul.f32 %v1366, %v1371
    %v1376 = vmul.f32 %v1367, %v1371
    %v1377 = vmul.f32 %v1368, %v1371
    %v1378 = vmul.f32 %v1369, %v1371
    %v1379 = vmul.f32 %v1370, %v1371
    %v1380 = vadd.f32 %v1353, %v1372
    %v1381 = vadd.f32 %v1354, %v1373
    %v1382 = vadd.f32 %v1355, %v1374
    %v1383 = vadd.f32 %v1356, %v1375
    %v1384 = vadd.f32 %v1357, %v1376
    %v1385 = vadd.f32 %v1358, %v1377
    %v1386 = vadd.f32 %v1359, %v1378
    %v1387 = vadd.f32 %v1360, %v1379
    %s1388 = sld [smem:[#allocation2 + $0x10]]
    %v1389 = vld [vmem:[%s1362 + $0x2] sm:$0xff]
    %v1390 = vld [vmem:[%s1362 + $0xa] sm:$0xff]
    %v1391 = vld [vmem:[%s1362 + $0x1a] sm:$0xff]
    %v1392 = vld [vmem:[%s1362 + $0x22] sm:$0xff]
    %v1393 = vld [vmem:[%s1362 + $0x32] sm:$0xff]
    %v1394 = vld [vmem:[%s1362 + $0x3a] sm:$0xff]
    %v1395 = vld [vmem:[%s1362 + $0x4a] sm:$0xff]
    %v1396 = vld [vmem:[%s1362 + $0x52] sm:$0xff]
    %v1397 = vstv %s1388
    %v1398 = vmul.f32 %v1389, %v1397
    %v1399 = vmul.f32 %v1390, %v1397
    %v1400 = vmul.f32 %v1391, %v1397
    %v1401 = vmul.f32 %v1392, %v1397
    %v1402 = vmul.f32 %v1393, %v1397
    %v1403 = vmul.f32 %v1394, %v1397
    %v1404 = vmul.f32 %v1395, %v1397
    %v1405 = vmul.f32 %v1396, %v1397
    %v1406 = vadd.f32 %v1380, %v1398
    %v1407 = vadd.f32 %v1381, %v1399
    %v1408 = vadd.f32 %v1382, %v1400
    %v1409 = vadd.f32 %v1383, %v1401
    %v1410 = vadd.f32 %v1384, %v1402
    %v1411 = vadd.f32 %v1385, %v1403
    %v1412 = vadd.f32 %v1386, %v1404
    %v1413 = vadd.f32 %v1387, %v1405
    %s1414 = sld [smem:[#allocation2 + $0x11]]
    %v1415 = vld [vmem:[%s1362 + $0x3] sm:$0xff]
    %v1416 = vld [vmem:[%s1362 + $0xb] sm:$0xff]
    %v1417 = vld [vmem:[%s1362 + $0x1b] sm:$0xff]
    %v1418 = vld [vmem:[%s1362 + $0x23] sm:$0xff]
    %v1419 = vld [vmem:[%s1362 + $0x33] sm:$0xff]
    %v1420 = vld [vmem:[%s1362 + $0x3b] sm:$0xff]
    %v1421 = vld [vmem:[%s1362 + $0x4b] sm:$0xff]
    %v1422 = vld [vmem:[%s1362 + $0x53] sm:$0xff]
    %v1423 = vstv %s1414
    %v1424 = vmul.f32 %v1415, %v1423
    %v1425 = vmul.f32 %v1416, %v1423
    %v1426 = vmul.f32 %v1417, %v1423
    %v1427 = vmul.f32 %v1418, %v1423
    %v1428 = vmul.f32 %v1419, %v1423
    %v1429 = vmul.f32 %v1420, %v1423
    %v1430 = vmul.f32 %v1421, %v1423
    %v1431 = vmul.f32 %v1422, %v1423
    %v1432 = vadd.f32 %v1406, %v1424
    %v1433 = vadd.f32 %v1407, %v1425
    %v1434 = vadd.f32 %v1408, %v1426
    %v1435 = vadd.f32 %v1409, %v1427
    %v1436 = vadd.f32 %v1410, %v1428
    %v1437 = vadd.f32 %v1411, %v1429
    %v1438 = vadd.f32 %v1412, %v1430
    %v1439 = vadd.f32 %v1413, %v1431
    %s1440 = scalar_lea.vmem %s2, 512
    %1441 = vst [vmem:[%s1440] sm:$0xff] %v1432
    %1442 = vst [vmem:[%s1440 + $0x8] sm:$0xff] %v1433
    %1443 = vst [vmem:[%s1440 + $0x10] sm:$0xff] %v1434
    %1444 = vst [vmem:[%s1440 + $0x18] sm:$0xff] %v1435
    %1445 = vst [vmem:[%s1440 + $0x20] sm:$0xff] %v1436
    %1446 = vst [vmem:[%s1440 + $0x28] sm:$0xff] %v1437
    %1447 = vst [vmem:[%s1440 + $0x30] sm:$0xff] %v1438
    %1448 = vst [vmem:[%s1440 + $0x38] sm:$0xff] %v1439
    %s1449 = sld [smem:[#allocation2 + $0xc]]
    %v1450 = vld [vmem:[%s254 + $0x1] sm:$0xff]
    %v1451 = vld [vmem:[%s254 + $0x9] sm:$0xff]
    %v1452 = vld [vmem:[%s254 + $0x19] sm:$0xff]
    %v1453 = vld [vmem:[%s254 + $0x21] sm:$0xff]
    %v1454 = vld [vmem:[%s254 + $0x31] sm:$0xff]
    %v1455 = vld [vmem:[%s254 + $0x39] sm:$0xff]
    %v1456 = vld [vmem:[%s254 + $0x49] sm:$0xff]
    %v1457 = vld [vmem:[%s254 + $0x51] sm:$0xff]
    %v1458 = vstv %s1449
    %v1459 = vmul.f32 %v1450, %v1458
    %v1460 = vmul.f32 %v1451, %v1458
    %v1461 = vmul.f32 %v1452, %v1458
    %v1462 = vmul.f32 %v1453, %v1458
    %v1463 = vmul.f32 %v1454, %v1458
    %v1464 = vmul.f32 %v1455, %v1458
    %v1465 = vmul.f32 %v1456, %v1458
    %v1466 = vmul.f32 %v1457, %v1458
    %s1467 = sld [smem:[#allocation2 + $0xd]]
    %v1468 = vld [vmem:[%s254 + $0x2] sm:$0xff]
    %v1469 = vld [vmem:[%s254 + $0xa] sm:$0xff]
    %v1470 = vld [vmem:[%s254 + $0x1a] sm:$0xff]
    %v1471 = vld [vmem:[%s254 + $0x22] sm:$0xff]
    %v1472 = vld [vmem:[%s254 + $0x32] sm:$0xff]
    %v1473 = vld [vmem:[%s254 + $0x3a] sm:$0xff]
    %v1474 = vld [vmem:[%s254 + $0x4a] sm:$0xff]
    %v1475 = vld [vmem:[%s254 + $0x52] sm:$0xff]
    %v1476 = vstv %s1467
    %v1477 = vmul.f32 %v1468, %v1476
    %v1478 = vmul.f32 %v1469, %v1476
    %v1479 = vmul.f32 %v1470, %v1476
    %v1480 = vmul.f32 %v1471, %v1476
    %v1481 = vmul.f32 %v1472, %v1476
    %v1482 = vmul.f32 %v1473, %v1476
    %v1483 = vmul.f32 %v1474, %v1476
    %v1484 = vmul.f32 %v1475, %v1476
    %v1485 = vadd.f32 %v1459, %v1477
    %v1486 = vadd.f32 %v1460, %v1478
    %v1487 = vadd.f32 %v1461, %v1479
    %v1488 = vadd.f32 %v1462, %v1480
    %v1489 = vadd.f32 %v1463, %v1481
    %v1490 = vadd.f32 %v1464, %v1482
    %v1491 = vadd.f32 %v1465, %v1483
    %v1492 = vadd.f32 %v1466, %v1484
    %s1493 = sld [smem:[#allocation2 + $0xe]]
    %v1494 = vld [vmem:[%s254 + $0x3] sm:$0xff]
    %v1495 = vld [vmem:[%s254 + $0xb] sm:$0xff]
    %v1496 = vld [vmem:[%s254 + $0x1b] sm:$0xff]
    %v1497 = vld [vmem:[%s254 + $0x23] sm:$0xff]
    %v1498 = vld [vmem:[%s254 + $0x33] sm:$0xff]
    %v1499 = vld [vmem:[%s254 + $0x3b] sm:$0xff]
    %v1500 = vld [vmem:[%s254 + $0x4b] sm:$0xff]
    %v1501 = vld [vmem:[%s254 + $0x53] sm:$0xff]
    %v1502 = vstv %s1493
    %v1503 = vmul.f32 %v1494, %v1502
    %v1504 = vmul.f32 %v1495, %v1502
    %v1505 = vmul.f32 %v1496, %v1502
    %v1506 = vmul.f32 %v1497, %v1502
    %v1507 = vmul.f32 %v1498, %v1502
    %v1508 = vmul.f32 %v1499, %v1502
    %v1509 = vmul.f32 %v1500, %v1502
    %v1510 = vmul.f32 %v1501, %v1502
    %v1511 = vadd.f32 %v1485, %v1503
    %v1512 = vadd.f32 %v1486, %v1504
    %v1513 = vadd.f32 %v1487, %v1505
    %v1514 = vadd.f32 %v1488, %v1506
    %v1515 = vadd.f32 %v1489, %v1507
    %v1516 = vadd.f32 %v1490, %v1508
    %v1517 = vadd.f32 %v1491, %v1509
    %v1518 = vadd.f32 %v1492, %v1510
    %s1519 = sld [smem:[#allocation2 + $0xf]]
    %s1520 = scalar_lea.vmem %s1, 192
    %v1521 = vld [vmem:[%s1520 + $0x1] sm:$0xff]
    %v1522 = vld [vmem:[%s1520 + $0x9] sm:$0xff]
    %v1523 = vld [vmem:[%s1520 + $0x19] sm:$0xff]
    %v1524 = vld [vmem:[%s1520 + $0x21] sm:$0xff]
    %v1525 = vld [vmem:[%s1520 + $0x31] sm:$0xff]
    %v1526 = vld [vmem:[%s1520 + $0x39] sm:$0xff]
    %v1527 = vld [vmem:[%s1520 + $0x49] sm:$0xff]
    %v1528 = vld [vmem:[%s1520 + $0x51] sm:$0xff]
    %v1529 = vstv %s1519
    %v1530 = vmul.f32 %v1521, %v1529
    %v1531 = vmul.f32 %v1522, %v1529
    %v1532 = vmul.f32 %v1523, %v1529
    %v1533 = vmul.f32 %v1524, %v1529
    %v1534 = vmul.f32 %v1525, %v1529
    %v1535 = vmul.f32 %v1526, %v1529
    %v1536 = vmul.f32 %v1527, %v1529
    %v1537 = vmul.f32 %v1528, %v1529
    %v1538 = vadd.f32 %v1511, %v1530
    %v1539 = vadd.f32 %v1512, %v1531
    %v1540 = vadd.f32 %v1513, %v1532
    %v1541 = vadd.f32 %v1514, %v1533
    %v1542 = vadd.f32 %v1515, %v1534
    %v1543 = vadd.f32 %v1516, %v1535
    %v1544 = vadd.f32 %v1517, %v1536
    %v1545 = vadd.f32 %v1518, %v1537
    %s1546 = sld [smem:[#allocation2 + $0x10]]
    %v1547 = vld [vmem:[%s1520 + $0x2] sm:$0xff]
    %v1548 = vld [vmem:[%s1520 + $0xa] sm:$0xff]
    %v1549 = vld [vmem:[%s1520 + $0x1a] sm:$0xff]
    %v1550 = vld [vmem:[%s1520 + $0x22] sm:$0xff]
    %v1551 = vld [vmem:[%s1520 + $0x32] sm:$0xff]
    %v1552 = vld [vmem:[%s1520 + $0x3a] sm:$0xff]
    %v1553 = vld [vmem:[%s1520 + $0x4a] sm:$0xff]
    %v1554 = vld [vmem:[%s1520 + $0x52] sm:$0xff]
    %v1555 = vstv %s1546
    %v1556 = vmul.f32 %v1547, %v1555
    %v1557 = vmul.f32 %v1548, %v1555
    %v1558 = vmul.f32 %v1549, %v1555
    %v1559 = vmul.f32 %v1550, %v1555
    %v1560 = vmul.f32 %v1551, %v1555
    %v1561 = vmul.f32 %v1552, %v1555
    %v1562 = vmul.f32 %v1553, %v1555
    %v1563 = vmul.f32 %v1554, %v1555
    %v1564 = vadd.f32 %v1538, %v1556
    %v1565 = vadd.f32 %v1539, %v1557
    %v1566 = vadd.f32 %v1540, %v1558
    %v1567 = vadd.f32 %v1541, %v1559
    %v1568 = vadd.f32 %v1542, %v1560
    %v1569 = vadd.f32 %v1543, %v1561
    %v1570 = vadd.f32 %v1544, %v1562
    %v1571 = vadd.f32 %v1545, %v1563
    %s1572 = sld [smem:[#allocation2 + $0x11]]
    %v1573 = vld [vmem:[%s1520 + $0x3] sm:$0xff]
    %v1574 = vld [vmem:[%s1520 + $0xb] sm:$0xff]
    %v1575 = vld [vmem:[%s1520 + $0x1b] sm:$0xff]
    %v1576 = vld [vmem:[%s1520 + $0x23] sm:$0xff]
    %v1577 = vld [vmem:[%s1520 + $0x33] sm:$0xff]
    %v1578 = vld [vmem:[%s1520 + $0x3b] sm:$0xff]
    %v1579 = vld [vmem:[%s1520 + $0x4b] sm:$0xff]
    %v1580 = vld [vmem:[%s1520 + $0x53] sm:$0xff]
    %v1581 = vstv %s1572
    %v1582 = vmul.f32 %v1573, %v1581
    %v1583 = vmul.f32 %v1574, %v1581
    %v1584 = vmul.f32 %v1575, %v1581
    %v1585 = vmul.f32 %v1576, %v1581
    %v1586 = vmul.f32 %v1577, %v1581
    %v1587 = vmul.f32 %v1578, %v1581
    %v1588 = vmul.f32 %v1579, %v1581
    %v1589 = vmul.f32 %v1580, %v1581
    %v1590 = vadd.f32 %v1564, %v1582
    %v1591 = vadd.f32 %v1565, %v1583
    %v1592 = vadd.f32 %v1566, %v1584
    %v1593 = vadd.f32 %v1567, %v1585
    %v1594 = vadd.f32 %v1568, %v1586
    %v1595 = vadd.f32 %v1569, %v1587
    %v1596 = vadd.f32 %v1570, %v1588
    %v1597 = vadd.f32 %v1571, %v1589
    %s1598 = scalar_lea.vmem %s2, 576
    %1599 = vst [vmem:[%s1598] sm:$0xff] %v1590
    %1600 = vst [vmem:[%s1598 + $0x8] sm:$0xff] %v1591
    %1601 = vst [vmem:[%s1598 + $0x10] sm:$0xff] %v1592
    %1602 = vst [vmem:[%s1598 + $0x18] sm:$0xff] %v1593
    %1603 = vst [vmem:[%s1598 + $0x20] sm:$0xff] %v1594
    %1604 = vst [vmem:[%s1598 + $0x28] sm:$0xff] %v1595
    %1605 = vst [vmem:[%s1598 + $0x30] sm:$0xff] %v1596
    %1606 = vst [vmem:[%s1598 + $0x38] sm:$0xff] %v1597
    %s1607 = sld [smem:[#allocation2 + $0xc]]
    %v1608 = vld [vmem:[%s413 + $0x1] sm:$0xff]
    %v1609 = vld [vmem:[%s413 + $0x9] sm:$0xff]
    %v1610 = vld [vmem:[%s413 + $0x19] sm:$0xff]
    %v1611 = vld [vmem:[%s413 + $0x21] sm:$0xff]
    %v1612 = vld [vmem:[%s413 + $0x31] sm:$0xff]
    %v1613 = vld [vmem:[%s413 + $0x39] sm:$0xff]
    %v1614 = vld [vmem:[%s413 + $0x49] sm:$0xff]
    %v1615 = vld [vmem:[%s413 + $0x51] sm:$0xff]
    %v1616 = vstv %s1607
    %v1617 = vmul.f32 %v1608, %v1616
    %v1618 = vmul.f32 %v1609, %v1616
    %v1619 = vmul.f32 %v1610, %v1616
    %v1620 = vmul.f32 %v1611, %v1616
    %v1621 = vmul.f32 %v1612, %v1616
    %v1622 = vmul.f32 %v1613, %v1616
    %v1623 = vmul.f32 %v1614, %v1616
    %v1624 = vmul.f32 %v1615, %v1616
    %s1625 = sld [smem:[#allocation2 + $0xd]]
    %v1626 = vld [vmem:[%s413 + $0x2] sm:$0xff]
    %v1627 = vld [vmem:[%s413 + $0xa] sm:$0xff]
    %v1628 = vld [vmem:[%s413 + $0x1a] sm:$0xff]
    %v1629 = vld [vmem:[%s413 + $0x22] sm:$0xff]
    %v1630 = vld [vmem:[%s413 + $0x32] sm:$0xff]
    %v1631 = vld [vmem:[%s413 + $0x3a] sm:$0xff]
    %v1632 = vld [vmem:[%s413 + $0x4a] sm:$0xff]
    %v1633 = vld [vmem:[%s413 + $0x52] sm:$0xff]
    %v1634 = vstv %s1625
    %v1635 = vmul.f32 %v1626, %v1634
    %v1636 = vmul.f32 %v1627, %v1634
    %v1637 = vmul.f32 %v1628, %v1634
    %v1638 = vmul.f32 %v1629, %v1634
    %v1639 = vmul.f32 %v1630, %v1634
    %v1640 = vmul.f32 %v1631, %v1634
    %v1641 = vmul.f32 %v1632, %v1634
    %v1642 = vmul.f32 %v1633, %v1634
    %v1643 = vadd.f32 %v1617, %v1635
    %v1644 = vadd.f32 %v1618, %v1636
    %v1645 = vadd.f32 %v1619, %v1637
    %v1646 = vadd.f32 %v1620, %v1638
    %v1647 = vadd.f32 %v1621, %v1639
    %v1648 = vadd.f32 %v1622, %v1640
    %v1649 = vadd.f32 %v1623, %v1641
    %v1650 = vadd.f32 %v1624, %v1642
    %s1651 = sld [smem:[#allocation2 + $0xe]]
    %v1652 = vld [vmem:[%s413 + $0x3] sm:$0xff]
    %v1653 = vld [vmem:[%s413 + $0xb] sm:$0xff]
    %v1654 = vld [vmem:[%s413 + $0x1b] sm:$0xff]
    %v1655 = vld [vmem:[%s413 + $0x23] sm:$0xff]
    %v1656 = vld [vmem:[%s413 + $0x33] sm:$0xff]
    %v1657 = vld [vmem:[%s413 + $0x3b] sm:$0xff]
    %v1658 = vld [vmem:[%s413 + $0x4b] sm:$0xff]
    %v1659 = vld [vmem:[%s413 + $0x53] sm:$0xff]
    %v1660 = vstv %s1651
    %v1661 = vmul.f32 %v1652, %v1660
    %v1662 = vmul.f32 %v1653, %v1660
    %v1663 = vmul.f32 %v1654, %v1660
    %v1664 = vmul.f32 %v1655, %v1660
    %v1665 = vmul.f32 %v1656, %v1660
    %v1666 = vmul.f32 %v1657, %v1660
    %v1667 = vmul.f32 %v1658, %v1660
    %v1668 = vmul.f32 %v1659, %v1660
    %v1669 = vadd.f32 %v1643, %v1661
    %v1670 = vadd.f32 %v1644, %v1662
    %v1671 = vadd.f32 %v1645, %v1663
    %v1672 = vadd.f32 %v1646, %v1664
    %v1673 = vadd.f32 %v1647, %v1665
    %v1674 = vadd.f32 %v1648, %v1666
    %v1675 = vadd.f32 %v1649, %v1667
    %v1676 = vadd.f32 %v1650, %v1668
    %s1677 = sld [smem:[#allocation2 + $0xf]]
    %s1678 = scalar_lea.vmem %s1, 288
    %v1679 = vld [vmem:[%s1678 + $0x1] sm:$0xff]
    %v1680 = vld [vmem:[%s1678 + $0x9] sm:$0xff]
    %v1681 = vld [vmem:[%s1678 + $0x19] sm:$0xff]
    %v1682 = vld [vmem:[%s1678 + $0x21] sm:$0xff]
    %v1683 = vld [vmem:[%s1678 + $0x31] sm:$0xff]
    %v1684 = vld [vmem:[%s1678 + $0x39] sm:$0xff]
    %v1685 = vld [vmem:[%s1678 + $0x49] sm:$0xff]
    %v1686 = vld [vmem:[%s1678 + $0x51] sm:$0xff]
    %v1687 = vstv %s1677
    %v1688 = vmul.f32 %v1679, %v1687
    %v1689 = vmul.f32 %v1680, %v1687
    %v1690 = vmul.f32 %v1681, %v1687
    %v1691 = vmul.f32 %v1682, %v1687
    %v1692 = vmul.f32 %v1683, %v1687
    %v1693 = vmul.f32 %v1684, %v1687
    %v1694 = vmul.f32 %v1685, %v1687
    %v1695 = vmul.f32 %v1686, %v1687
    %v1696 = vadd.f32 %v1669, %v1688
    %v1697 = vadd.f32 %v1670, %v1689
    %v1698 = vadd.f32 %v1671, %v1690
    %v1699 = vadd.f32 %v1672, %v1691
    %v1700 = vadd.f32 %v1673, %v1692
    %v1701 = vadd.f32 %v1674, %v1693
    %v1702 = vadd.f32 %v1675, %v1694
    %v1703 = vadd.f32 %v1676, %v1695
    %s1704 = sld [smem:[#allocation2 + $0x10]]
    %v1705 = vld [vmem:[%s1678 + $0x2] sm:$0xff]
    %v1706 = vld [vmem:[%s1678 + $0xa] sm:$0xff]
    %v1707 = vld [vmem:[%s1678 + $0x1a] sm:$0xff]
    %v1708 = vld [vmem:[%s1678 + $0x22] sm:$0xff]
    %v1709 = vld [vmem:[%s1678 + $0x32] sm:$0xff]
    %v1710 = vld [vmem:[%s1678 + $0x3a] sm:$0xff]
    %v1711 = vld [vmem:[%s1678 + $0x4a] sm:$0xff]
    %v1712 = vld [vmem:[%s1678 + $0x52] sm:$0xff]
    %v1713 = vstv %s1704
    %v1714 = vmul.f32 %v1705, %v1713
    %v1715 = vmul.f32 %v1706, %v1713
    %v1716 = vmul.f32 %v1707, %v1713
    %v1717 = vmul.f32 %v1708, %v1713
    %v1718 = vmul.f32 %v1709, %v1713
    %v1719 = vmul.f32 %v1710, %v1713
    %v1720 = vmul.f32 %v1711, %v1713
    %v1721 = vmul.f32 %v1712, %v1713
    %v1722 = vadd.f32 %v1696, %v1714
    %v1723 = vadd.f32 %v1697, %v1715
    %v1724 = vadd.f32 %v1698, %v1716
    %v1725 = vadd.f32 %v1699, %v1717
    %v1726 = vadd.f32 %v1700, %v1718
    %v1727 = vadd.f32 %v1701, %v1719
    %v1728 = vadd.f32 %v1702, %v1720
    %v1729 = vadd.f32 %v1703, %v1721
    %s1730 = sld [smem:[#allocation2 + $0x11]]
    %v1731 = vld [vmem:[%s1678 + $0x3] sm:$0xff]
    %v1732 = vld [vmem:[%s1678 + $0xb] sm:$0xff]
    %v1733 = vld [vmem:[%s1678 + $0x1b] sm:$0xff]
    %v1734 = vld [vmem:[%s1678 + $0x23] sm:$0xff]
    %v1735 = vld [vmem:[%s1678 + $0x33] sm:$0xff]
    %v1736 = vld [vmem:[%s1678 + $0x3b] sm:$0xff]
    %v1737 = vld [vmem:[%s1678 + $0x4b] sm:$0xff]
    %v1738 = vld [vmem:[%s1678 + $0x53] sm:$0xff]
    %v1739 = vstv %s1730
    %v1740 = vmul.f32 %v1731, %v1739
    %v1741 = vmul.f32 %v1732, %v1739
    %v1742 = vmul.f32 %v1733, %v1739
    %v1743 = vmul.f32 %v1734, %v1739
    %v1744 = vmul.f32 %v1735, %v1739
    %v1745 = vmul.f32 %v1736, %v1739
    %v1746 = vmul.f32 %v1737, %v1739
    %v1747 = vmul.f32 %v1738, %v1739
    %v1748 = vadd.f32 %v1722, %v1740
    %v1749 = vadd.f32 %v1723, %v1741
    %v1750 = vadd.f32 %v1724, %v1742
    %v1751 = vadd.f32 %v1725, %v1743
    %v1752 = vadd.f32 %v1726, %v1744
    %v1753 = vadd.f32 %v1727, %v1745
    %v1754 = vadd.f32 %v1728, %v1746
    %v1755 = vadd.f32 %v1729, %v1747
    %s1756 = scalar_lea.vmem %s2, 640
    %1757 = vst [vmem:[%s1756] sm:$0xff] %v1748
    %1758 = vst [vmem:[%s1756 + $0x8] sm:$0xff] %v1749
    %1759 = vst [vmem:[%s1756 + $0x10] sm:$0xff] %v1750
    %1760 = vst [vmem:[%s1756 + $0x18] sm:$0xff] %v1751
    %1761 = vst [vmem:[%s1756 + $0x20] sm:$0xff] %v1752
    %1762 = vst [vmem:[%s1756 + $0x28] sm:$0xff] %v1753
    %1763 = vst [vmem:[%s1756 + $0x30] sm:$0xff] %v1754
    %1764 = vst [vmem:[%s1756 + $0x38] sm:$0xff] %v1755
    %s1765 = sld [smem:[#allocation2 + $0xc]]
    %v1766 = vld [vmem:[%s572 + $0x1] sm:$0xff]
    %v1767 = vld [vmem:[%s572 + $0x9] sm:$0xff]
    %v1768 = vld [vmem:[%s572 + $0x19] sm:$0xff]
    %v1769 = vld [vmem:[%s572 + $0x21] sm:$0xff]
    %v1770 = vld [vmem:[%s572 + $0x31] sm:$0xff]
    %v1771 = vld [vmem:[%s572 + $0x39] sm:$0xff]
    %v1772 = vld [vmem:[%s572 + $0x49] sm:$0xff]
    %v1773 = vld [vmem:[%s572 + $0x51] sm:$0xff]
    %v1774 = vstv %s1765
    %v1775 = vmul.f32 %v1766, %v1774
    %v1776 = vmul.f32 %v1767, %v1774
    %v1777 = vmul.f32 %v1768, %v1774
    %v1778 = vmul.f32 %v1769, %v1774
    %v1779 = vmul.f32 %v1770, %v1774
    %v1780 = vmul.f32 %v1771, %v1774
    %v1781 = vmul.f32 %v1772, %v1774
    %v1782 = vmul.f32 %v1773, %v1774
    %s1783 = sld [smem:[#allocation2 + $0xd]]
    %v1784 = vld [vmem:[%s572 + $0x2] sm:$0xff]
    %v1785 = vld [vmem:[%s572 + $0xa] sm:$0xff]
    %v1786 = vld [vmem:[%s572 + $0x1a] sm:$0xff]
    %v1787 = vld [vmem:[%s572 + $0x22] sm:$0xff]
    %v1788 = vld [vmem:[%s572 + $0x32] sm:$0xff]
    %v1789 = vld [vmem:[%s572 + $0x3a] sm:$0xff]
    %v1790 = vld [vmem:[%s572 + $0x4a] sm:$0xff]
    %v1791 = vld [vmem:[%s572 + $0x52] sm:$0xff]
    %v1792 = vstv %s1783
    %v1793 = vmul.f32 %v1784, %v1792
    %v1794 = vmul.f32 %v1785, %v1792
    %v1795 = vmul.f32 %v1786, %v1792
    %v1796 = vmul.f32 %v1787, %v1792
    %v1797 = vmul.f32 %v1788, %v1792
    %v1798 = vmul.f32 %v1789, %v1792
    %v1799 = vmul.f32 %v1790, %v1792
    %v1800 = vmul.f32 %v1791, %v1792
    %v1801 = vadd.f32 %v1775, %v1793
    %v1802 = vadd.f32 %v1776, %v1794
    %v1803 = vadd.f32 %v1777, %v1795
    %v1804 = vadd.f32 %v1778, %v1796
    %v1805 = vadd.f32 %v1779, %v1797
    %v1806 = vadd.f32 %v1780, %v1798
    %v1807 = vadd.f32 %v1781, %v1799
    %v1808 = vadd.f32 %v1782, %v1800
    %s1809 = sld [smem:[#allocation2 + $0xe]]
    %v1810 = vld [vmem:[%s572 + $0x3] sm:$0xff]
    %v1811 = vld [vmem:[%s572 + $0xb] sm:$0xff]
    %v1812 = vld [vmem:[%s572 + $0x1b] sm:$0xff]
    %v1813 = vld [vmem:[%s572 + $0x23] sm:$0xff]
    %v1814 = vld [vmem:[%s572 + $0x33] sm:$0xff]
    %v1815 = vld [vmem:[%s572 + $0x3b] sm:$0xff]
    %v1816 = vld [vmem:[%s572 + $0x4b] sm:$0xff]
    %v1817 = vld [vmem:[%s572 + $0x53] sm:$0xff]
    %v1818 = vstv %s1809
    %v1819 = vmul.f32 %v1810, %v1818
    %v1820 = vmul.f32 %v1811, %v1818
    %v1821 = vmul.f32 %v1812, %v1818
    %v1822 = vmul.f32 %v1813, %v1818
    %v1823 = vmul.f32 %v1814, %v1818
    %v1824 = vmul.f32 %v1815, %v1818
    %v1825 = vmul.f32 %v1816, %v1818
    %v1826 = vmul.f32 %v1817, %v1818
    %v1827 = vadd.f32 %v1801, %v1819
    %v1828 = vadd.f32 %v1802, %v1820
    %v1829 = vadd.f32 %v1803, %v1821
    %v1830 = vadd.f32 %v1804, %v1822
    %v1831 = vadd.f32 %v1805, %v1823
    %v1832 = vadd.f32 %v1806, %v1824
    %v1833 = vadd.f32 %v1807, %v1825
    %v1834 = vadd.f32 %v1808, %v1826
    %s1835 = sld [smem:[#allocation2 + $0xf]]
    %s1836 = scalar_lea.vmem %s1, 384
    %v1837 = vld [vmem:[%s1836 + $0x1] sm:$0xff]
    %v1838 = vld [vmem:[%s1836 + $0x9] sm:$0xff]
    %v1839 = vld [vmem:[%s1836 + $0x19] sm:$0xff]
    %v1840 = vld [vmem:[%s1836 + $0x21] sm:$0xff]
    %v1841 = vld [vmem:[%s1836 + $0x31] sm:$0xff]
    %v1842 = vld [vmem:[%s1836 + $0x39] sm:$0xff]
    %v1843 = vld [vmem:[%s1836 + $0x49] sm:$0xff]
    %v1844 = vld [vmem:[%s1836 + $0x51] sm:$0xff]
    %v1845 = vstv %s1835
    %v1846 = vmul.f32 %v1837, %v1845
    %v1847 = vmul.f32 %v1838, %v1845
    %v1848 = vmul.f32 %v1839, %v1845
    %v1849 = vmul.f32 %v1840, %v1845
    %v1850 = vmul.f32 %v1841, %v1845
    %v1851 = vmul.f32 %v1842, %v1845
    %v1852 = vmul.f32 %v1843, %v1845
    %v1853 = vmul.f32 %v1844, %v1845
    %v1854 = vadd.f32 %v1827, %v1846
    %v1855 = vadd.f32 %v1828, %v1847
    %v1856 = vadd.f32 %v1829, %v1848
    %v1857 = vadd.f32 %v1830, %v1849
    %v1858 = vadd.f32 %v1831, %v1850
    %v1859 = vadd.f32 %v1832, %v1851
    %v1860 = vadd.f32 %v1833, %v1852
    %v1861 = vadd.f32 %v1834, %v1853
    %s1862 = sld [smem:[#allocation2 + $0x10]]
    %v1863 = vld [vmem:[%s1836 + $0x2] sm:$0xff]
    %v1864 = vld [vmem:[%s1836 + $0xa] sm:$0xff]
    %v1865 = vld [vmem:[%s1836 + $0x1a] sm:$0xff]
    %v1866 = vld [vmem:[%s1836 + $0x22] sm:$0xff]
    %v1867 = vld [vmem:[%s1836 + $0x32] sm:$0xff]
    %v1868 = vld [vmem:[%s1836 + $0x3a] sm:$0xff]
    %v1869 = vld [vmem:[%s1836 + $0x4a] sm:$0xff]
    %v1870 = vld [vmem:[%s1836 + $0x52] sm:$0xff]
    %v1871 = vstv %s1862
    %v1872 = vmul.f32 %v1863, %v1871
    %v1873 = vmul.f32 %v1864, %v1871
    %v1874 = vmul.f32 %v1865, %v1871
    %v1875 = vmul.f32 %v1866, %v1871
    %v1876 = vmul.f32 %v1867, %v1871
    %v1877 = vmul.f32 %v1868, %v1871
    %v1878 = vmul.f32 %v1869, %v1871
    %v1879 = vmul.f32 %v1870, %v1871
    %v1880 = vadd.f32 %v1854, %v1872
    %v1881 = vadd.f32 %v1855, %v1873
    %v1882 = vadd.f32 %v1856, %v1874
    %v1883 = vadd.f32 %v1857, %v1875
    %v1884 = vadd.f32 %v1858, %v1876
    %v1885 = vadd.f32 %v1859, %v1877
    %v1886 = vadd.f32 %v1860, %v1878
    %v1887 = vadd.f32 %v1861, %v1879
    %s1888 = sld [smem:[#allocation2 + $0x11]]
    %v1889 = vld [vmem:[%s1836 + $0x3] sm:$0xff]
    %v1890 = vld [vmem:[%s1836 + $0xb] sm:$0xff]
    %v1891 = vld [vmem:[%s1836 + $0x1b] sm:$0xff]
    %v1892 = vld [vmem:[%s1836 + $0x23] sm:$0xff]
    %v1893 = vld [vmem:[%s1836 + $0x33] sm:$0xff]
    %v1894 = vld [vmem:[%s1836 + $0x3b] sm:$0xff]
    %v1895 = vld [vmem:[%s1836 + $0x4b] sm:$0xff]
    %v1896 = vld [vmem:[%s1836 + $0x53] sm:$0xff]
    %v1897 = vstv %s1888
    %v1898 = vmul.f32 %v1889, %v1897
    %v1899 = vmul.f32 %v1890, %v1897
    %v1900 = vmul.f32 %v1891, %v1897
    %v1901 = vmul.f32 %v1892, %v1897
    %v1902 = vmul.f32 %v1893, %v1897
    %v1903 = vmul.f32 %v1894, %v1897
    %v1904 = vmul.f32 %v1895, %v1897
    %v1905 = vmul.f32 %v1896, %v1897
    %v1906 = vadd.f32 %v1880, %v1898
    %v1907 = vadd.f32 %v1881, %v1899
    %v1908 = vadd.f32 %v1882, %v1900
    %v1909 = vadd.f32 %v1883, %v1901
    %v1910 = vadd.f32 %v1884, %v1902
    %v1911 = vadd.f32 %v1885, %v1903
    %v1912 = vadd.f32 %v1886, %v1904
    %v1913 = vadd.f32 %v1887, %v1905
    %s1914 = scalar_lea.vmem %s2, 704
    %1915 = vst [vmem:[%s1914] sm:$0xff] %v1906
    %1916 = vst [vmem:[%s1914 + $0x8] sm:$0xff] %v1907
    %1917 = vst [vmem:[%s1914 + $0x10] sm:$0xff] %v1908
    %1918 = vst [vmem:[%s1914 + $0x18] sm:$0xff] %v1909
    %1919 = vst [vmem:[%s1914 + $0x20] sm:$0xff] %v1910
    %1920 = vst [vmem:[%s1914 + $0x28] sm:$0xff] %v1911
    %1921 = vst [vmem:[%s1914 + $0x30] sm:$0xff] %v1912
    %1922 = vst [vmem:[%s1914 + $0x38] sm:$0xff] %v1913
    %s1923 = sld [smem:[#allocation2 + $0x12]]
    %v1924 = vld [vmem:[%s1 + $0x4] sm:$0xff]
    %v1925 = vld [vmem:[%s1 + $0xc] sm:$0xff]
    %v1926 = vld [vmem:[%s1 + $0x1c] sm:$0xff]
    %v1927 = vld [vmem:[%s1 + $0x24] sm:$0xff]
    %v1928 = vld [vmem:[%s1 + $0x34] sm:$0xff]
    %v1929 = vld [vmem:[%s1 + $0x3c] sm:$0xff]
    %v1930 = vld [vmem:[%s1 + $0x4c] sm:$0xff]
    %v1931 = vld [vmem:[%s1 + $0x54] sm:$0xff]
    %v1932 = vstv %s1923
    %v1933 = vmul.f32 %v1924, %v1932
    %v1934 = vmul.f32 %v1925, %v1932
    %v1935 = vmul.f32 %v1926, %v1932
    %v1936 = vmul.f32 %v1927, %v1932
    %v1937 = vmul.f32 %v1928, %v1932
    %v1938 = vmul.f32 %v1929, %v1932
    %v1939 = vmul.f32 %v1930, %v1932
    %v1940 = vmul.f32 %v1931, %v1932
    %s1941 = sld [smem:[#allocation2 + $0x13]]
    %v1942 = vld [vmem:[%s1 + $0x5] sm:$0xff]
    %v1943 = vld [vmem:[%s1 + $0xd] sm:$0xff]
    %v1944 = vld [vmem:[%s1 + $0x1d] sm:$0xff]
    %v1945 = vld [vmem:[%s1 + $0x25] sm:$0xff]
    %v1946 = vld [vmem:[%s1 + $0x35] sm:$0xff]
    %v1947 = vld [vmem:[%s1 + $0x3d] sm:$0xff]
    %v1948 = vld [vmem:[%s1 + $0x4d] sm:$0xff]
    %v1949 = vld [vmem:[%s1 + $0x55] sm:$0xff]
    %v1950 = vstv %s1941
    %v1951 = vmul.f32 %v1942, %v1950
    %v1952 = vmul.f32 %v1943, %v1950
    %v1953 = vmul.f32 %v1944, %v1950
    %v1954 = vmul.f32 %v1945, %v1950
    %v1955 = vmul.f32 %v1946, %v1950
    %v1956 = vmul.f32 %v1947, %v1950
    %v1957 = vmul.f32 %v1948, %v1950
    %v1958 = vmul.f32 %v1949, %v1950
    %v1959 = vadd.f32 %v1933, %v1951
    %v1960 = vadd.f32 %v1934, %v1952
    %v1961 = vadd.f32 %v1935, %v1953
    %v1962 = vadd.f32 %v1936, %v1954
    %v1963 = vadd.f32 %v1937, %v1955
    %v1964 = vadd.f32 %v1938, %v1956
    %v1965 = vadd.f32 %v1939, %v1957
    %v1966 = vadd.f32 %v1940, %v1958
    %s1967 = sld [smem:[#allocation2 + $0x14]]
    %v1968 = vld [vmem:[%s1 + $0x6] sm:$0xff]
    %v1969 = vld [vmem:[%s1 + $0xe] sm:$0xff]
    %v1970 = vld [vmem:[%s1 + $0x1e] sm:$0xff]
    %v1971 = vld [vmem:[%s1 + $0x26] sm:$0xff]
    %v1972 = vld [vmem:[%s1 + $0x36] sm:$0xff]
    %v1973 = vld [vmem:[%s1 + $0x3e] sm:$0xff]
    %v1974 = vld [vmem:[%s1 + $0x4e] sm:$0xff]
    %v1975 = vld [vmem:[%s1 + $0x56] sm:$0xff]
    %v1976 = vstv %s1967
    %v1977 = vmul.f32 %v1968, %v1976
    %v1978 = vmul.f32 %v1969, %v1976
    %v1979 = vmul.f32 %v1970, %v1976
    %v1980 = vmul.f32 %v1971, %v1976
    %v1981 = vmul.f32 %v1972, %v1976
    %v1982 = vmul.f32 %v1973, %v1976
    %v1983 = vmul.f32 %v1974, %v1976
    %v1984 = vmul.f32 %v1975, %v1976
    %v1985 = vadd.f32 %v1959, %v1977
    %v1986 = vadd.f32 %v1960, %v1978
    %v1987 = vadd.f32 %v1961, %v1979
    %v1988 = vadd.f32 %v1962, %v1980
    %v1989 = vadd.f32 %v1963, %v1981
    %v1990 = vadd.f32 %v1964, %v1982
    %v1991 = vadd.f32 %v1965, %v1983
    %v1992 = vadd.f32 %v1966, %v1984
    %s1993 = sld [smem:[#allocation2 + $0x15]]
    %v1994 = vld [vmem:[%s660 + $0x4] sm:$0xff]
    %v1995 = vld [vmem:[%s660 + $0xc] sm:$0xff]
    %v1996 = vld [vmem:[%s660 + $0x1c] sm:$0xff]
    %v1997 = vld [vmem:[%s660 + $0x24] sm:$0xff]
    %v1998 = vld [vmem:[%s660 + $0x34] sm:$0xff]
    %v1999 = vld [vmem:[%s660 + $0x3c] sm:$0xff]
    %v2000 = vld [vmem:[%s660 + $0x4c] sm:$0xff]
    %v2001 = vld [vmem:[%s660 + $0x54] sm:$0xff]
    %v2002 = vstv %s1993
    %v2003 = vmul.f32 %v1994, %v2002
    %v2004 = vmul.f32 %v1995, %v2002
    %v2005 = vmul.f32 %v1996, %v2002
    %v2006 = vmul.f32 %v1997, %v2002
    %v2007 = vmul.f32 %v1998, %v2002
    %v2008 = vmul.f32 %v1999, %v2002
    %v2009 = vmul.f32 %v2000, %v2002
    %v2010 = vmul.f32 %v2001, %v2002
    %v2011 = vadd.f32 %v1985, %v2003
    %v2012 = vadd.f32 %v1986, %v2004
    %v2013 = vadd.f32 %v1987, %v2005
    %v2014 = vadd.f32 %v1988, %v2006
    %v2015 = vadd.f32 %v1989, %v2007
    %v2016 = vadd.f32 %v1990, %v2008
    %v2017 = vadd.f32 %v1991, %v2009
    %v2018 = vadd.f32 %v1992, %v2010
    %s2019 = sld [smem:[#allocation2 + $0x16]]
    %v2020 = vld [vmem:[%s660 + $0x5] sm:$0xff]
    %v2021 = vld [vmem:[%s660 + $0xd] sm:$0xff]
    %v2022 = vld [vmem:[%s660 + $0x1d] sm:$0xff]
    %v2023 = vld [vmem:[%s660 + $0x25] sm:$0xff]
    %v2024 = vld [vmem:[%s660 + $0x35] sm:$0xff]
    %v2025 = vld [vmem:[%s660 + $0x3d] sm:$0xff]
    %v2026 = vld [vmem:[%s660 + $0x4d] sm:$0xff]
    %v2027 = vld [vmem:[%s660 + $0x55] sm:$0xff]
    %v2028 = vstv %s2019
    %v2029 = vmul.f32 %v2020, %v2028
    %v2030 = vmul.f32 %v2021, %v2028
    %v2031 = vmul.f32 %v2022, %v2028
    %v2032 = vmul.f32 %v2023, %v2028
    %v2033 = vmul.f32 %v2024, %v2028
    %v2034 = vmul.f32 %v2025, %v2028
    %v2035 = vmul.f32 %v2026, %v2028
    %v2036 = vmul.f32 %v2027, %v2028
    %v2037 = vadd.f32 %v2011, %v2029
    %v2038 = vadd.f32 %v2012, %v2030
    %v2039 = vadd.f32 %v2013, %v2031
    %v2040 = vadd.f32 %v2014, %v2032
    %v2041 = vadd.f32 %v2015, %v2033
    %v2042 = vadd.f32 %v2016, %v2034
    %v2043 = vadd.f32 %v2017, %v2035
    %v2044 = vadd.f32 %v2018, %v2036
    %s2045 = sld [smem:[#allocation2 + $0x17]]
    %v2046 = vld [vmem:[%s660 + $0x6] sm:$0xff]
    %v2047 = vld [vmem:[%s660 + $0xe] sm:$0xff]
    %v2048 = vld [vmem:[%s660 + $0x1e] sm:$0xff]
    %v2049 = vld [vmem:[%s660 + $0x26] sm:$0xff]
    %v2050 = vld [vmem:[%s660 + $0x36] sm:$0xff]
    %v2051 = vld [vmem:[%s660 + $0x3e] sm:$0xff]
    %v2052 = vld [vmem:[%s660 + $0x4e] sm:$0xff]
    %v2053 = vld [vmem:[%s660 + $0x56] sm:$0xff]
    %v2054 = vstv %s2045
    %v2055 = vmul.f32 %v2046, %v2054
    %v2056 = vmul.f32 %v2047, %v2054
    %v2057 = vmul.f32 %v2048, %v2054
    %v2058 = vmul.f32 %v2049, %v2054
    %v2059 = vmul.f32 %v2050, %v2054
    %v2060 = vmul.f32 %v2051, %v2054
    %v2061 = vmul.f32 %v2052, %v2054
    %v2062 = vmul.f32 %v2053, %v2054
    %v2063 = vadd.f32 %v2037, %v2055
    %v2064 = vadd.f32 %v2038, %v2056
    %v2065 = vadd.f32 %v2039, %v2057
    %v2066 = vadd.f32 %v2040, %v2058
    %v2067 = vadd.f32 %v2041, %v2059
    %v2068 = vadd.f32 %v2042, %v2060
    %v2069 = vadd.f32 %v2043, %v2061
    %v2070 = vadd.f32 %v2044, %v2062
    %s2071 = scalar_lea.vmem %s2, 768
    %2072 = vst [vmem:[%s2071] sm:$0xff] %v2063
    %2073 = vst [vmem:[%s2071 + $0x8] sm:$0xff] %v2064
    %2074 = vst [vmem:[%s2071 + $0x10] sm:$0xff] %v2065
    %2075 = vst [vmem:[%s2071 + $0x18] sm:$0xff] %v2066
    %2076 = vst [vmem:[%s2071 + $0x20] sm:$0xff] %v2067
    %2077 = vst [vmem:[%s2071 + $0x28] sm:$0xff] %v2068
    %2078 = vst [vmem:[%s2071 + $0x30] sm:$0xff] %v2069
    %2079 = vst [vmem:[%s2071 + $0x38] sm:$0xff] %v2070
    %s2080 = sld [smem:[#allocation2 + $0x12]]
    %v2081 = vld [vmem:[%s1362 + $0x4] sm:$0xff]
    %v2082 = vld [vmem:[%s1362 + $0xc] sm:$0xff]
    %v2083 = vld [vmem:[%s1362 + $0x1c] sm:$0xff]
    %v2084 = vld [vmem:[%s1362 + $0x24] sm:$0xff]
    %v2085 = vld [vmem:[%s1362 + $0x34] sm:$0xff]
    %v2086 = vld [vmem:[%s1362 + $0x3c] sm:$0xff]
    %v2087 = vld [vmem:[%s1362 + $0x4c] sm:$0xff]
    %v2088 = vld [vmem:[%s1362 + $0x54] sm:$0xff]
    %v2089 = vstv %s2080
    %v2090 = vmul.f32 %v2081, %v2089
    %v2091 = vmul.f32 %v2082, %v2089
    %v2092 = vmul.f32 %v2083, %v2089
    %v2093 = vmul.f32 %v2084, %v2089
    %v2094 = vmul.f32 %v2085, %v2089
    %v2095 = vmul.f32 %v2086, %v2089
    %v2096 = vmul.f32 %v2087, %v2089
    %v2097 = vmul.f32 %v2088, %v2089
    %s2098 = sld [smem:[#allocation2 + $0x13]]
    %v2099 = vld [vmem:[%s1362 + $0x5] sm:$0xff]
    %v2100 = vld [vmem:[%s1362 + $0xd] sm:$0xff]
    %v2101 = vld [vmem:[%s1362 + $0x1d] sm:$0xff]
    %v2102 = vld [vmem:[%s1362 + $0x25] sm:$0xff]
    %v2103 = vld [vmem:[%s1362 + $0x35] sm:$0xff]
    %v2104 = vld [vmem:[%s1362 + $0x3d] sm:$0xff]
    %v2105 = vld [vmem:[%s1362 + $0x4d] sm:$0xff]
    %v2106 = vld [vmem:[%s1362 + $0x55] sm:$0xff]
    %v2107 = vstv %s2098
    %v2108 = vmul.f32 %v2099, %v2107
    %v2109 = vmul.f32 %v2100, %v2107
    %v2110 = vmul.f32 %v2101, %v2107
    %v2111 = vmul.f32 %v2102, %v2107
    %v2112 = vmul.f32 %v2103, %v2107
    %v2113 = vmul.f32 %v2104, %v2107
    %v2114 = vmul.f32 %v2105, %v2107
    %v2115 = vmul.f32 %v2106, %v2107
    %v2116 = vadd.f32 %v2090, %v2108
    %v2117 = vadd.f32 %v2091, %v2109
    %v2118 = vadd.f32 %v2092, %v2110
    %v2119 = vadd.f32 %v2093, %v2111
    %v2120 = vadd.f32 %v2094, %v2112
    %v2121 = vadd.f32 %v2095, %v2113
    %v2122 = vadd.f32 %v2096, %v2114
    %v2123 = vadd.f32 %v2097, %v2115
    %s2124 = sld [smem:[#allocation2 + $0x14]]
    %v2125 = vld [vmem:[%s1362 + $0x6] sm:$0xff]
    %v2126 = vld [vmem:[%s1362 + $0xe] sm:$0xff]
    %v2127 = vld [vmem:[%s1362 + $0x1e] sm:$0xff]
    %v2128 = vld [vmem:[%s1362 + $0x26] sm:$0xff]
    %v2129 = vld [vmem:[%s1362 + $0x36] sm:$0xff]
    %v2130 = vld [vmem:[%s1362 + $0x3e] sm:$0xff]
    %v2131 = vld [vmem:[%s1362 + $0x4e] sm:$0xff]
    %v2132 = vld [vmem:[%s1362 + $0x56] sm:$0xff]
    %v2133 = vstv %s2124
    %v2134 = vmul.f32 %v2125, %v2133
    %v2135 = vmul.f32 %v2126, %v2133
    %v2136 = vmul.f32 %v2127, %v2133
    %v2137 = vmul.f32 %v2128, %v2133
    %v2138 = vmul.f32 %v2129, %v2133
    %v2139 = vmul.f32 %v2130, %v2133
    %v2140 = vmul.f32 %v2131, %v2133
    %v2141 = vmul.f32 %v2132, %v2133
    %v2142 = vadd.f32 %v2116, %v2134
    %v2143 = vadd.f32 %v2117, %v2135
    %v2144 = vadd.f32 %v2118, %v2136
    %v2145 = vadd.f32 %v2119, %v2137
    %v2146 = vadd.f32 %v2120, %v2138
    %v2147 = vadd.f32 %v2121, %v2139
    %v2148 = vadd.f32 %v2122, %v2140
    %v2149 = vadd.f32 %v2123, %v2141
    %s2150 = sld [smem:[#allocation2 + $0x15]]
    %v2151 = vld [vmem:[%s818 + $0x4] sm:$0xff]
    %v2152 = vld [vmem:[%s818 + $0xc] sm:$0xff]
    %v2153 = vld [vmem:[%s818 + $0x1c] sm:$0xff]
    %v2154 = vld [vmem:[%s818 + $0x24] sm:$0xff]
    %v2155 = vld [vmem:[%s818 + $0x34] sm:$0xff]
    %v2156 = vld [vmem:[%s818 + $0x3c] sm:$0xff]
    %v2157 = vld [vmem:[%s818 + $0x4c] sm:$0xff]
    %v2158 = vld [vmem:[%s818 + $0x54] sm:$0xff]
    %v2159 = vstv %s2150
    %v2160 = vmul.f32 %v2151, %v2159
    %v2161 = vmul.f32 %v2152, %v2159
    %v2162 = vmul.f32 %v2153, %v2159
    %v2163 = vmul.f32 %v2154, %v2159
    %v2164 = vmul.f32 %v2155, %v2159
    %v2165 = vmul.f32 %v2156, %v2159
    %v2166 = vmul.f32 %v2157, %v2159
    %v2167 = vmul.f32 %v2158, %v2159
    %v2168 = vadd.f32 %v2142, %v2160
    %v2169 = vadd.f32 %v2143, %v2161
    %v2170 = vadd.f32 %v2144, %v2162
    %v2171 = vadd.f32 %v2145, %v2163
    %v2172 = vadd.f32 %v2146, %v2164
    %v2173 = vadd.f32 %v2147, %v2165
    %v2174 = vadd.f32 %v2148, %v2166
    %v2175 = vadd.f32 %v2149, %v2167
    %s2176 = sld [smem:[#allocation2 + $0x16]]
    %v2177 = vld [vmem:[%s818 + $0x5] sm:$0xff]
    %v2178 = vld [vmem:[%s818 + $0xd] sm:$0xff]
    %v2179 = vld [vmem:[%s818 + $0x1d] sm:$0xff]
    %v2180 = vld [vmem:[%s818 + $0x25] sm:$0xff]
    %v2181 = vld [vmem:[%s818 + $0x35] sm:$0xff]
    %v2182 = vld [vmem:[%s818 + $0x3d] sm:$0xff]
    %v2183 = vld [vmem:[%s818 + $0x4d] sm:$0xff]
    %v2184 = vld [vmem:[%s818 + $0x55] sm:$0xff]
    %v2185 = vstv %s2176
    %v2186 = vmul.f32 %v2177, %v2185
    %v2187 = vmul.f32 %v2178, %v2185
    %v2188 = vmul.f32 %v2179, %v2185
    %v2189 = vmul.f32 %v2180, %v2185
    %v2190 = vmul.f32 %v2181, %v2185
    %v2191 = vmul.f32 %v2182, %v2185
    %v2192 = vmul.f32 %v2183, %v2185
    %v2193 = vmul.f32 %v2184, %v2185
    %v2194 = vadd.f32 %v2168, %v2186
    %v2195 = vadd.f32 %v2169, %v2187
    %v2196 = vadd.f32 %v2170, %v2188
    %v2197 = vadd.f32 %v2171, %v2189
    %v2198 = vadd.f32 %v2172, %v2190
    %v2199 = vadd.f32 %v2173, %v2191
    %v2200 = vadd.f32 %v2174, %v2192
    %v2201 = vadd.f32 %v2175, %v2193
    %s2202 = sld [smem:[#allocation2 + $0x17]]
    %v2203 = vld [vmem:[%s818 + $0x6] sm:$0xff]
    %v2204 = vld [vmem:[%s818 + $0xe] sm:$0xff]
    %v2205 = vld [vmem:[%s818 + $0x1e] sm:$0xff]
    %v2206 = vld [vmem:[%s818 + $0x26] sm:$0xff]
    %v2207 = vld [vmem:[%s818 + $0x36] sm:$0xff]
    %v2208 = vld [vmem:[%s818 + $0x3e] sm:$0xff]
    %v2209 = vld [vmem:[%s818 + $0x4e] sm:$0xff]
    %v2210 = vld [vmem:[%s818 + $0x56] sm:$0xff]
    %v2211 = vstv %s2202
    %v2212 = vmul.f32 %v2203, %v2211
    %v2213 = vmul.f32 %v2204, %v2211
    %v2214 = vmul.f32 %v2205, %v2211
    %v2215 = vmul.f32 %v2206, %v2211
    %v2216 = vmul.f32 %v2207, %v2211
    %v2217 = vmul.f32 %v2208, %v2211
    %v2218 = vmul.f32 %v2209, %v2211
    %v2219 = vmul.f32 %v2210, %v2211
    %v2220 = vadd.f32 %v2194, %v2212
    %v2221 = vadd.f32 %v2195, %v2213
    %v2222 = vadd.f32 %v2196, %v2214
    %v2223 = vadd.f32 %v2197, %v2215
    %v2224 = vadd.f32 %v2198, %v2216
    %v2225 = vadd.f32 %v2199, %v2217
    %v2226 = vadd.f32 %v2200, %v2218
    %v2227 = vadd.f32 %v2201, %v2219
    %s2228 = scalar_lea.vmem %s2, 832
    %2229 = vst [vmem:[%s2228] sm:$0xff] %v2220
    %2230 = vst [vmem:[%s2228 + $0x8] sm:$0xff] %v2221
    %2231 = vst [vmem:[%s2228 + $0x10] sm:$0xff] %v2222
    %2232 = vst [vmem:[%s2228 + $0x18] sm:$0xff] %v2223
    %2233 = vst [vmem:[%s2228 + $0x20] sm:$0xff] %v2224
    %2234 = vst [vmem:[%s2228 + $0x28] sm:$0xff] %v2225
    %2235 = vst [vmem:[%s2228 + $0x30] sm:$0xff] %v2226
    %2236 = vst [vmem:[%s2228 + $0x38] sm:$0xff] %v2227
    %s2237 = sld [smem:[#allocation2 + $0x12]]
    %v2238 = vld [vmem:[%s1520 + $0x4] sm:$0xff]
    %v2239 = vld [vmem:[%s1520 + $0xc] sm:$0xff]
    %v2240 = vld [vmem:[%s1520 + $0x1c] sm:$0xff]
    %v2241 = vld [vmem:[%s1520 + $0x24] sm:$0xff]
    %v2242 = vld [vmem:[%s1520 + $0x34] sm:$0xff]
    %v2243 = vld [vmem:[%s1520 + $0x3c] sm:$0xff]
    %v2244 = vld [vmem:[%s1520 + $0x4c] sm:$0xff]
    %v2245 = vld [vmem:[%s1520 + $0x54] sm:$0xff]
    %v2246 = vstv %s2237
    %v2247 = vmul.f32 %v2238, %v2246
    %v2248 = vmul.f32 %v2239, %v2246
    %v2249 = vmul.f32 %v2240, %v2246
    %v2250 = vmul.f32 %v2241, %v2246
    %v2251 = vmul.f32 %v2242, %v2246
    %v2252 = vmul.f32 %v2243, %v2246
    %v2253 = vmul.f32 %v2244, %v2246
    %v2254 = vmul.f32 %v2245, %v2246
    %s2255 = sld [smem:[#allocation2 + $0x13]]
    %v2256 = vld [vmem:[%s1520 + $0x5] sm:$0xff]
    %v2257 = vld [vmem:[%s1520 + $0xd] sm:$0xff]
    %v2258 = vld [vmem:[%s1520 + $0x1d] sm:$0xff]
    %v2259 = vld [vmem:[%s1520 + $0x25] sm:$0xff]
    %v2260 = vld [vmem:[%s1520 + $0x35] sm:$0xff]
    %v2261 = vld [vmem:[%s1520 + $0x3d] sm:$0xff]
    %v2262 = vld [vmem:[%s1520 + $0x4d] sm:$0xff]
    %v2263 = vld [vmem:[%s1520 + $0x55] sm:$0xff]
    %v2264 = vstv %s2255
    %v2265 = vmul.f32 %v2256, %v2264
    %v2266 = vmul.f32 %v2257, %v2264
    %v2267 = vmul.f32 %v2258, %v2264
    %v2268 = vmul.f32 %v2259, %v2264
    %v2269 = vmul.f32 %v2260, %v2264
    %v2270 = vmul.f32 %v2261, %v2264
    %v2271 = vmul.f32 %v2262, %v2264
    %v2272 = vmul.f32 %v2263, %v2264
    %v2273 = vadd.f32 %v2247, %v2265
    %v2274 = vadd.f32 %v2248, %v2266
    %v2275 = vadd.f32 %v2249, %v2267
    %v2276 = vadd.f32 %v2250, %v2268
    %v2277 = vadd.f32 %v2251, %v2269
    %v2278 = vadd.f32 %v2252, %v2270
    %v2279 = vadd.f32 %v2253, %v2271
    %v2280 = vadd.f32 %v2254, %v2272
    %s2281 = sld [smem:[#allocation2 + $0x14]]
    %v2282 = vld [vmem:[%s1520 + $0x6] sm:$0xff]
    %v2283 = vld [vmem:[%s1520 + $0xe] sm:$0xff]
    %v2284 = vld [vmem:[%s1520 + $0x1e] sm:$0xff]
    %v2285 = vld [vmem:[%s1520 + $0x26] sm:$0xff]
    %v2286 = vld [vmem:[%s1520 + $0x36] sm:$0xff]
    %v2287 = vld [vmem:[%s1520 + $0x3e] sm:$0xff]
    %v2288 = vld [vmem:[%s1520 + $0x4e] sm:$0xff]
    %v2289 = vld [vmem:[%s1520 + $0x56] sm:$0xff]
    %v2290 = vstv %s2281
    %v2291 = vmul.f32 %v2282, %v2290
    %v2292 = vmul.f32 %v2283, %v2290
    %v2293 = vmul.f32 %v2284, %v2290
    %v2294 = vmul.f32 %v2285, %v2290
    %v2295 = vmul.f32 %v2286, %v2290
    %v2296 = vmul.f32 %v2287, %v2290
    %v2297 = vmul.f32 %v2288, %v2290
    %v2298 = vmul.f32 %v2289, %v2290
    %v2299 = vadd.f32 %v2273, %v2291
    %v2300 = vadd.f32 %v2274, %v2292
    %v2301 = vadd.f32 %v2275, %v2293
    %v2302 = vadd.f32 %v2276, %v2294
    %v2303 = vadd.f32 %v2277, %v2295
    %v2304 = vadd.f32 %v2278, %v2296
    %v2305 = vadd.f32 %v2279, %v2297
    %v2306 = vadd.f32 %v2280, %v2298
    %s2307 = sld [smem:[#allocation2 + $0x15]]
    %v2308 = vld [vmem:[%s976 + $0x4] sm:$0xff]
    %v2309 = vld [vmem:[%s976 + $0xc] sm:$0xff]
    %v2310 = vld [vmem:[%s976 + $0x1c] sm:$0xff]
    %v2311 = vld [vmem:[%s976 + $0x24] sm:$0xff]
    %v2312 = vld [vmem:[%s976 + $0x34] sm:$0xff]
    %v2313 = vld [vmem:[%s976 + $0x3c] sm:$0xff]
    %v2314 = vld [vmem:[%s976 + $0x4c] sm:$0xff]
    %v2315 = vld [vmem:[%s976 + $0x54] sm:$0xff]
    %v2316 = vstv %s2307
    %v2317 = vmul.f32 %v2308, %v2316
    %v2318 = vmul.f32 %v2309, %v2316
    %v2319 = vmul.f32 %v2310, %v2316
    %v2320 = vmul.f32 %v2311, %v2316
    %v2321 = vmul.f32 %v2312, %v2316
    %v2322 = vmul.f32 %v2313, %v2316
    %v2323 = vmul.f32 %v2314, %v2316
    %v2324 = vmul.f32 %v2315, %v2316
    %v2325 = vadd.f32 %v2299, %v2317
    %v2326 = vadd.f32 %v2300, %v2318
    %v2327 = vadd.f32 %v2301, %v2319
    %v2328 = vadd.f32 %v2302, %v2320
    %v2329 = vadd.f32 %v2303, %v2321
    %v2330 = vadd.f32 %v2304, %v2322
    %v2331 = vadd.f32 %v2305, %v2323
    %v2332 = vadd.f32 %v2306, %v2324
    %s2333 = sld [smem:[#allocation2 + $0x16]]
    %v2334 = vld [vmem:[%s976 + $0x5] sm:$0xff]
    %v2335 = vld [vmem:[%s976 + $0xd] sm:$0xff]
    %v2336 = vld [vmem:[%s976 + $0x1d] sm:$0xff]
    %v2337 = vld [vmem:[%s976 + $0x25] sm:$0xff]
    %v2338 = vld [vmem:[%s976 + $0x35] sm:$0xff]
    %v2339 = vld [vmem:[%s976 + $0x3d] sm:$0xff]
    %v2340 = vld [vmem:[%s976 + $0x4d] sm:$0xff]
    %v2341 = vld [vmem:[%s976 + $0x55] sm:$0xff]
    %v2342 = vstv %s2333
    %v2343 = vmul.f32 %v2334, %v2342
    %v2344 = vmul.f32 %v2335, %v2342
    %v2345 = vmul.f32 %v2336, %v2342
    %v2346 = vmul.f32 %v2337, %v2342
    %v2347 = vmul.f32 %v2338, %v2342
    %v2348 = vmul.f32 %v2339, %v2342
    %v2349 = vmul.f32 %v2340, %v2342
    %v2350 = vmul.f32 %v2341, %v2342
    %v2351 = vadd.f32 %v2325, %v2343
    %v2352 = vadd.f32 %v2326, %v2344
    %v2353 = vadd.f32 %v2327, %v2345
    %v2354 = vadd.f32 %v2328, %v2346
    %v2355 = vadd.f32 %v2329, %v2347
    %v2356 = vadd.f32 %v2330, %v2348
    %v2357 = vadd.f32 %v2331, %v2349
    %v2358 = vadd.f32 %v2332, %v2350
    %s2359 = sld [smem:[#allocation2 + $0x17]]
    %v2360 = vld [vmem:[%s976 + $0x6] sm:$0xff]
    %v2361 = vld [vmem:[%s976 + $0xe] sm:$0xff]
    %v2362 = vld [vmem:[%s976 + $0x1e] sm:$0xff]
    %v2363 = vld [vmem:[%s976 + $0x26] sm:$0xff]
    %v2364 = vld [vmem:[%s976 + $0x36] sm:$0xff]
    %v2365 = vld [vmem:[%s976 + $0x3e] sm:$0xff]
    %v2366 = vld [vmem:[%s976 + $0x4e] sm:$0xff]
    %v2367 = vld [vmem:[%s976 + $0x56] sm:$0xff]
    %v2368 = vstv %s2359
    %v2369 = vmul.f32 %v2360, %v2368
    %v2370 = vmul.f32 %v2361, %v2368
    %v2371 = vmul.f32 %v2362, %v2368
    %v2372 = vmul.f32 %v2363, %v2368
    %v2373 = vmul.f32 %v2364, %v2368
    %v2374 = vmul.f32 %v2365, %v2368
    %v2375 = vmul.f32 %v2366, %v2368
    %v2376 = vmul.f32 %v2367, %v2368
    %v2377 = vadd.f32 %v2351, %v2369
    %v2378 = vadd.f32 %v2352, %v2370
    %v2379 = vadd.f32 %v2353, %v2371
    %v2380 = vadd.f32 %v2354, %v2372
    %v2381 = vadd.f32 %v2355, %v2373
    %v2382 = vadd.f32 %v2356, %v2374
    %v2383 = vadd.f32 %v2357, %v2375
    %v2384 = vadd.f32 %v2358, %v2376
    %s2385 = scalar_lea.vmem %s2, 896
    %2386 = vst [vmem:[%s2385] sm:$0xff] %v2377
    %2387 = vst [vmem:[%s2385 + $0x8] sm:$0xff] %v2378
    %2388 = vst [vmem:[%s2385 + $0x10] sm:$0xff] %v2379
    %2389 = vst [vmem:[%s2385 + $0x18] sm:$0xff] %v2380
    %2390 = vst [vmem:[%s2385 + $0x20] sm:$0xff] %v2381
    %2391 = vst [vmem:[%s2385 + $0x28] sm:$0xff] %v2382
    %2392 = vst [vmem:[%s2385 + $0x30] sm:$0xff] %v2383
    %2393 = vst [vmem:[%s2385 + $0x38] sm:$0xff] %v2384
    %s2394 = sld [smem:[#allocation2 + $0x12]]
    %v2395 = vld [vmem:[%s1678 + $0x4] sm:$0xff]
    %v2396 = vld [vmem:[%s1678 + $0xc] sm:$0xff]
    %v2397 = vld [vmem:[%s1678 + $0x1c] sm:$0xff]
    %v2398 = vld [vmem:[%s1678 + $0x24] sm:$0xff]
    %v2399 = vld [vmem:[%s1678 + $0x34] sm:$0xff]
    %v2400 = vld [vmem:[%s1678 + $0x3c] sm:$0xff]
    %v2401 = vld [vmem:[%s1678 + $0x4c] sm:$0xff]
    %v2402 = vld [vmem:[%s1678 + $0x54] sm:$0xff]
    %v2403 = vstv %s2394
    %v2404 = vmul.f32 %v2395, %v2403
    %v2405 = vmul.f32 %v2396, %v2403
    %v2406 = vmul.f32 %v2397, %v2403
    %v2407 = vmul.f32 %v2398, %v2403
    %v2408 = vmul.f32 %v2399, %v2403
    %v2409 = vmul.f32 %v2400, %v2403
    %v2410 = vmul.f32 %v2401, %v2403
    %v2411 = vmul.f32 %v2402, %v2403
    %s2412 = sld [smem:[#allocation2 + $0x13]]
    %v2413 = vld [vmem:[%s1678 + $0x5] sm:$0xff]
    %v2414 = vld [vmem:[%s1678 + $0xd] sm:$0xff]
    %v2415 = vld [vmem:[%s1678 + $0x1d] sm:$0xff]
    %v2416 = vld [vmem:[%s1678 + $0x25] sm:$0xff]
    %v2417 = vld [vmem:[%s1678 + $0x35] sm:$0xff]
    %v2418 = vld [vmem:[%s1678 + $0x3d] sm:$0xff]
    %v2419 = vld [vmem:[%s1678 + $0x4d] sm:$0xff]
    %v2420 = vld [vmem:[%s1678 + $0x55] sm:$0xff]
    %v2421 = vstv %s2412
    %v2422 = vmul.f32 %v2413, %v2421
    %v2423 = vmul.f32 %v2414, %v2421
    %v2424 = vmul.f32 %v2415, %v2421
    %v2425 = vmul.f32 %v2416, %v2421
    %v2426 = vmul.f32 %v2417, %v2421
    %v2427 = vmul.f32 %v2418, %v2421
    %v2428 = vmul.f32 %v2419, %v2421
    %v2429 = vmul.f32 %v2420, %v2421
    %v2430 = vadd.f32 %v2404, %v2422
    %v2431 = vadd.f32 %v2405, %v2423
    %v2432 = vadd.f32 %v2406, %v2424
    %v2433 = vadd.f32 %v2407, %v2425
    %v2434 = vadd.f32 %v2408, %v2426
    %v2435 = vadd.f32 %v2409, %v2427
    %v2436 = vadd.f32 %v2410, %v2428
    %v2437 = vadd.f32 %v2411, %v2429
    %s2438 = sld [smem:[#allocation2 + $0x14]]
    %v2439 = vld [vmem:[%s1678 + $0x6] sm:$0xff]
    %v2440 = vld [vmem:[%s1678 + $0xe] sm:$0xff]
    %v2441 = vld [vmem:[%s1678 + $0x1e] sm:$0xff]
    %v2442 = vld [vmem:[%s1678 + $0x26] sm:$0xff]
    %v2443 = vld [vmem:[%s1678 + $0x36] sm:$0xff]
    %v2444 = vld [vmem:[%s1678 + $0x3e] sm:$0xff]
    %v2445 = vld [vmem:[%s1678 + $0x4e] sm:$0xff]
    %v2446 = vld [vmem:[%s1678 + $0x56] sm:$0xff]
    %v2447 = vstv %s2438
    %v2448 = vmul.f32 %v2439, %v2447
    %v2449 = vmul.f32 %v2440, %v2447
    %v2450 = vmul.f32 %v2441, %v2447
    %v2451 = vmul.f32 %v2442, %v2447
    %v2452 = vmul.f32 %v2443, %v2447
    %v2453 = vmul.f32 %v2444, %v2447
    %v2454 = vmul.f32 %v2445, %v2447
    %v2455 = vmul.f32 %v2446, %v2447
    %v2456 = vadd.f32 %v2430, %v2448
    %v2457 = vadd.f32 %v2431, %v2449
    %v2458 = vadd.f32 %v2432, %v2450
    %v2459 = vadd.f32 %v2433, %v2451
    %v2460 = vadd.f32 %v2434, %v2452
    %v2461 = vadd.f32 %v2435, %v2453
    %v2462 = vadd.f32 %v2436, %v2454
    %v2463 = vadd.f32 %v2437, %v2455
    %s2464 = sld [smem:[#allocation2 + $0x15]]
    %v2465 = vld [vmem:[%s1134 + $0x4] sm:$0xff]
    %v2466 = vld [vmem:[%s1134 + $0xc] sm:$0xff]
    %v2467 = vld [vmem:[%s1134 + $0x1c] sm:$0xff]
    %v2468 = vld [vmem:[%s1134 + $0x24] sm:$0xff]
    %v2469 = vld [vmem:[%s1134 + $0x34] sm:$0xff]
    %v2470 = vld [vmem:[%s1134 + $0x3c] sm:$0xff]
    %v2471 = vld [vmem:[%s1134 + $0x4c] sm:$0xff]
    %v2472 = vld [vmem:[%s1134 + $0x54] sm:$0xff]
    %v2473 = vstv %s2464
    %v2474 = vmul.f32 %v2465, %v2473
    %v2475 = vmul.f32 %v2466, %v2473
    %v2476 = vmul.f32 %v2467, %v2473
    %v2477 = vmul.f32 %v2468, %v2473
    %v2478 = vmul.f32 %v2469, %v2473
    %v2479 = vmul.f32 %v2470, %v2473
    %v2480 = vmul.f32 %v2471, %v2473
    %v2481 = vmul.f32 %v2472, %v2473
    %v2482 = vadd.f32 %v2456, %v2474
    %v2483 = vadd.f32 %v2457, %v2475
    %v2484 = vadd.f32 %v2458, %v2476
    %v2485 = vadd.f32 %v2459, %v2477
    %v2486 = vadd.f32 %v2460, %v2478
    %v2487 = vadd.f32 %v2461, %v2479
    %v2488 = vadd.f32 %v2462, %v2480
    %v2489 = vadd.f32 %v2463, %v2481
    %s2490 = sld [smem:[#allocation2 + $0x16]]
    %v2491 = vld [vmem:[%s1134 + $0x5] sm:$0xff]
    %v2492 = vld [vmem:[%s1134 + $0xd] sm:$0xff]
    %v2493 = vld [vmem:[%s1134 + $0x1d] sm:$0xff]
    %v2494 = vld [vmem:[%s1134 + $0x25] sm:$0xff]
    %v2495 = vld [vmem:[%s1134 + $0x35] sm:$0xff]
    %v2496 = vld [vmem:[%s1134 + $0x3d] sm:$0xff]
    %v2497 = vld [vmem:[%s1134 + $0x4d] sm:$0xff]
    %v2498 = vld [vmem:[%s1134 + $0x55] sm:$0xff]
    %v2499 = vstv %s2490
    %v2500 = vmul.f32 %v2491, %v2499
    %v2501 = vmul.f32 %v2492, %v2499
    %v2502 = vmul.f32 %v2493, %v2499
    %v2503 = vmul.f32 %v2494, %v2499
    %v2504 = vmul.f32 %v2495, %v2499
    %v2505 = vmul.f32 %v2496, %v2499
    %v2506 = vmul.f32 %v2497, %v2499
    %v2507 = vmul.f32 %v2498, %v2499
    %v2508 = vadd.f32 %v2482, %v2500
    %v2509 = vadd.f32 %v2483, %v2501
    %v2510 = vadd.f32 %v2484, %v2502
    %v2511 = vadd.f32 %v2485, %v2503
    %v2512 = vadd.f32 %v2486, %v2504
    %v2513 = vadd.f32 %v2487, %v2505
    %v2514 = vadd.f32 %v2488, %v2506
    %v2515 = vadd.f32 %v2489, %v2507
    %s2516 = sld [smem:[#allocation2 + $0x17]]
    %v2517 = vld [vmem:[%s1134 + $0x6] sm:$0xff]
    %v2518 = vld [vmem:[%s1134 + $0xe] sm:$0xff]
    %v2519 = vld [vmem:[%s1134 + $0x1e] sm:$0xff]
    %v2520 = vld [vmem:[%s1134 + $0x26] sm:$0xff]
    %v2521 = vld [vmem:[%s1134 + $0x36] sm:$0xff]
    %v2522 = vld [vmem:[%s1134 + $0x3e] sm:$0xff]
    %v2523 = vld [vmem:[%s1134 + $0x4e] sm:$0xff]
    %v2524 = vld [vmem:[%s1134 + $0x56] sm:$0xff]
    %v2525 = vstv %s2516
    %v2526 = vmul.f32 %v2517, %v2525
    %v2527 = vmul.f32 %v2518, %v2525
    %v2528 = vmul.f32 %v2519, %v2525
    %v2529 = vmul.f32 %v2520, %v2525
    %v2530 = vmul.f32 %v2521, %v2525
    %v2531 = vmul.f32 %v2522, %v2525
    %v2532 = vmul.f32 %v2523, %v2525
    %v2533 = vmul.f32 %v2524, %v2525
    %v2534 = vadd.f32 %v2508, %v2526
    %v2535 = vadd.f32 %v2509, %v2527
    %v2536 = vadd.f32 %v2510, %v2528
    %v2537 = vadd.f32 %v2511, %v2529
    %v2538 = vadd.f32 %v2512, %v2530
    %v2539 = vadd.f32 %v2513, %v2531
    %v2540 = vadd.f32 %v2514, %v2532
    %v2541 = vadd.f32 %v2515, %v2533
    %s2542 = scalar_lea.vmem %s2, 960
    %2543 = vst [vmem:[%s2542] sm:$0xff] %v2534
    %2544 = vst [vmem:[%s2542 + $0x8] sm:$0xff] %v2535
    %2545 = vst [vmem:[%s2542 + $0x10] sm:$0xff] %v2536
    %2546 = vst [vmem:[%s2542 + $0x18] sm:$0xff] %v2537
    %2547 = vst [vmem:[%s2542 + $0x20] sm:$0xff] %v2538
    %2548 = vst [vmem:[%s2542 + $0x28] sm:$0xff] %v2539
    %2549 = vst [vmem:[%s2542 + $0x30] sm:$0xff] %v2540
    %2550 = vst [vmem:[%s2542 + $0x38] sm:$0xff] %v2541
    // Predicated region
    $region14: #{_lambda_.1} parent=1 // pred_check
      _
    $region15: #{_lambda_.1} parent=1 // pred_check_branch
      %2552 = sbr.rel (0) target = $region17
    $region16: #{_lambda_.1} parent=1 // pred_region
      _
    $region17: #{_lambda_.1} parent=1 // pred_fallthru
      _
    // Predicated region
    $region18: #{_lambda_.1} parent=1 // pred_check
      _
    $region19: #{_lambda_.1} parent=1 // pred_check_branch
      %2554 = sbr.rel (0) target = $region21
    $region20: #{_lambda_.1} parent=1 // pred_region
      _
    $region21: #{_lambda_.1} parent=1 // pred_fallthru
      _
    %2555 = vsyncpa [#allocation3], 1

</llo_original>
